<compile_context>
chip_gen: v7x
topology: tpu7x:2x2x1
jax: 0.10.0
libtpu: 0.0.40
codegen_flags: <defaults>
</compile_context>

<pallas_src>
import numpy as np
import jax
import jax.numpy as jnp
from jax import lax
from jax.experimental import pallas as pl
from jax.experimental.pallas import tpu as pltpu

# ----- hyper-parameters consistent with the module's __init__ ------------------
BATCH       = 2
EMBED_DIM   = 8           # sensor channels / embed_dim (E)
WINDOW_LEN  = 16          # sliding-window length (W)
NB_HEAD     = 2
HEAD_DIM    = EMBED_DIM // NB_HEAD      # 4
NUM_BLOCKS  = 2
HIDDEN_DIM  = 32
NUM_CLASSES = 4
MAX_LEN     = 512
WH          = WINDOW_LEN // NB_HEAD     # 8 rows per (batch, head) slab
ROWS        = BATCH * WINDOW_LEN        # 32 batch-stacked rows
BIG         = 2 * ROWS                  # 64 stacked attention rows (L/R column halves)
LN_EPS      = 1e-5

assert NB_HEAD == 2 and EMBED_DIM % NB_HEAD == 0  # L/R weight folding assumes 2 heads

# -------- packed-operand layout (shared by host packing and kernel slicing) --------
# per-block pack bpack: (NUM_BLOCKS, BP_ROWS, 64)
BP_WPROJ = 0      # rows 0:8   cols 0:64  fused projection (q/k/v@wo for both halves)
BP_W1    = 8      # rows 8:16  cols 0:32  mlp w1 (E, HIDDEN)
BP_B1    = 16     # row  16    cols 0:32  mlp b1
BP_VEC   = 17     # rows 17:23 cols 0:8   ln1_g, ln1_b, w_o bias, ln2_g, ln2_b, b2
BP_W2    = 24     # rows 24:56 cols 0:8   mlp w2 (HIDDEN, E)
BP_ROWS  = 56

# shared constant pack cpack: (CP_ROWS, 64)
CP_AMASK = 0      # rows   0:64  cols 0:64  block-diag additive attention mask
CP_P2    = 64     # rows  64:96  cols 0:64  head un-permutation + head-sum matrix
CP_DMASK = 96     # rows  96:128 cols 0:64  fc1 per-row window-position selection mask
CP_W1M   = 128    # rows 128:136 cols 0:64  fc1 weight rearranged to (E, W*C)
CP_HM    = 136    # rows 136:200 cols 0:8 head0 mask, 8:16 head1 mask, 16:20 csum@fc2_w
CP_POOL  = 200    # rows 200:232 cols 0:32 pool2, 32:40 fc gamma, 40:48 fc beta
CP_TAIL  = 232    # rows 232:234 cols 0:32 per-batch row-sum, 32:36 folded tail bias
CP_ROWS  = 240


# ------------------------------ in-kernel helpers -------------------------------
def _layernorm(x, g, b):
    mu = jnp.mean(x, axis=-1, keepdims=True)
    var = jnp.mean((x - mu) ** 2, axis=-1, keepdims=True)
    return (x - mu) * lax.rsqrt(var + LN_EPS) * g + b


def _erf(x):
    # Abramowitz & Stegun 7.1.26 (|err| < 1.5e-7).  Exact division per the review's
    # numerics note (approx reciprocal kept only for the softmax normalization).
    p = 0.3275911
    a1, a2, a3, a4, a5 = 0.254829592, -0.284496736, 1.421413741, -1.453152027, 1.061405429
    s = jnp.where(x >= 0.0, 1.0, -1.0)
    z = jnp.abs(x)
    t = 1.0 / (1.0 + p * z)
    poly = t * (a1 + t * (a2 + t * (a3 + t * (a4 + t * a5))))
    return s * (1.0 - poly * jnp.exp(-z * z))


def _gelu(x):
    return 0.5 * x * (1.0 + _erf(x * (1.0 / np.sqrt(2.0))))


# --------------------------------- the kernel -----------------------------------
def vit_kernel(x_ref, bpack_ref, cpack_ref, out_ref):
    E, Hd, C = EMBED_DIM, HIDDEN_DIM, NUM_CLASSES

    # shared attention constants
    amask = cpack_ref[CP_AMASK:CP_AMASK + BIG, :]                  # (64, 64)
    p2    = cpack_ref[CP_P2:CP_P2 + ROWS, :]                       # (32, 64)
    h0m   = cpack_ref[CP_HM:CP_HM + BIG, 0:E]                      # (64, 8)
    h1m   = cpack_ref[CP_HM:CP_HM + BIG, E:2 * E]                  # (64, 8)

    x = x_ref[...]                                                 # (32, 8), pos already added

    for blk in range(NUM_BLOCKS):                                  # static unroll
        bp = bpack_ref[blk]                                        # (56, 64) per-block slab
        wproj = bp[BP_WPROJ:BP_WPROJ + E, :]                       # (8, 64)
        w1    = bp[BP_W1:BP_W1 + E, 0:Hd]                          # (8, 32)
        b1    = bp[BP_B1:BP_B1 + 1, 0:Hd]                          # (1, 32)
        ln1g  = bp[BP_VEC + 0:BP_VEC + 1, 0:E]
        ln1b  = bp[BP_VEC + 1:BP_VEC + 2, 0:E]
        wob   = bp[BP_VEC + 2:BP_VEC + 3, 0:E]
        ln2g  = bp[BP_VEC + 3:BP_VEC + 4, 0:E]
        ln2b  = bp[BP_VEC + 4:BP_VEC + 5, 0:E]
        b2v   = bp[BP_VEC + 5:BP_VEC + 6, 0:E]
        w2    = bp[BP_W2:BP_W2 + Hd, 0:E]                          # (32, 8)

        # ---------- MSA branch (head view, scale and w_o folded on the host) ----------
        hln = _layernorm(x, ln1g, ln1b)                            # (32, 8)
        proj = jnp.dot(hln, wproj, preferred_element_type=jnp.float32)      # (32, 64)
        # one sublane concat builds all 64 stacked rows:
        #   rows 0..31  -> left  column-half operands [qL|0, kL|kL, x@WvL@Wo0, x@WvL@Wo1]
        #   rows 32..63 -> right column-half operands [0|qR, kR|kR, x@WvR@Wo0, x@WvR@Wo1]
        big = jnp.concatenate([proj[:, 0:32], proj[:, 32:64]], axis=0)      # (64, 32)
        q_big = big[:, 0:8]
        k_big = big[:, 8:16]
        vo_big = big[:, 16:24] * h0m + big[:, 24:32] * h1m                  # (64, 8)

        # all B*NB_HEAD attention problems at once, block-diagonal via additive mask
        dots = lax.dot_general(q_big, k_big, (((1,), (1,)), ((), ())),
                               preferred_element_type=jnp.float32) + amask  # (64, 64)
        mx = jnp.max(dots, axis=-1, keepdims=True)
        expv = jnp.exp(dots - mx)
        attn = expv * pl.reciprocal(jnp.sum(expv, axis=-1, keepdims=True), approx=True)
        # reassociated epilogue: 64-lane-wide intermediate (p2 @ attn)
        pa = jnp.dot(p2, attn, preferred_element_type=jnp.float32)          # (32, 64)
        x = jnp.dot(pa, vo_big, preferred_element_type=jnp.float32) + wob + x

        # ---------- MLP branch ----------
        h2 = _layernorm(x, ln2g, ln2b)
        m1 = _gelu(jnp.dot(h2, w1, preferred_element_type=jnp.float32) + b1)  # (32, 32)
        x = jnp.dot(m1, w2, preferred_element_type=jnp.float32) + b2v + x

    # ---------- classification head, computed directly in the (B*W, E) layout ----------
    pool2 = cpack_ref[CP_POOL:CP_POOL + ROWS, 0:ROWS]                       # (32, 32)
    fcg   = cpack_ref[CP_POOL:CP_POOL + ROWS, ROWS:ROWS + E]                # (32, 8)
    fcb   = cpack_ref[CP_POOL:CP_POOL + ROWS, ROWS + E:ROWS + 2 * E]        # (32, 8)
    dmask = cpack_ref[CP_DMASK:CP_DMASK + ROWS, :]                          # (32, 64)
    w1m   = cpack_ref[CP_W1M:CP_W1M + E, :]                                 # (8, 64)
    csum_fc2 = cpack_ref[CP_HM:CP_HM + BIG, 2 * E:2 * E + C]                # (64, 4)
    poolbt = cpack_ref[CP_TAIL:CP_TAIL + BATCH, 0:ROWS]                     # (2, 32)
    bias2  = cpack_ref[CP_TAIL:CP_TAIL + BATCH, ROWS:ROWS + C]              # (2, 4)

    # LayerNorm over the flattened W*E features of each batch element (single fused pool)
    xcat = jnp.concatenate([x, x * x], axis=1)                              # (32, 16)
    pooled = jnp.dot(pool2, xcat, preferred_element_type=jnp.float32)       # (32, 16)
    mean = jnp.sum(pooled[:, 0:E], axis=-1, keepdims=True)
    ex2 = jnp.sum(pooled[:, E:2 * E], axis=-1, keepdims=True)
    var = ex2 - mean * mean
    xn = (x - mean) * lax.rsqrt(var + LN_EPS) * fcg + fcb                   # (32, 8)

    # Linear(W*E -> C) then Linear(C -> C), with fc2/fc biases folded host-side
    a = jnp.dot(xn, w1m, preferred_element_type=jnp.float32) * dmask        # (32, 64)
    yrow = jnp.dot(a, csum_fc2, preferred_element_type=jnp.float32)         # (32, 4)
    y = jnp.dot(poolbt, yrow, preferred_element_type=jnp.float32) + bias2   # (2, 4)
    out_ref[...] = y


# ------------------------------- pallas wrapper ----------------------------------
def _full_spec(shape):
    nd = len(shape)
    return pl.BlockSpec(shape, lambda i, _nd=nd: (0,) * _nd)


@jax.jit
def vit_forward(x, pos_t, bpack, cpack):
    # (B, E, W) -> batch-stacked (B*W, E) plus positional embedding, done in the
    # wrapper (fuses into input production; removes 2 matmuls + 2 operands from the
    # latency-bound kernel, per the review).
    xin = jnp.transpose(x, (0, 2, 1)).reshape(ROWS, EMBED_DIM) + pos_t
    inputs = [xin, bpack, cpack]
    bytes_accessed = int(sum(int(np.prod(a.shape)) * 4 for a in inputs)
                         + BATCH * NUM_CLASSES * 4)
    return pl.pallas_call(
        vit_kernel,
        grid=(1,),                                    # whole problem in one grid step
        in_specs=[_full_spec(a.shape) for a in inputs],
        out_specs=pl.BlockSpec((BATCH, NUM_CLASSES), lambda i: (0, 0)),
        out_shape=jax.ShapeDtypeStruct((BATCH, NUM_CLASSES), jnp.float32),
        compiler_params=pltpu.CompilerParams(dimension_semantics=("arbitrary",)),
        cost_estimate=pl.CostEstimate(flops=950_000, transcendentals=12_000,
                                      bytes_accessed=bytes_accessed),
    )(*inputs)


# --------------------------- raw (PyTorch-equivalent) weights --------------------
def build_positional_embedding():
    # Reproduces InputLayer exactly (note: 10000**(i/L), no minus sign).
    temp = jnp.zeros((MAX_LEN, WINDOW_LEN), jnp.float32)
    position = jnp.arange(MAX_LEN, dtype=jnp.float32)[:, None]
    div2 = 10000.0 ** (jnp.arange(0, WINDOW_LEN, 2, dtype=jnp.float32) / WINDOW_LEN)
    div1 = 10000.0 ** (jnp.arange(1, WINDOW_LEN, 2, dtype=jnp.float32) / WINDOW_LEN)
    temp = temp.at[:, 0::2].set(jnp.sin(position * div2))
    temp = temp.at[:, 1::2].set(jnp.cos(position * div1))
    return temp[:EMBED_DIM, :].T                      # (window_len, embed_dim) = (16, 8)


def init_raw_weights(key):
    keys = iter(jax.random.split(key, 32))
    nrm = lambda shape, s=0.1: (s * jax.random.normal(next(keys), shape)).astype(jnp.float32)
    E, Hd, C, W = EMBED_DIM, HIDDEN_DIM, NUM_CLASSES, WINDOW_LEN
    blocks = []
    for _ in range(NUM_BLOCKS):
        blocks.append(dict(
            ln1_g=jnp.ones((E,), jnp.float32), ln1_b=jnp.zeros((E,), jnp.float32),
            wq=nrm((E, E)), wk=nrm((E, E)), wv=nrm((E, E)),     # Linear weights stored (in,out)
            wo=nrm((E, E)), bo=nrm((E,)),
            ln2_g=jnp.ones((E,), jnp.float32), ln2_b=jnp.zeros((E,), jnp.float32),
            w1=nrm((E, Hd)), b1=nrm((Hd,)), w2=nrm((Hd, E)), b2=nrm((E,)),
        ))
    return dict(
        pos=build_positional_embedding(),
        blocks=blocks,
        fc_g=jnp.ones((E * W,), jnp.float32), fc_b=jnp.zeros((E * W,), jnp.float32),
        fc1_w=nrm((E * W, C)), fc1_b=nrm((C,)),
        fc2_w=nrm((C, C)), fc2_b=nrm((C,)),
    )


# ---------------- host-side weight folding & packed constant construction ---------
def prepare_kernel_inputs(raw):
    B, W, E, H, D, C = BATCH, WINDOW_LEN, EMBED_DIM, NB_HEAD, HEAD_DIM, NUM_CLASSES
    R, U, Hd = ROWS, BIG, HIDDEN_DIM
    f32, f64 = np.float32, np.float64

    # ---------------- per-block weight pack ----------------
    bpack = np.zeros((NUM_BLOCKS, BP_ROWS, 64), f32)
    scale = 1.0 / np.sqrt(D)
    for i, p in enumerate(raw["blocks"]):
        wq = np.asarray(p["wq"], f64); wk = np.asarray(p["wk"], f64)
        wv = np.asarray(p["wv"], f64); wo = np.asarray(p["wo"], f64)
        z = np.zeros((E, D), f64)
        # left column-half operands (head-view positions w with w % 2 == 0)
        top = np.concatenate([
            np.concatenate([wq[:, :D] * scale, z], axis=1),   # lanes 0:8   [qL | 0]
            np.concatenate([wk[:, :D], wk[:, :D]], axis=1),   # lanes 8:16  [kL | kL]
            wv[:, :D] @ wo[:D, :],                            # lanes 16:24 WvL @ Wo(head0)
            wv[:, :D] @ wo[D:, :]], axis=1)                   # lanes 24:32 WvL @ Wo(head1)
        # right column-half operands (w % 2 == 1)
        bot = np.concatenate([
            np.concatenate([z, wq[:, D:] * scale], axis=1),   # [0 | qR]
            np.concatenate([wk[:, D:], wk[:, D:]], axis=1),   # [kR | kR]
            wv[:, D:] @ wo[:D, :],
            wv[:, D:] @ wo[D:, :]], axis=1)
        bpack[i, BP_WPROJ:BP_WPROJ + E, 0:64] = np.concatenate([top, bot], axis=1)
        bpack[i, BP_W1:BP_W1 + E, 0:Hd] = np.asarray(p["w1"], f32)
        bpack[i, BP_B1, 0:Hd] = np.asarray(p["b1"], f32)
        vec6 = np.stack([np.asarray(p["ln1_g"]), np.asarray(p["ln1_b"]), np.asarray(p["bo"]),
                         np.asarray(p["ln2_g"]), np.asarray(p["ln2_b"]), np.asarray(p["b2"])],
                        axis=0).astype(f32)
        bpack[i, BP_VEC:BP_VEC + 6, 0:E] = vec6
        bpack[i, BP_W2:BP_W2 + Hd, 0:E] = np.asarray(p["w2"], f32)

    # ---------------- shared constant pack ----------------
    cpack = np.zeros((CP_ROWS, 64), f32)

    # additive mask keeping only same-(batch,head)-slab attention pairs
    slab = (np.arange(U) % R) // WH
    cpack[CP_AMASK:CP_AMASK + U, 0:U] = np.where(
        slab[:, None] == slab[None, :], 0.0, -1e30).astype(f32)

    # P2: undoes the L/R stacking of the peculiar head view and sums the two heads;
    # output row r = b*W + w reads stacked rows u = (w%2)*R + (b*H+h)*WH + w//2.
    p2 = np.zeros((R, U), f32)
    for r in range(R):
        b, w = r // W, r % W
        for h in range(H):
            p2[r, (w % 2) * R + (b * H + h) * WH + (w // 2)] = 1.0
    cpack[CP_P2:CP_P2 + R, 0:U] = p2

    # fc1 position-selection mask (row r keeps columns of window position r % W)
    dmask = (np.arange(W * C)[None, :] // C == (np.arange(R) % W)[:, None]).astype(f32)
    cpack[CP_DMASK:CP_DMASK + R, 0:W * C] = dmask

    # fc1 weight rearranged so xn @ w1m yields per-(row, window-pos, class) products
    fc1_w = np.asarray(raw["fc1_w"], f64)
    w1m = np.transpose(fc1_w.reshape(W, E, C), (1, 0, 2)).reshape(E, W * C)
    cpack[CP_W1M:CP_W1M + E, 0:W * C] = w1m.astype(f32)

    # per-stacked-row head masks (head is fixed by the row's slab) + folded csum@fc2_w
    head = slab % H
    cpack[CP_HM:CP_HM + U, 0:E] = (1.0 - head)[:, None].astype(f32)
    cpack[CP_HM:CP_HM + U, E:2 * E] = head[:, None].astype(f32)
    fc2_w = np.asarray(raw["fc2_w"], f64)
    cpack[CP_HM:CP_HM + U, 2 * E:2 * E + C] = np.tile(fc2_w, (W, 1)).astype(f32)  # = csum @ fc2_w

    # per-batch mean pooling (broadcast back to all rows of the batch block) + fc LN affine
    batch_of = np.arange(R) // W
    cpack[CP_POOL:CP_POOL + R, 0:R] = np.where(
        batch_of[:, None] == batch_of[None, :], 1.0 / (W * E), 0.0).astype(f32)
    cpack[CP_POOL:CP_POOL + R, R:R + E] = np.tile(
        np.asarray(raw["fc_g"], f32).reshape(W, E), (B, 1))
    cpack[CP_POOL:CP_POOL + R, R + E:R + 2 * E] = np.tile(
        np.asarray(raw["fc_b"], f32).reshape(W, E), (B, 1))

    # per-batch row summation + folded tail bias  (fc1_b @ fc2_w + fc2_b)
    for b in range(B):
        cpack[CP_TAIL + b, b * W:(b + 1) * W] = 1.0
    bias2 = np.asarray(raw["fc1_b"], f64) @ fc2_w + np.asarray(raw["fc2_b"], f64)
    cpack[CP_TAIL:CP_TAIL + B, R:R + C] = np.tile(bias2.astype(f32)[None, :], (B, 1))

    pos_t = np.tile(np.asarray(raw["pos"], f32), (B, 1))           # (32, 8)
    return jnp.asarray(pos_t), jnp.asarray(bpack), jnp.asarray(cpack)


# ----------------------- pure-JAX reference (PyTorch semantics) --------------------
def _ref_ln(x, g, b):
    mu = jnp.mean(x, axis=-1, keepdims=True)
    var = jnp.mean((x - mu) ** 2, axis=-1, keepdims=True)
    return (x - mu) / jnp.sqrt(var + LN_EPS) * g + b


def _hp(a, b):
    return jnp.dot(a, b, precision=lax.Precision.HIGHEST)


def reference_forward(x_ncw, raw):
    x = jnp.transpose(x_ncw, (0, 2, 1)) + raw["pos"][None]
    Bsz = x.shape[0]
    for p in raw["blocks"]:
        h = _ref_ln(x, p["ln1_g"], p["ln1_b"])
        q = _hp(h, p["wq"]).reshape(Bsz, NB_HEAD, WINDOW_LEN, HEAD_DIM)
        k = _hp(h, p["wk"]).reshape(Bsz, NB_HEAD, WINDOW_LEN, HEAD_DIM)
        v = _hp(h, p["wv"]).reshape(Bsz, NB_HEAD, WINDOW_LEN, HEAD_DIM)
        dots = jnp.einsum("bhwd,bhud->bhwu", q, k,
                          precision=lax.Precision.HIGHEST) / (HEAD_DIM ** 0.5)
        attn = jax.nn.softmax(dots, axis=-1)
        o = jnp.einsum("bhwu,bhud->bhwd", attn, v, precision=lax.Precision.HIGHEST)
        o = jnp.transpose(o, (0, 2, 1, 3)).reshape(Bsz, WINDOW_LEN, EMBED_DIM)
        x = _hp(o, p["wo"]) + p["bo"] + x
        h2 = _ref_ln(x, p["ln2_g"], p["ln2_b"])
        mm = _hp(h2, p["w1"]) + p["b1"]
        g = 0.5 * mm * (1.0 + lax.erf(mm / np.sqrt(2.0)))        # exact GELU
        x = _hp(g, p["w2"]) + p["b2"] + x
    flat = x.reshape(Bsz, -1)
    fn = _ref_ln(flat, raw["fc_g"], raw["fc_b"])
    y = _hp(fn, raw["fc1_w"]) + raw["fc1_b"]
    return _hp(y, raw["fc2_w"]) + raw["fc2_b"]


if __name__ == "__main__":
    key = jax.random.PRNGKey(0)
    kx, kw = jax.random.split(key)
    raw = init_raw_weights(kw)
    pos_t, bpack, cpack = prepare_kernel_inputs(raw)
    # Input follows the PyTorch module's expectation: (batch, embed_dim, window_len).
    x = jax.random.normal(kx, (BATCH, EMBED_DIM, WINDOW_LEN), dtype=jnp.float32)

    pred = vit_forward(x, pos_t, bpack, cpack)
    jax.block_until_ready(pred)
    assert pred.shape == (BATCH, NUM_CLASSES) and pred.dtype == jnp.float32

    # Reference comparison for the host-side weight folding.  Tolerance tightened from
    # 3e-2 to 1e-2; the remaining error floor is the in-kernel MXU default-precision
    # f32 matmuls vs. the HIGHEST-precision reference (erf / softmax recips now exact
    # or ~2^-12), not the folding (done in float64).
    ref = reference_forward(x, raw)
    max_err = float(jnp.max(jnp.abs(pred - ref)))
    assert max_err < 1e-2, f"kernel/reference mismatch: max |diff| = {max_err}"
    print("KERNEL_OK")
</pallas_src>

<mosaic_0001>
module attributes {stable_mosaic.version = 11 : i64} {
  func.func @vit_kernel(%arg0: i32, %arg1: memref<32x8xf32, #tpu.memory_space<vmem>>, %arg2: memref<2x56x64xf32, #tpu.memory_space<vmem>>, %arg3: memref<240x64xf32, #tpu.memory_space<vmem>>, %arg4: memref<2x4xf32, #tpu.memory_space<vmem>>) attributes {dimension_semantics = [#tpu.dimension_semantics<arbitrary>], iteration_bounds = array<i64: 1>, scalar_prefetch = 0 : i64, scratch_operands = 0 : i64, tpu.core_type = #tpu.core_type<tc>, window_params = [{pipeline_mode = #tpu.pipeline_mode<synchronous>, transform_indices = @transform_0, window_bounds = array<i64: 32, 8>}, {pipeline_mode = #tpu.pipeline_mode<synchronous>, transform_indices = @transform_1, window_bounds = array<i64: 2, 56, 64>}, {pipeline_mode = #tpu.pipeline_mode<synchronous>, transform_indices = @transform_2, window_bounds = array<i64: 240, 64>}, {pipeline_mode = #tpu.pipeline_mode<synchronous>, transform_indices = @transform_3, window_bounds = array<i64: 2, 4>}]} {
    %c0 = arith.constant 0 : index
    %c0_0 = arith.constant 0 : index
    %0 = vector.load %arg3[%c0, %c0_0] : memref<240x64xf32, #tpu.memory_space<vmem>>, vector<64x64xf32>
    %c64 = arith.constant 64 : index
    %c0_1 = arith.constant 0 : index
    %1 = vector.load %arg3[%c64, %c0_1] : memref<240x64xf32, #tpu.memory_space<vmem>>, vector<32x64xf32>
    %c136 = arith.constant 136 : index
    %c0_2 = arith.constant 0 : index
    %2 = vector.load %arg3[%c136, %c0_2] : memref<240x64xf32, #tpu.memory_space<vmem>>, vector<64x8xf32>
    %c136_3 = arith.constant 136 : index
    %c8 = arith.constant 8 : index
    %3 = vector.load %arg3[%c136_3, %c8] : memref<240x64xf32, #tpu.memory_space<vmem>>, vector<64x8xf32>
    %c0_4 = arith.constant 0 : index
    %c0_5 = arith.constant 0 : index
    %4 = vector.load %arg1[%c0_4, %c0_5] : memref<32x8xf32, #tpu.memory_space<vmem>>, vector<32x8xf32>
    %c0_6 = arith.constant 0 : index
    %c0_7 = arith.constant 0 : index
    %c0_8 = arith.constant 0 : index
    %5 = vector.load %arg2[%c0_6, %c0_7, %c0_8] : memref<2x56x64xf32, #tpu.memory_space<vmem>>, vector<1x56x64xf32>
    %6 = vector.shape_cast %5 : vector<1x56x64xf32> to vector<56x64xf32>
    %7 = vector.extract_strided_slice %6 {offsets = [0, 0], sizes = [8, 64], strides = [1, 1]} : vector<56x64xf32> to vector<8x64xf32>
    %8 = vector.extract_strided_slice %6 {offsets = [8, 0], sizes = [8, 32], strides = [1, 1]} : vector<56x64xf32> to vector<8x32xf32>
    %9 = vector.extract_strided_slice %6 {offsets = [16, 0], sizes = [1, 32], strides = [1, 1]} : vector<56x64xf32> to vector<1x32xf32>
    %10 = vector.extract_strided_slice %6 {offsets = [17, 0], sizes = [1, 8], strides = [1, 1]} : vector<56x64xf32> to vector<1x8xf32>
    %11 = vector.extract_strided_slice %6 {offsets = [18, 0], sizes = [1, 8], strides = [1, 1]} : vector<56x64xf32> to vector<1x8xf32>
    %12 = vector.extract_strided_slice %6 {offsets = [19, 0], sizes = [1, 8], strides = [1, 1]} : vector<56x64xf32> to vector<1x8xf32>
    %13 = vector.extract_strided_slice %6 {offsets = [20, 0], sizes = [1, 8], strides = [1, 1]} : vector<56x64xf32> to vector<1x8xf32>
    %14 = vector.extract_strided_slice %6 {offsets = [21, 0], sizes = [1, 8], strides = [1, 1]} : vector<56x64xf32> to vector<1x8xf32>
    %15 = vector.extract_strided_slice %6 {offsets = [22, 0], sizes = [1, 8], strides = [1, 1]} : vector<56x64xf32> to vector<1x8xf32>
    %16 = vector.extract_strided_slice %6 {offsets = [24, 0], sizes = [32, 8], strides = [1, 1]} : vector<56x64xf32> to vector<32x8xf32>
    %cst = arith.constant dense<0.000000e+00> : vector<32xf32>
    %17 = vector.multi_reduction <add>, %4, %cst [1] : vector<32x8xf32> to vector<32xf32>
    %18 = vector.shape_cast %17 : vector<32xf32> to vector<32x1xf32>
    %cst_9 = arith.constant 8.000000e+00 : f32
    %19 = vector.broadcast %cst_9 : f32 to vector<32x1xf32>
    %20 = arith.divf %18, %19 : vector<32x1xf32>
    %21 = vector.broadcast %20 : vector<32x1xf32> to vector<32x8xf32>
    %22 = arith.subf %4, %21 : vector<32x8xf32>
    %23 = arith.mulf %22, %22 : vector<32x8xf32>
    %cst_10 = arith.constant dense<0.000000e+00> : vector<32xf32>
    %24 = vector.multi_reduction <add>, %23, %cst_10 [1] : vector<32x8xf32> to vector<32xf32>
    %25 = vector.shape_cast %24 : vector<32xf32> to vector<32x1xf32>
    %cst_11 = arith.constant 8.000000e+00 : f32
    %26 = vector.broadcast %cst_11 : f32 to vector<32x1xf32>
    %27 = arith.divf %25, %26 : vector<32x1xf32>
    %28 = vector.broadcast %20 : vector<32x1xf32> to vector<32x8xf32>
    %29 = arith.subf %4, %28 : vector<32x8xf32>
    %cst_12 = arith.constant 9.99999974E-6 : f32
    %30 = vector.broadcast %cst_12 : f32 to vector<32x1xf32>
    %31 = arith.addf %27, %30 : vector<32x1xf32>
    %32 = math.rsqrt %31 : vector<32x1xf32>
    %33 = vector.broadcast %32 : vector<32x1xf32> to vector<32x8xf32>
    %34 = arith.mulf %29, %33 : vector<32x8xf32>
    %35 = vector.broadcast %10 : vector<1x8xf32> to vector<32x8xf32>
    %36 = arith.mulf %34, %35 : vector<32x8xf32>
    %37 = vector.broadcast %11 : vector<1x8xf32> to vector<32x8xf32>
    %38 = arith.addf %36, %37 : vector<32x8xf32>
    %cst_13 = arith.constant dense<0.000000e+00> : vector<32x64xf32>
    %39 = tpu.matmul %38, %7, %cst_13 {dimension_numbers = #tpu.dot_dimension_numbers<[1], [0], [0], [1], [0, 0, 1, 1], [], []>} : vector<32x8xf32>, vector<8x64xf32>, vector<32x64xf32> -> vector<32x64xf32>
    %40 = vector.extract_strided_slice %39 {offsets = [0, 0], sizes = [32, 32], strides = [1, 1]} : vector<32x64xf32> to vector<32x32xf32>
    %41 = vector.extract_strided_slice %39 {offsets = [0, 32], sizes = [32, 32], strides = [1, 1]} : vector<32x64xf32> to vector<32x32xf32>
    %42 = tpu.concatenate %40, %41 in 0 : vector<32x32xf32>, vector<32x32xf32> -> vector<64x32xf32>
    %43 = vector.extract_strided_slice %42 {offsets = [0, 0], sizes = [64, 8], strides = [1, 1]} : vector<64x32xf32> to vector<64x8xf32>
    %44 = vector.extract_strided_slice %42 {offsets = [0, 8], sizes = [64, 8], strides = [1, 1]} : vector<64x32xf32> to vector<64x8xf32>
    %45 = vector.extract_strided_slice %42 {offsets = [0, 16], sizes = [64, 8], strides = [1, 1]} : vector<64x32xf32> to vector<64x8xf32>
    %46 = arith.mulf %45, %2 : vector<64x8xf32>
    %47 = vector.extract_strided_slice %42 {offsets = [0, 24], sizes = [64, 8], strides = [1, 1]} : vector<64x32xf32> to vector<64x8xf32>
    %48 = arith.mulf %47, %3 : vector<64x8xf32>
    %49 = arith.addf %46, %48 : vector<64x8xf32>
    %cst_14 = arith.constant dense<0.000000e+00> : vector<64x64xf32>
    %50 = tpu.matmul %43, %44, %cst_14 {dimension_numbers = #tpu.dot_dimension_numbers<[1], [1], [0], [0], [0, 0, 1, 0], [], []>} : vector<64x8xf32>, vector<64x8xf32>, vector<64x64xf32> -> vector<64x64xf32>
    %51 = arith.addf %50, %0 : vector<64x64xf32>
    %cst_15 = arith.constant dense<0xFF800000> : vector<64xf32>
    %52 = vector.multi_reduction <maximumf>, %51, %cst_15 [1] : vector<64x64xf32> to vector<64xf32>
    %53 = vector.shape_cast %52 : vector<64xf32> to vector<64x1xf32>
    %54 = vector.broadcast %53 : vector<64x1xf32> to vector<64x64xf32>
    %55 = arith.subf %51, %54 : vector<64x64xf32>
    %56 = math.exp %55 : vector<64x64xf32>
    %cst_16 = arith.constant dense<0.000000e+00> : vector<64xf32>
    %57 = vector.multi_reduction <add>, %56, %cst_16 [1] : vector<64x64xf32> to vector<64xf32>
    %58 = vector.shape_cast %57 : vector<64xf32> to vector<64x1xf32>
    %59 = tpu.reciprocal %58 {approx = true} : vector<64x1xf32> -> vector<64x1xf32>
    %60 = vector.broadcast %59 : vector<64x1xf32> to vector<64x64xf32>
    %61 = arith.mulf %56, %60 : vector<64x64xf32>
    %cst_17 = arith.constant dense<0.000000e+00> : vector<32x64xf32>
    %62 = tpu.matmul %1, %61, %cst_17 {dimension_numbers = #tpu.dot_dimension_numbers<[1], [0], [0], [1], [0, 0, 1, 1], [], []>} : vector<32x64xf32>, vector<64x64xf32>, vector<32x64xf32> -> vector<32x64xf32>
    %cst_18 = arith.constant dense<0.000000e+00> : vector<32x8xf32>
    %63 = tpu.matmul %62, %49, %cst_18 {dimension_numbers = #tpu.dot_dimension_numbers<[1], [0], [0], [1], [0, 0, 1, 1], [], []>} : vector<32x64xf32>, vector<64x8xf32>, vector<32x8xf32> -> vector<32x8xf32>
    %64 = vector.broadcast %12 : vector<1x8xf32> to vector<32x8xf32>
    %65 = arith.addf %63, %64 : vector<32x8xf32>
    %66 = arith.addf %65, %4 : vector<32x8xf32>
    %cst_19 = arith.constant dense<0.000000e+00> : vector<32xf32>
    %67 = vector.multi_reduction <add>, %66, %cst_19 [1] : vector<32x8xf32> to vector<32xf32>
    %68 = vector.shape_cast %67 : vector<32xf32> to vector<32x1xf32>
    %cst_20 = arith.constant 8.000000e+00 : f32
    %69 = vector.broadcast %cst_20 : f32 to vector<32x1xf32>
    %70 = arith.divf %68, %69 : vector<32x1xf32>
    %71 = vector.broadcast %70 : vector<32x1xf32> to vector<32x8xf32>
    %72 = arith.subf %66, %71 : vector<32x8xf32>
    %73 = arith.mulf %72, %72 : vector<32x8xf32>
    %cst_21 = arith.constant dense<0.000000e+00> : vector<32xf32>
    %74 = vector.multi_reduction <add>, %73, %cst_21 [1] : vector<32x8xf32> to vector<32xf32>
    %75 = vector.shape_cast %74 : vector<32xf32> to vector<32x1xf32>
    %cst_22 = arith.constant 8.000000e+00 : f32
    %76 = vector.broadcast %cst_22 : f32 to vector<32x1xf32>
    %77 = arith.divf %75, %76 : vector<32x1xf32>
    %78 = vector.broadcast %70 : vector<32x1xf32> to vector<32x8xf32>
    %79 = arith.subf %66, %78 : vector<32x8xf32>
    %cst_23 = arith.constant 9.99999974E-6 : f32
    %80 = vector.broadcast %cst_23 : f32 to vector<32x1xf32>
    %81 = arith.addf %77, %80 : vector<32x1xf32>
    %82 = math.rsqrt %81 : vector<32x1xf32>
    %83 = vector.broadcast %82 : vector<32x1xf32> to vector<32x8xf32>
    %84 = arith.mulf %79, %83 : vector<32x8xf32>
    %85 = vector.broadcast %13 : vector<1x8xf32> to vector<32x8xf32>
    %86 = arith.mulf %84, %85 : vector<32x8xf32>
    %87 = vector.broadcast %14 : vector<1x8xf32> to vector<32x8xf32>
    %88 = arith.addf %86, %87 : vector<32x8xf32>
    %cst_24 = arith.constant dense<0.000000e+00> : vector<32x32xf32>
    %89 = tpu.matmul %88, %8, %cst_24 {dimension_numbers = #tpu.dot_dimension_numbers<[1], [0], [0], [1], [0, 0, 1, 1], [], []>} : vector<32x8xf32>, vector<8x32xf32>, vector<32x32xf32> -> vector<32x32xf32>
    %90 = vector.broadcast %9 : vector<1x32xf32> to vector<32x32xf32>
    %91 = arith.addf %89, %90 : vector<32x32xf32>
    %cst_25 = arith.constant 5.000000e-01 : f32
    %92 = vector.broadcast %cst_25 : f32 to vector<32x32xf32>
    %93 = arith.mulf %92, %91 : vector<32x32xf32>
    %cst_26 = arith.constant 0.707106769 : f32
    %94 = vector.broadcast %cst_26 : f32 to vector<32x32xf32>
    %95 = arith.mulf %91, %94 : vector<32x32xf32>
    %cst_27 = arith.constant 0.000000e+00 : f32
    %96 = vector.broadcast %cst_27 : f32 to vector<32x32xf32>
    %97 = arith.cmpf oge, %95, %96 : vector<32x32xf32>
    %cst_28 = arith.constant 1.000000e+00 : f32
    %cst_29 = arith.constant -1.000000e+00 : f32
    %98 = vector.broadcast %cst_28 : f32 to vector<32x32xf32>
    %99 = vector.broadcast %cst_29 : f32 to vector<32x32xf32>
    %100 = arith.select %97, %98, %99 : vector<32x32xi1>, vector<32x32xf32>
    %101 = math.absf %95 : vector<32x32xf32>
    %cst_30 = arith.constant 0.327591091 : f32
    %102 = vector.broadcast %cst_30 : f32 to vector<32x32xf32>
    %103 = arith.mulf %102, %101 : vector<32x32xf32>
    %cst_31 = arith.constant 1.000000e+00 : f32
    %104 = vector.broadcast %cst_31 : f32 to vector<32x32xf32>
    %105 = arith.addf %104, %103 : vector<32x32xf32>
    %cst_32 = arith.constant 1.000000e+00 : f32
    %106 = vector.broadcast %cst_32 : f32 to vector<32x32xf32>
    %107 = arith.divf %106, %105 : vector<32x32xf32>
    %cst_33 = arith.constant 1.06140542 : f32
    %108 = vector.broadcast %cst_33 : f32 to vector<32x32xf32>
    %109 = arith.mulf %107, %108 : vector<32x32xf32>
    %cst_34 = arith.constant -1.45315206 : f32
    %110 = vector.broadcast %cst_34 : f32 to vector<32x32xf32>
    %111 = arith.addf %110, %109 : vector<32x32xf32>
    %112 = arith.mulf %107, %111 : vector<32x32xf32>
    %cst_35 = arith.constant 1.42141378 : f32
    %113 = vector.broadcast %cst_35 : f32 to vector<32x32xf32>
    %114 = arith.addf %113, %112 : vector<32x32xf32>
    %115 = arith.mulf %107, %114 : vector<32x32xf32>
    %cst_36 = arith.constant -0.284496725 : f32
    %116 = vector.broadcast %cst_36 : f32 to vector<32x32xf32>
    %117 = arith.addf %116, %115 : vector<32x32xf32>
    %118 = arith.mulf %107, %117 : vector<32x32xf32>
    %cst_37 = arith.constant 0.254829586 : f32
    %119 = vector.broadcast %cst_37 : f32 to vector<32x32xf32>
    %120 = arith.addf %119, %118 : vector<32x32xf32>
    %121 = arith.mulf %107, %120 : vector<32x32xf32>
    %cst_38 = arith.constant 0.000000e+00 : f32
    %122 = vector.broadcast %cst_38 : f32 to vector<32x32xf32>
    %123 = arith.subf %122, %101 : vector<32x32xf32>
    %124 = arith.mulf %123, %101 : vector<32x32xf32>
    %125 = math.exp %124 : vector<32x32xf32>
    %126 = arith.mulf %121, %125 : vector<32x32xf32>
    %cst_39 = arith.constant 1.000000e+00 : f32
    %127 = vector.broadcast %cst_39 : f32 to vector<32x32xf32>
    %128 = arith.subf %127, %126 : vector<32x32xf32>
    %129 = arith.mulf %100, %128 : vector<32x32xf32>
    %cst_40 = arith.constant 1.000000e+00 : f32
    %130 = vector.broadcast %cst_40 : f32 to vector<32x32xf32>
    %131 = arith.addf %130, %129 : vector<32x32xf32>
    %132 = arith.mulf %93, %131 : vector<32x32xf32>
    %cst_41 = arith.constant dense<0.000000e+00> : vector<32x8xf32>
    %133 = tpu.matmul %132, %16, %cst_41 {dimension_numbers = #tpu.dot_dimension_numbers<[1], [0], [0], [1], [0, 0, 1, 1], [], []>} : vector<32x32xf32>, vector<32x8xf32>, vector<32x8xf32> -> vector<32x8xf32>
    %134 = vector.broadcast %15 : vector<1x8xf32> to vector<32x8xf32>
    %135 = arith.addf %133, %134 : vector<32x8xf32>
    %136 = arith.addf %135, %66 : vector<32x8xf32>
    %c1 = arith.constant 1 : index
    %c0_42 = arith.constant 0 : index
    %c0_43 = arith.constant 0 : index
    %137 = vector.load %arg2[%c1, %c0_42, %c0_43] : memref<2x56x64xf32, #tpu.memory_space<vmem>>, vector<1x56x64xf32>
    %138 = vector.shape_cast %137 : vector<1x56x64xf32> to vector<56x64xf32>
    %139 = vector.extract_strided_slice %138 {offsets = [0, 0], sizes = [8, 64], strides = [1, 1]} : vector<56x64xf32> to vector<8x64xf32>
    %140 = vector.extract_strided_slice %138 {offsets = [8, 0], sizes = [8, 32], strides = [1, 1]} : vector<56x64xf32> to vector<8x32xf32>
    %141 = vector.extract_strided_slice %138 {offsets = [16, 0], sizes = [1, 32], strides = [1, 1]} : vector<56x64xf32> to vector<1x32xf32>
    %142 = vector.extract_strided_slice %138 {offsets = [17, 0], sizes = [1, 8], strides = [1, 1]} : vector<56x64xf32> to vector<1x8xf32>
    %143 = vector.extract_strided_slice %138 {offsets = [18, 0], sizes = [1, 8], strides = [1, 1]} : vector<56x64xf32> to vector<1x8xf32>
    %144 = vector.extract_strided_slice %138 {offsets = [19, 0], sizes = [1, 8], strides = [1, 1]} : vector<56x64xf32> to vector<1x8xf32>
    %145 = vector.extract_strided_slice %138 {offsets = [20, 0], sizes = [1, 8], strides = [1, 1]} : vector<56x64xf32> to vector<1x8xf32>
    %146 = vector.extract_strided_slice %138 {offsets = [21, 0], sizes = [1, 8], strides = [1, 1]} : vector<56x64xf32> to vector<1x8xf32>
    %147 = vector.extract_strided_slice %138 {offsets = [22, 0], sizes = [1, 8], strides = [1, 1]} : vector<56x64xf32> to vector<1x8xf32>
    %148 = vector.extract_strided_slice %138 {offsets = [24, 0], sizes = [32, 8], strides = [1, 1]} : vector<56x64xf32> to vector<32x8xf32>
    %cst_44 = arith.constant dense<0.000000e+00> : vector<32xf32>
    %149 = vector.multi_reduction <add>, %136, %cst_44 [1] : vector<32x8xf32> to vector<32xf32>
    %150 = vector.shape_cast %149 : vector<32xf32> to vector<32x1xf32>
    %cst_45 = arith.constant 8.000000e+00 : f32
    %151 = vector.broadcast %cst_45 : f32 to vector<32x1xf32>
    %152 = arith.divf %150, %151 : vector<32x1xf32>
    %153 = vector.broadcast %152 : vector<32x1xf32> to vector<32x8xf32>
    %154 = arith.subf %136, %153 : vector<32x8xf32>
    %155 = arith.mulf %154, %154 : vector<32x8xf32>
    %cst_46 = arith.constant dense<0.000000e+00> : vector<32xf32>
    %156 = vector.multi_reduction <add>, %155, %cst_46 [1] : vector<32x8xf32> to vector<32xf32>
    %157 = vector.shape_cast %156 : vector<32xf32> to vector<32x1xf32>
    %cst_47 = arith.constant 8.000000e+00 : f32
    %158 = vector.broadcast %cst_47 : f32 to vector<32x1xf32>
    %159 = arith.divf %157, %158 : vector<32x1xf32>
    %160 = vector.broadcast %152 : vector<32x1xf32> to vector<32x8xf32>
    %161 = arith.subf %136, %160 : vector<32x8xf32>
    %cst_48 = arith.constant 9.99999974E-6 : f32
    %162 = vector.broadcast %cst_48 : f32 to vector<32x1xf32>
    %163 = arith.addf %159, %162 : vector<32x1xf32>
    %164 = math.rsqrt %163 : vector<32x1xf32>
    %165 = vector.broadcast %164 : vector<32x1xf32> to vector<32x8xf32>
    %166 = arith.mulf %161, %165 : vector<32x8xf32>
    %167 = vector.broadcast %142 : vector<1x8xf32> to vector<32x8xf32>
    %168 = arith.mulf %166, %167 : vector<32x8xf32>
    %169 = vector.broadcast %143 : vector<1x8xf32> to vector<32x8xf32>
    %170 = arith.addf %168, %169 : vector<32x8xf32>
    %cst_49 = arith.constant dense<0.000000e+00> : vector<32x64xf32>
    %171 = tpu.matmul %170, %139, %cst_49 {dimension_numbers = #tpu.dot_dimension_numbers<[1], [0], [0], [1], [0, 0, 1, 1], [], []>} : vector<32x8xf32>, vector<8x64xf32>, vector<32x64xf32> -> vector<32x64xf32>
    %172 = vector.extract_strided_slice %171 {offsets = [0, 0], sizes = [32, 32], strides = [1, 1]} : vector<32x64xf32> to vector<32x32xf32>
    %173 = vector.extract_strided_slice %171 {offsets = [0, 32], sizes = [32, 32], strides = [1, 1]} : vector<32x64xf32> to vector<32x32xf32>
    %174 = tpu.concatenate %172, %173 in 0 : vector<32x32xf32>, vector<32x32xf32> -> vector<64x32xf32>
    %175 = vector.extract_strided_slice %174 {offsets = [0, 0], sizes = [64, 8], strides = [1, 1]} : vector<64x32xf32> to vector<64x8xf32>
    %176 = vector.extract_strided_slice %174 {offsets = [0, 8], sizes = [64, 8], strides = [1, 1]} : vector<64x32xf32> to vector<64x8xf32>
    %177 = vector.extract_strided_slice %174 {offsets = [0, 16], sizes = [64, 8], strides = [1, 1]} : vector<64x32xf32> to vector<64x8xf32>
    %178 = arith.mulf %177, %2 : vector<64x8xf32>
    %179 = vector.extract_strided_slice %174 {offsets = [0, 24], sizes = [64, 8], strides = [1, 1]} : vector<64x32xf32> to vector<64x8xf32>
    %180 = arith.mulf %179, %3 : vector<64x8xf32>
    %181 = arith.addf %178, %180 : vector<64x8xf32>
    %cst_50 = arith.constant dense<0.000000e+00> : vector<64x64xf32>
    %182 = tpu.matmul %175, %176, %cst_50 {dimension_numbers = #tpu.dot_dimension_numbers<[1], [1], [0], [0], [0, 0, 1, 0], [], []>} : vector<64x8xf32>, vector<64x8xf32>, vector<64x64xf32> -> vector<64x64xf32>
    %183 = arith.addf %182, %0 : vector<64x64xf32>
    %cst_51 = arith.constant dense<0xFF800000> : vector<64xf32>
    %184 = vector.multi_reduction <maximumf>, %183, %cst_51 [1] : vector<64x64xf32> to vector<64xf32>
    %185 = vector.shape_cast %184 : vector<64xf32> to vector<64x1xf32>
    %186 = vector.broadcast %185 : vector<64x1xf32> to vector<64x64xf32>
    %187 = arith.subf %183, %186 : vector<64x64xf32>
    %188 = math.exp %187 : vector<64x64xf32>
    %cst_52 = arith.constant dense<0.000000e+00> : vector<64xf32>
    %189 = vector.multi_reduction <add>, %188, %cst_52 [1] : vector<64x64xf32> to vector<64xf32>
    %190 = vector.shape_cast %189 : vector<64xf32> to vector<64x1xf32>
    %191 = tpu.reciprocal %190 {approx = true} : vector<64x1xf32> -> vector<64x1xf32>
    %192 = vector.broadcast %191 : vector<64x1xf32> to vector<64x64xf32>
    %193 = arith.mulf %188, %192 : vector<64x64xf32>
    %cst_53 = arith.constant dense<0.000000e+00> : vector<32x64xf32>
    %194 = tpu.matmul %1, %193, %cst_53 {dimension_numbers = #tpu.dot_dimension_numbers<[1], [0], [0], [1], [0, 0, 1, 1], [], []>} : vector<32x64xf32>, vector<64x64xf32>, vector<32x64xf32> -> vector<32x64xf32>
    %cst_54 = arith.constant dense<0.000000e+00> : vector<32x8xf32>
    %195 = tpu.matmul %194, %181, %cst_54 {dimension_numbers = #tpu.dot_dimension_numbers<[1], [0], [0], [1], [0, 0, 1, 1], [], []>} : vector<32x64xf32>, vector<64x8xf32>, vector<32x8xf32> -> vector<32x8xf32>
    %196 = vector.broadcast %144 : vector<1x8xf32> to vector<32x8xf32>
    %197 = arith.addf %195, %196 : vector<32x8xf32>
    %198 = arith.addf %197, %136 : vector<32x8xf32>
    %cst_55 = arith.constant dense<0.000000e+00> : vector<32xf32>
    %199 = vector.multi_reduction <add>, %198, %cst_55 [1] : vector<32x8xf32> to vector<32xf32>
    %200 = vector.shape_cast %199 : vector<32xf32> to vector<32x1xf32>
    %cst_56 = arith.constant 8.000000e+00 : f32
    %201 = vector.broadcast %cst_56 : f32 to vector<32x1xf32>
    %202 = arith.divf %200, %201 : vector<32x1xf32>
    %203 = vector.broadcast %202 : vector<32x1xf32> to vector<32x8xf32>
    %204 = arith.subf %198, %203 : vector<32x8xf32>
    %205 = arith.mulf %204, %204 : vector<32x8xf32>
    %cst_57 = arith.constant dense<0.000000e+00> : vector<32xf32>
    %206 = vector.multi_reduction <add>, %205, %cst_57 [1] : vector<32x8xf32> to vector<32xf32>
    %207 = vector.shape_cast %206 : vector<32xf32> to vector<32x1xf32>
    %cst_58 = arith.constant 8.000000e+00 : f32
    %208 = vector.broadcast %cst_58 : f32 to vector<32x1xf32>
    %209 = arith.divf %207, %208 : vector<32x1xf32>
    %210 = vector.broadcast %202 : vector<32x1xf32> to vector<32x8xf32>
    %211 = arith.subf %198, %210 : vector<32x8xf32>
    %cst_59 = arith.constant 9.99999974E-6 : f32
    %212 = vector.broadcast %cst_59 : f32 to vector<32x1xf32>
    %213 = arith.addf %209, %212 : vector<32x1xf32>
    %214 = math.rsqrt %213 : vector<32x1xf32>
    %215 = vector.broadcast %214 : vector<32x1xf32> to vector<32x8xf32>
    %216 = arith.mulf %211, %215 : vector<32x8xf32>
    %217 = vector.broadcast %145 : vector<1x8xf32> to vector<32x8xf32>
    %218 = arith.mulf %216, %217 : vector<32x8xf32>
    %219 = vector.broadcast %146 : vector<1x8xf32> to vector<32x8xf32>
    %220 = arith.addf %218, %219 : vector<32x8xf32>
    %cst_60 = arith.constant dense<0.000000e+00> : vector<32x32xf32>
    %221 = tpu.matmul %220, %140, %cst_60 {dimension_numbers = #tpu.dot_dimension_numbers<[1], [0], [0], [1], [0, 0, 1, 1], [], []>} : vector<32x8xf32>, vector<8x32xf32>, vector<32x32xf32> -> vector<32x32xf32>
    %222 = vector.broadcast %141 : vector<1x32xf32> to vector<32x32xf32>
    %223 = arith.addf %221, %222 : vector<32x32xf32>
    %cst_61 = arith.constant 5.000000e-01 : f32
    %224 = vector.broadcast %cst_61 : f32 to vector<32x32xf32>
    %225 = arith.mulf %224, %223 : vector<32x32xf32>
    %cst_62 = arith.constant 0.707106769 : f32
    %226 = vector.broadcast %cst_62 : f32 to vector<32x32xf32>
    %227 = arith.mulf %223, %226 : vector<32x32xf32>
    %cst_63 = arith.constant 0.000000e+00 : f32
    %228 = vector.broadcast %cst_63 : f32 to vector<32x32xf32>
    %229 = arith.cmpf oge, %227, %228 : vector<32x32xf32>
    %cst_64 = arith.constant 1.000000e+00 : f32
    %cst_65 = arith.constant -1.000000e+00 : f32
    %230 = vector.broadcast %cst_64 : f32 to vector<32x32xf32>
    %231 = vector.broadcast %cst_65 : f32 to vector<32x32xf32>
    %232 = arith.select %229, %230, %231 : vector<32x32xi1>, vector<32x32xf32>
    %233 = math.absf %227 : vector<32x32xf32>
    %cst_66 = arith.constant 0.327591091 : f32
    %234 = vector.broadcast %cst_66 : f32 to vector<32x32xf32>
    %235 = arith.mulf %234, %233 : vector<32x32xf32>
    %cst_67 = arith.constant 1.000000e+00 : f32
    %236 = vector.broadcast %cst_67 : f32 to vector<32x32xf32>
    %237 = arith.addf %236, %235 : vector<32x32xf32>
    %cst_68 = arith.constant 1.000000e+00 : f32
    %238 = vector.broadcast %cst_68 : f32 to vector<32x32xf32>
    %239 = arith.divf %238, %237 : vector<32x32xf32>
    %cst_69 = arith.constant 1.06140542 : f32
    %240 = vector.broadcast %cst_69 : f32 to vector<32x32xf32>
    %241 = arith.mulf %239, %240 : vector<32x32xf32>
    %cst_70 = arith.constant -1.45315206 : f32
    %242 = vector.broadcast %cst_70 : f32 to vector<32x32xf32>
    %243 = arith.addf %242, %241 : vector<32x32xf32>
    %244 = arith.mulf %239, %243 : vector<32x32xf32>
    %cst_71 = arith.constant 1.42141378 : f32
    %245 = vector.broadcast %cst_71 : f32 to vector<32x32xf32>
    %246 = arith.addf %245, %244 : vector<32x32xf32>
    %247 = arith.mulf %239, %246 : vector<32x32xf32>
    %cst_72 = arith.constant -0.284496725 : f32
    %248 = vector.broadcast %cst_72 : f32 to vector<32x32xf32>
    %249 = arith.addf %248, %247 : vector<32x32xf32>
    %250 = arith.mulf %239, %249 : vector<32x32xf32>
    %cst_73 = arith.constant 0.254829586 : f32
    %251 = vector.broadcast %cst_73 : f32 to vector<32x32xf32>
    %252 = arith.addf %251, %250 : vector<32x32xf32>
    %253 = arith.mulf %239, %252 : vector<32x32xf32>
    %cst_74 = arith.constant 0.000000e+00 : f32
    %254 = vector.broadcast %cst_74 : f32 to vector<32x32xf32>
    %255 = arith.subf %254, %233 : vector<32x32xf32>
    %256 = arith.mulf %255, %233 : vector<32x32xf32>
    %257 = math.exp %256 : vector<32x32xf32>
    %258 = arith.mulf %253, %257 : vector<32x32xf32>
    %cst_75 = arith.constant 1.000000e+00 : f32
    %259 = vector.broadcast %cst_75 : f32 to vector<32x32xf32>
    %260 = arith.subf %259, %258 : vector<32x32xf32>
    %261 = arith.mulf %232, %260 : vector<32x32xf32>
    %cst_76 = arith.constant 1.000000e+00 : f32
    %262 = vector.broadcast %cst_76 : f32 to vector<32x32xf32>
    %263 = arith.addf %262, %261 : vector<32x32xf32>
    %264 = arith.mulf %225, %263 : vector<32x32xf32>
    %cst_77 = arith.constant dense<0.000000e+00> : vector<32x8xf32>
    %265 = tpu.matmul %264, %148, %cst_77 {dimension_numbers = #tpu.dot_dimension_numbers<[1], [0], [0], [1], [0, 0, 1, 1], [], []>} : vector<32x32xf32>, vector<32x8xf32>, vector<32x8xf32> -> vector<32x8xf32>
    %266 = vector.broadcast %147 : vector<1x8xf32> to vector<32x8xf32>
    %267 = arith.addf %265, %266 : vector<32x8xf32>
    %268 = arith.addf %267, %198 : vector<32x8xf32>
    %c200 = arith.constant 200 : index
    %c0_78 = arith.constant 0 : index
    %269 = vector.load %arg3[%c200, %c0_78] : memref<240x64xf32, #tpu.memory_space<vmem>>, vector<32x32xf32>
    %c200_79 = arith.constant 200 : index
    %c32 = arith.constant 32 : index
    %270 = vector.load %arg3[%c200_79, %c32] : memref<240x64xf32, #tpu.memory_space<vmem>>, vector<32x8xf32>
    %c200_80 = arith.constant 200 : index
    %c40 = arith.constant 40 : index
    %271 = vector.load %arg3[%c200_80, %c40] : memref<240x64xf32, #tpu.memory_space<vmem>>, vector<32x8xf32>
    %c96 = arith.constant 96 : index
    %c0_81 = arith.constant 0 : index
    %272 = vector.load %arg3[%c96, %c0_81] : memref<240x64xf32, #tpu.memory_space<vmem>>, vector<32x64xf32>
    %c128 = arith.constant 128 : index
    %c0_82 = arith.constant 0 : index
    %273 = vector.load %arg3[%c128, %c0_82] : memref<240x64xf32, #tpu.memory_space<vmem>>, vector<8x64xf32>
    %c136_83 = arith.constant 136 : index
    %c16 = arith.constant 16 : index
    %274 = vector.load %arg3[%c136_83, %c16] : memref<240x64xf32, #tpu.memory_space<vmem>>, vector<64x4xf32>
    %c232 = arith.constant 232 : index
    %c0_84 = arith.constant 0 : index
    %275 = vector.load %arg3[%c232, %c0_84] : memref<240x64xf32, #tpu.memory_space<vmem>>, vector<2x32xf32>
    %c232_85 = arith.constant 232 : index
    %c32_86 = arith.constant 32 : index
    %276 = vector.load %arg3[%c232_85, %c32_86] : memref<240x64xf32, #tpu.memory_space<vmem>>, vector<2x4xf32>
    %277 = arith.mulf %268, %268 : vector<32x8xf32>
    %278 = tpu.concatenate %268, %277 in 1 : vector<32x8xf32>, vector<32x8xf32> -> vector<32x16xf32>
    %cst_87 = arith.constant dense<0.000000e+00> : vector<32x16xf32>
    %279 = tpu.matmul %269, %278, %cst_87 {dimension_numbers = #tpu.dot_dimension_numbers<[1], [0], [0], [1], [0, 0, 1, 1], [], []>} : vector<32x32xf32>, vector<32x16xf32>, vector<32x16xf32> -> vector<32x16xf32>
    %280 = vector.extract_strided_slice %279 {offsets = [0, 0], sizes = [32, 8], strides = [1, 1]} : vector<32x16xf32> to vector<32x8xf32>
    %cst_88 = arith.constant dense<0.000000e+00> : vector<32xf32>
    %281 = vector.multi_reduction <add>, %280, %cst_88 [1] : vector<32x8xf32> to vector<32xf32>
    %282 = vector.shape_cast %281 : vector<32xf32> to vector<32x1xf32>
    %283 = vector.extract_strided_slice %279 {offsets = [0, 8], sizes = [32, 8], strides = [1, 1]} : vector<32x16xf32> to vector<32x8xf32>
    %cst_89 = arith.constant dense<0.000000e+00> : vector<32xf32>
    %284 = vector.multi_reduction <add>, %283, %cst_89 [1] : vector<32x8xf32> to vector<32xf32>
    %285 = vector.shape_cast %284 : vector<32xf32> to vector<32x1xf32>
    %286 = arith.mulf %282, %282 : vector<32x1xf32>
    %287 = arith.subf %285, %286 : vector<32x1xf32>
    %288 = vector.broadcast %282 : vector<32x1xf32> to vector<32x8xf32>
    %289 = arith.subf %268, %288 : vector<32x8xf32>
    %cst_90 = arith.constant 9.99999974E-6 : f32
    %290 = vector.broadcast %cst_90 : f32 to vector<32x1xf32>
    %291 = arith.addf %287, %290 : vector<32x1xf32>
    %292 = math.rsqrt %291 : vector<32x1xf32>
    %293 = vector.broadcast %292 : vector<32x1xf32> to vector<32x8xf32>
    %294 = arith.mulf %289, %293 : vector<32x8xf32>
    %295 = arith.mulf %294, %270 : vector<32x8xf32>
    %296 = arith.addf %295, %271 : vector<32x8xf32>
    %cst_91 = arith.constant dense<0.000000e+00> : vector<32x64xf32>
    %297 = tpu.matmul %296, %273, %cst_91 {dimension_numbers = #tpu.dot_dimension_numbers<[1], [0], [0], [1], [0, 0, 1, 1], [], []>} : vector<32x8xf32>, vector<8x64xf32>, vector<32x64xf32> -> vector<32x64xf32>
    %298 = arith.mulf %297, %272 : vector<32x64xf32>
    %cst_92 = arith.constant dense<0.000000e+00> : vector<32x4xf32>
    %299 = tpu.matmul %298, %274, %cst_92 {dimension_numbers = #tpu.dot_dimension_numbers<[1], [0], [0], [1], [0, 0, 1, 1], [], []>} : vector<32x64xf32>, vector<64x4xf32>, vector<32x4xf32> -> vector<32x4xf32>
    %cst_93 = arith.constant dense<0.000000e+00> : vector<2x4xf32>
    %300 = tpu.matmul %275, %299, %cst_93 {dimension_numbers = #tpu.dot_dimension_numbers<[1], [0], [0], [1], [0, 0, 1, 1], [], []>} : vector<2x32xf32>, vector<32x4xf32>, vector<2x4xf32> -> vector<2x4xf32>
    %301 = arith.addf %300, %276 : vector<2x4xf32>
    %c0_94 = arith.constant 0 : index
    %c0_95 = arith.constant 0 : index
    %302 = vector.load %arg4[%c0_94, %c0_95] : memref<2x4xf32, #tpu.memory_space<vmem>>, vector<2x4xf32>
    tpu.vector_store %arg4[%c0_94, %c0_95], %301 {strides = array<i32>} : memref<2x4xf32, #tpu.memory_space<vmem>>, vector<2x4xf32>,
    return
  }
  func.func @transform_0(%arg0: i32) -> (i32, i32) {
    %c0_i32 = arith.constant 0 : i32
    %c0_i32_0 = arith.constant 0 : i32
    %c0_i32_1 = arith.constant 0 : i32
    return %c0_i32, %c0_i32_0 : i32, i32
  }
  func.func @transform_1(%arg0: i32) -> (i32, i32, i32) {
    %c0_i32 = arith.constant 0 : i32
    %c0_i32_0 = arith.constant 0 : i32
    %c0_i32_1 = arith.constant 0 : i32
    %c0_i32_2 = arith.constant 0 : i32
    return %c0_i32, %c0_i32_0, %c0_i32_1 : i32, i32, i32
  }
  func.func @transform_2(%arg0: i32) -> (i32, i32) {
    %c0_i32 = arith.constant 0 : i32
    %c0_i32_0 = arith.constant 0 : i32
    %c0_i32_1 = arith.constant 0 : i32
    return %c0_i32, %c0_i32_0 : i32, i32
  }
  func.func @transform_3(%arg0: i32) -> (i32, i32) {
    %c0_i32 = arith.constant 0 : i32
    %c0_i32_0 = arith.constant 0 : i32
    %c0_i32_1 = arith.constant 0 : i32
    return %c0_i32, %c0_i32_0 : i32, i32
  }
}

</mosaic_0001>

<llo_original>
// kernel: vit_forward.1
$region0: #{vit_forward.1}
  #allocation0 [shape = 'u32[]', space=smem, size = 0x4, offset = 0x4, fixed_abs, tag = 'smem constant byte address 0x4 - core index']
  #allocation1 [shape = 'u32[144,128]{1,0:T(1,128)}', space=vmem, size = 0x12000, scoped, tag = 'internal scratch']
  %s0 = inlined_call_operand.vmem [shape: f32[32,8], index: 0, kind: input, shape index: {}]
  %s1 = inlined_call_operand.vmem [shape: f32[2,56,64], index: 1, kind: input, shape index: {}]
  %s2 = inlined_call_operand.vmem [shape: f32[240,64], index: 2, kind: input, shape index: {}]
  %s3 = inlined_call_operand.hbm [shape: f32[2,4], index: 3, kind: output, shape index: {}]
  %s4 = sld [smem:[#allocation0]]
  $region22: #{vit_forward.1} parent=0
    _
  %s6 = ssub.s32 1, %s4
  %s7 = scalar_select 0, %s6, %s4
  $region1: #{vit_forward.1} parent=0
    #allocation2 [shape = 'u8[1024]{0}', space=vmem, size = 0x400, scoped, tag = 'output window, operand 0, single buffered']
    #allocation3 [shape = 's32[1]{0}', space=sflag, size = 0x4, scoped, tag = 'scoped memory for vit_forward.1']
    %8 = vsyncpa [#allocation3], 0
    // Predicated region
    $region2: #{vit_forward.1} parent=1 // pred_check
      _
    $region3: #{vit_forward.1} parent=1 // pred_check_branch
      %10 = sbr.rel (0) target = $region5
    $region4: #{vit_forward.1} parent=1 // pred_region
      _
    $region5: #{vit_forward.1} parent=1 // pred_fallthru
      _
    // Predicated region
    $region6: #{vit_forward.1} parent=1 // pred_check
      _
    $region7: #{vit_forward.1} parent=1 // pred_check_branch
      %12 = sbr.rel (0) target = $region9
    $region8: #{vit_forward.1} parent=1 // pred_region
      _
    $region9: #{vit_forward.1} parent=1 // pred_fallthru
      _
    // Predicated region
    $region10: #{vit_forward.1} parent=1 // pred_check
      _
    $region11: #{vit_forward.1} parent=1 // pred_check_branch
      %14 = sbr.rel (0) target = $region13
    $region12: #{vit_forward.1} parent=1 // pred_region
      _
    $region13: #{vit_forward.1} parent=1 // pred_fallthru
      _
    %v15 = vld [vmem:[%s2] sm:$0xff]
    %v16 = vld [vmem:[%s2 + $0x8] sm:$0xff]
    %v17 = vld [vmem:[%s2 + $0x10] sm:$0xff]
    %v18 = vld [vmem:[%s2 + $0x18] sm:$0xff]
    %v19 = vld [vmem:[%s2 + $0x20] sm:$0xff]
    %v20 = vld [vmem:[%s2 + $0x28] sm:$0xff]
    %v21 = vld [vmem:[%s2 + $0x30] sm:$0xff]
    %v22 = vld [vmem:[%s2 + $0x38] sm:$0xff]
    %v23 = vld [vmem:[%s2 + $0x40] sm:$0xff]
    %v24 = vld [vmem:[%s2 + $0x48] sm:$0xff]
    %v25 = vld [vmem:[%s2 + $0x50] sm:$0xff]
    %v26 = vld [vmem:[%s2 + $0x58] sm:$0xff]
    %v27 = vld [vmem:[%s2 + $0x88] sm:$0xff]
    %v28 = vld [vmem:[%s2 + $0x90] sm:$0xff]
    %v29 = vld [vmem:[%s2 + $0x98] sm:$0xff]
    %v30 = vld [vmem:[%s2 + $0xa0] sm:$0xff]
    %v31 = vld [vmem:[%s2 + $0xa8] sm:$0xff]
    %v32 = vld [vmem:[%s2 + $0xb0] sm:$0xff]
    %v33 = vld [vmem:[%s2 + $0xb8] sm:$0xff]
    %v34 = vld [vmem:[%s2 + $0xc0] sm:$0xff]
    %v35 = vld [vmem:[%s0] sm:$0xff]
    %v36 = vld [vmem:[%s0 + $0x8] sm:$0xff]
    %v37 = vld [vmem:[%s0 + $0x10] sm:$0xff]
    %v38 = vld [vmem:[%s0 + $0x18] sm:$0xff]
    %v39 = vld [vmem:[%s1] sm:$0xff]
    %v40 = vld [vmem:[%s1 + $0x8] sm:$0xff]
    %v41 = vld [vmem:[%s1 + $0x10] sm:$0xff]
    %v42 = vld [vmem:[%s1 + $0x18] sm:$0xff]
    %v43 = vld [vmem:[%s1 + $0x20] sm:$0xff]
    %v44 = vld [vmem:[%s1 + $0x28] sm:$0xff]
    %v45 = vld [vmem:[%s1 + $0x30] sm:$0xff]
    %vm46 = vcmask 64512
    %v47 = vsel %vm46, %v35, 0.0
    %48 = vadd.xlane.f32.xlu0 %v47
    %v49 = vpop.xlane.xlu0 %48
    %v50 = vsel %vm46, %v36, 0.0
    %51 = vadd.xlane.f32.xlu0 %v50
    %v52 = vpop.xlane.xlu0 %51
    %v53 = vsel %vm46, %v37, 0.0
    %54 = vadd.xlane.f32.xlu0 %v53
    %v55 = vpop.xlane.xlu0 %54
    %v56 = vsel %vm46, %v38, 0.0
    %57 = vadd.xlane.f32.xlu0 %v56
    %v58 = vpop.xlane.xlu0 %57
    %v59 = vrcp.pop 8.0
    %v60 = vmul.f32 %v49, %v59
    %v61 = vmul.f32 %v52, %v59
    %v62 = vmul.f32 %v55, %v59
    %v63 = vmul.f32 %v58, %v59
    %v64 = vsub.f32 %v35, %v60
    %v65 = vsub.f32 %v36, %v61
    %v66 = vsub.f32 %v37, %v62
    %v67 = vsub.f32 %v38, %v63
    %v68 = vmul.f32 %v64, %v64
    %v69 = vmul.f32 %v65, %v65
    %v70 = vmul.f32 %v66, %v66
    %v71 = vmul.f32 %v67, %v67
    %v72 = vsel %vm46, %v68, 0.0
    %73 = vadd.xlane.f32.xlu0 %v72
    %v74 = vpop.xlane.xlu0 %73
    %v75 = vsel %vm46, %v69, 0.0
    %76 = vadd.xlane.f32.xlu0 %v75
    %v77 = vpop.xlane.xlu0 %76
    %v78 = vsel %vm46, %v70, 0.0
    %79 = vadd.xlane.f32.xlu0 %v78
    %v80 = vpop.xlane.xlu0 %79
    %v81 = vsel %vm46, %v71, 0.0
    %82 = vadd.xlane.f32.xlu0 %v81
    %v83 = vpop.xlane.xlu0 %82
    %v84 = vmul.f32 %v74, %v59
    %v85 = vmul.f32 %v77, %v59
    %v86 = vmul.f32 %v80, %v59
    %v87 = vmul.f32 %v83, %v59
    %v88 = vadd.f32 %v84, 1e-05
    %v89 = vadd.f32 %v85, 1e-05
    %v90 = vadd.f32 %v86, 1e-05
    %v91 = vadd.f32 %v87, 1e-05
    %v92 = vrsqrt.pop %v88
    %v93 = vrsqrt.pop %v89
    %v94 = vrsqrt.pop %v90
    %v95 = vrsqrt.pop %v91
    %v96 = vmul.f32 %v64, %v92
    %v97 = vmul.f32 %v65, %v93
    %v98 = vmul.f32 %v66, %v94
    %v99 = vmul.f32 %v67, %v95
    %v100 = vlaneseq
    %v101 = vshrl.u32 %v100, 7
    %v102 = vsub.s32 1, %v101
    %v103 = vrot.slane %v41, %v102
    %v104 = vmul.f32 %v96, %v103
    %v105 = vmul.f32 %v97, %v103
    %v106 = vmul.f32 %v98, %v103
    %v107 = vmul.f32 %v99, %v103
    %v108 = vlaneseq
    %v109 = vshrl.u32 %v108, 7
    %v110 = vsub.s32 2, %v109
    %v111 = vrot.slane %v41, %v110
    %v112 = vadd.f32 %v104, %v111
    %v113 = vadd.f32 %v105, %v111
    %v114 = vadd.f32 %v106, %v111
    %v115 = vadd.f32 %v107, %v111
    %v117 = vsel %vm46, %v112, 0
    %v120 = vsel %vm46, %v113, 0
    %v123 = vsel %vm46, %v114, 0
    %v126 = vsel %vm46, %v115, 0
    %128 = vmatprep.subr.mxu0 0.0
    %129 = vmatpush1.msra.mxu0 %v39
    %130 = vmatprep.subr.mxu0 0.0
    %131 = vmatpush1.msra.mxu0 0.0
    %132 = vmatprep.subr.mxu0 0.0
    %133 = vmatpush1.msra.mxu0 0.0
    %134 = vmatprep.subr.mxu0 0.0
    %135 = vmatpush1.msra.mxu0 0.0
    %136 = vmatprep.subr.mxu0 0.0
    %137 = vmatpush1.msra.mxu0 0.0
    %138 = vmatprep.subr.mxu0 0.0
    %139 = vmatpush1.msra.mxu0 0.0
    %140 = vmatprep.subr.mxu0 0.0
    %141 = vmatpush1.msra.mxu0 0.0
    %142 = vmatprep.subr.mxu0 0.0
    %143 = vmatpush1.msra.mxu0 0.0
    %144 = vmatprep.subr.mxu0 0.0
    %145 = vmatpush1.msra.mxu0 0.0
    %146 = vmatprep.subr.mxu0 0.0
    %147 = vmatpush1.msra.mxu0 0.0
    %148 = vmatprep.subr.mxu0 0.0
    %149 = vmatpush1.msra.mxu0 0.0
    %150 = vmatprep.subr.mxu0 0.0
    %151 = vmatpush1.msra.mxu0 0.0
    %152 = vmatprep.subr.mxu0 0.0
    %153 = vmatpush1.msra.mxu0 0.0
    %154 = vmatprep.subr.mxu0 0.0
    %155 = vmatpush1.msra.mxu0 0.0
    %156 = vmatprep.subr.mxu0 0.0
    %157 = vmatpush1.msra.mxu0 0.0
    %158 = vmatprep.subr.mxu0 0.0
    %159 = vmatpush1.msra.mxu0 0.0
    %160 = vmatprep.subr.mxu0 0.0
    %161 = vmatpush1.msra.mxu0 0.0
    %162 = vmatprep.subr.mxu0 0.0
    %163 = vmatpush1.msra.mxu0 0.0
    %164 = vmatprep.subr.mxu0 0.0
    %165 = vmatpush1.msra.mxu0 0.0
    %166 = vmatprep.subr.mxu0 0.0
    %167 = vmatpush1.msra.mxu0 0.0
    %168 = vmatprep.subr.mxu0 0.0
    %169 = vmatpush1.msra.mxu0 0.0
    %170 = vmatprep.subr.mxu0 0.0
    %171 = vmatpush1.msra.mxu0 0.0
    %172 = vmatprep.subr.mxu0 0.0
    %173 = vmatpush1.msra.mxu0 0.0
    %174 = vmatprep.subr.mxu0 0.0
    %175 = vmatpush1.msra.mxu0 0.0
    %176 = vmatprep.subr.mxu0 0.0
    %177 = vmatpush1.msra.mxu0 0.0
    %178 = vmatprep.subr.mxu0 0.0
    %179 = vmatpush1.msra.mxu0 0.0
    %180 = vmatprep.subr.mxu0 0.0
    %181 = vmatpush1.msra.mxu0 0.0
    %182 = vmatprep.subr.mxu0 0.0
    %183 = vmatpush1.msra.mxu0 0.0
    %184 = vmatprep.subr.mxu0 0.0
    %185 = vmatpush1.msra.mxu0 0.0
    %186 = vmatprep.subr.mxu0 0.0
    %187 = vmatpush1.msra.mxu0 0.0
    %188 = vmatprep.subr.mxu0 0.0
    %189 = vmatpush1.msra.mxu0 0.0
    %190 = vmatprep.subr.mxu0 0.0
    %191 = vmatpush1.msra.mxu0 0.0
    %192 = vmatprep.mubr.f32.mxu0 0.0
    %193 = vmatmul.mubr.f32.gmra.mrb[0].mxu0 %v117
    %v194 = vpop.f32.mrb[0].mxu0
    %v195 = vadd.f32 0.0, %v194
    %v196 = vpop.f32.mrb[0].mxu0
    %197 = vmatprep.mubr.f32.mxu0 0.0
    %198 = vmatmul.mubr.f32.gmra.mrb[0].mxu0 %v120
    %v199 = vpop.f32.mrb[0].mxu0
    %v200 = vadd.f32 0.0, %v199
    %v201 = vpop.f32.mrb[0].mxu0
    %202 = vmatprep.mubr.f32.mxu0 0.0
    %203 = vmatmul.mubr.f32.gmra.mrb[0].mxu0 %v123
    %v204 = vpop.f32.mrb[0].mxu0
    %v205 = vadd.f32 0.0, %v204
    %v206 = vpop.f32.mrb[0].mxu0
    %207 = vmatprep.mubr.f32.mxu0 0.0
    %208 = vmatmul.mubr.f32.gmra.mrb[0].mxu0 %v126
    %v209 = vpop.f32.mrb[0].mxu0
    %v210 = vadd.f32 0.0, %v209
    %v211 = vpop.f32.mrb[0].mxu0
    %212 = vdwg.mxu0
    %217 = vrot.lane.b32.xlu0 %v195, 96
    %v218 = vpop.permute.xlu0 %217
    %219 = vrot.lane.b32.xlu0 %v200, 96
    %v220 = vpop.permute.xlu0 %219
    %221 = vrot.lane.b32.xlu0 %v205, 96
    %v222 = vpop.permute.xlu0 %221
    %223 = vrot.lane.b32.xlu0 %v210, 96
    %v224 = vpop.permute.xlu0 %223
    %237 = vrot.lane.b32.xlu0 %v27, 16
    %v238 = vpop.permute.xlu0 %237
    %239 = vrot.lane.b32.xlu0 %v28, 16
    %v240 = vpop.permute.xlu0 %239
    %241 = vrot.lane.b32.xlu0 %v29, 16
    %v242 = vpop.permute.xlu0 %241
    %243 = vrot.lane.b32.xlu0 %v30, 16
    %v244 = vpop.permute.xlu0 %243
    %245 = vrot.lane.b32.xlu0 %v31, 16
    %v246 = vpop.permute.xlu0 %245
    %247 = vrot.lane.b32.xlu0 %v32, 16
    %v248 = vpop.permute.xlu0 %247
    %249 = vrot.lane.b32.xlu0 %v33, 16
    %v250 = vpop.permute.xlu0 %249
    %251 = vrot.lane.b32.xlu0 %v34, 16
    %v252 = vpop.permute.xlu0 %251
    %v261 = vmul.f32 %v195, %v238
    %v262 = vmul.f32 %v200, %v240
    %v263 = vmul.f32 %v205, %v242
    %v264 = vmul.f32 %v210, %v244
    %v265 = vmul.f32 %v218, %v246
    %v266 = vmul.f32 %v220, %v248
    %v267 = vmul.f32 %v222, %v250
    %v268 = vmul.f32 %v224, %v252
    %277 = vrot.lane.b32.xlu0 %v261, 120
    %v278 = vpop.permute.xlu0 %277
    %279 = vrot.lane.b32.xlu0 %v262, 120
    %v280 = vpop.permute.xlu0 %279
    %281 = vrot.lane.b32.xlu0 %v263, 120
    %v282 = vpop.permute.xlu0 %281
    %283 = vrot.lane.b32.xlu0 %v264, 120
    %v284 = vpop.permute.xlu0 %283
    %285 = vrot.lane.b32.xlu0 %v265, 120
    %v286 = vpop.permute.xlu0 %285
    %287 = vrot.lane.b32.xlu0 %v266, 120
    %v288 = vpop.permute.xlu0 %287
    %289 = vrot.lane.b32.xlu0 %v267, 120
    %v290 = vpop.permute.xlu0 %289
    %291 = vrot.lane.b32.xlu0 %v268, 120
    %v292 = vpop.permute.xlu0 %291
    %v301 = vadd.f32 %v261, %v278
    %v302 = vadd.f32 %v262, %v280
    %v303 = vadd.f32 %v263, %v282
    %v304 = vadd.f32 %v264, %v284
    %v305 = vadd.f32 %v265, %v286
    %v306 = vadd.f32 %v266, %v288
    %v307 = vadd.f32 %v267, %v290
    %v308 = vadd.f32 %v268, %v292
    %309 = vrot.lane.b32.xlu0 %v195, 120
    %v310 = vpop.permute.xlu0 %309
    %311 = vrot.lane.b32.xlu0 %v200, 120
    %v312 = vpop.permute.xlu0 %311
    %313 = vrot.lane.b32.xlu0 %v205, 120
    %v314 = vpop.permute.xlu0 %313
    %315 = vrot.lane.b32.xlu0 %v210, 120
    %v316 = vpop.permute.xlu0 %315
    %317 = vrot.lane.b32.xlu0 %v218, 120
    %v318 = vpop.permute.xlu0 %317
    %319 = vrot.lane.b32.xlu0 %v220, 120
    %v320 = vpop.permute.xlu0 %319
    %321 = vrot.lane.b32.xlu0 %v222, 120
    %v322 = vpop.permute.xlu0 %321
    %323 = vrot.lane.b32.xlu0 %v224, 120
    %v324 = vpop.permute.xlu0 %323
    %v325 = vsel %vm46, %v195, 0
    %v327 = vsel %vm46, %v200, 0
    %v329 = vsel %vm46, %v205, 0
    %v331 = vsel %vm46, %v210, 0
    %v333 = vsel %vm46, %v218, 0
    %v335 = vsel %vm46, %v220, 0
    %v337 = vsel %vm46, %v222, 0
    %v339 = vsel %vm46, %v224, 0
    %v341 = vsel %vm46, %v310, 0
    %v343 = vsel %vm46, %v312, 0
    %v345 = vsel %vm46, %v314, 0
    %v347 = vsel %vm46, %v316, 0
    %v349 = vsel %vm46, %v318, 0
    %v351 = vsel %vm46, %v320, 0
    %v353 = vsel %vm46, %v322, 0
    %v355 = vsel %vm46, %v324, 0
    %357 = vmatprep.subr.mxu0 0.0
    %358 = vmatpush1.xpose.msra.mxu0 %v341
    %359 = vmatprep.subr.mxu0 0.0
    %360 = vmatpush1.xpose.msra.mxu0 %v343
    %361 = vmatprep.subr.mxu0 0.0
    %362 = vmatpush1.xpose.msra.mxu0 %v345
    %363 = vmatprep.subr.mxu0 0.0
    %364 = vmatpush1.xpose.msra.mxu0 %v347
    %365 = vmatprep.subr.mxu0 0.0
    %366 = vmatpush1.xpose.msra.mxu0 %v349
    %367 = vmatprep.subr.mxu0 0.0
    %368 = vmatpush1.xpose.msra.mxu0 %v351
    %369 = vmatprep.subr.mxu0 0.0
    %370 = vmatpush1.xpose.msra.mxu0 %v353
    %371 = vmatprep.subr.mxu0 0.0
    %372 = vmatpush1.xpose.msra.mxu0 %v355
    %373 = vmatprep.subr.mxu0 0.0
    %374 = vmatpush1.xpose.msra.mxu0 0.0
    %375 = vmatprep.subr.mxu0 0.0
    %376 = vmatpush1.xpose.msra.mxu0 0.0
    %377 = vmatprep.subr.mxu0 0.0
    %378 = vmatpush1.xpose.msra.mxu0 0.0
    %379 = vmatprep.subr.mxu0 0.0
    %380 = vmatpush1.xpose.msra.mxu0 0.0
    %381 = vmatprep.subr.mxu0 0.0
    %382 = vmatpush1.xpose.msra.mxu0 0.0
    %383 = vmatprep.subr.mxu0 0.0
    %384 = vmatpush1.xpose.msra.mxu0 0.0
    %385 = vmatprep.subr.mxu0 0.0
    %386 = vmatpush1.xpose.msra.mxu0 0.0
    %387 = vmatprep.subr.mxu0 0.0
    %388 = vmatpush1.xpose.msra.mxu0 0.0
    %389 = vmatprep.subr.mxu0 0.0
    %390 = vmatpush1.xpose.msra.mxu0 0.0
    %391 = vmatprep.subr.mxu0 0.0
    %392 = vmatpush1.xpose.msra.mxu0 0.0
    %393 = vmatprep.subr.mxu0 0.0
    %394 = vmatpush1.xpose.msra.mxu0 0.0
    %395 = vmatprep.subr.mxu0 0.0
    %396 = vmatpush1.xpose.msra.mxu0 0.0
    %397 = vmatprep.subr.mxu0 0.0
    %398 = vmatpush1.xpose.msra.mxu0 0.0
    %399 = vmatprep.subr.mxu0 0.0
    %400 = vmatpush1.xpose.msra.mxu0 0.0
    %401 = vmatprep.subr.mxu0 0.0
    %402 = vmatpush1.xpose.msra.mxu0 0.0
    %403 = vmatprep.subr.mxu0 0.0
    %404 = vmatpush1.xpose.msra.mxu0 0.0
    %405 = vmatprep.subr.mxu0 0.0
    %406 = vmatpush1.xpose.msra.mxu0 0.0
    %407 = vmatprep.subr.mxu0 0.0
    %408 = vmatpush1.xpose.msra.mxu0 0.0
    %409 = vmatprep.subr.mxu0 0.0
    %410 = vmatpush1.xpose.msra.mxu0 0.0
    %411 = vmatprep.subr.mxu0 0.0
    %412 = vmatpush1.xpose.msra.mxu0 0.0
    %413 = vmatprep.subr.mxu0 0.0
    %414 = vmatpush1.xpose.msra.mxu0 0.0
    %415 = vmatprep.subr.mxu0 0.0
    %416 = vmatpush1.xpose.msra.mxu0 0.0
    %417 = vmatprep.subr.mxu0 0.0
    %418 = vmatpush1.xpose.msra.mxu0 0.0
    %419 = vmatprep.subr.mxu0 0.0
    %420 = vmatpush1.xpose.msra.mxu0 0.0
    %421 = vmatprep.mubr.f32.mxu0 0.0
    %422 = vmatmul.mubr.f32.gmra.mrb[0].mxu0 %v325
    %v423 = vpop.f32.mrb[0].mxu0
    %v424 = vadd.f32 %v15, %v423
    %v425 = vpop.f32.mrb[0].mxu0
    %426 = vmatprep.mubr.f32.mxu0 0.0
    %427 = vmatmul.mubr.f32.gmra.mrb[0].mxu0 %v327
    %v428 = vpop.f32.mrb[0].mxu0
    %v429 = vadd.f32 %v16, %v428
    %v430 = vpop.f32.mrb[0].mxu0
    %431 = vmatprep.mubr.f32.mxu0 0.0
    %432 = vmatmul.mubr.f32.gmra.mrb[0].mxu0 %v329
    %v433 = vpop.f32.mrb[0].mxu0
    %v434 = vadd.f32 %v17, %v433
    %v435 = vpop.f32.mrb[0].mxu0
    %436 = vmatprep.mubr.f32.mxu0 0.0
    %437 = vmatmul.mubr.f32.gmra.mrb[0].mxu0 %v331
    %v438 = vpop.f32.mrb[0].mxu0
    %v439 = vadd.f32 %v18, %v438
    %v440 = vpop.f32.mrb[0].mxu0
    %441 = vmatprep.mubr.f32.mxu0 0.0
    %442 = vmatmul.mubr.f32.gmra.mrb[0].mxu0 %v333
    %v443 = vpop.f32.mrb[0].mxu0
    %v444 = vadd.f32 %v19, %v443
    %v445 = vpop.f32.mrb[0].mxu0
    %446 = vmatprep.mubr.f32.mxu0 0.0
    %447 = vmatmul.mubr.f32.gmra.mrb[0].mxu0 %v335
    %v448 = vpop.f32.mrb[0].mxu0
    %v449 = vadd.f32 %v20, %v448
    %v450 = vpop.f32.mrb[0].mxu0
    %451 = vmatprep.mubr.f32.mxu0 0.0
    %452 = vmatmul.mubr.f32.gmra.mrb[0].mxu0 %v337
    %v453 = vpop.f32.mrb[0].mxu0
    %v454 = vadd.f32 %v21, %v453
    %v455 = vpop.f32.mrb[0].mxu0
    %456 = vmatprep.mubr.f32.mxu0 0.0
    %457 = vmatmul.mubr.f32.gmra.mrb[0].mxu0 %v339
    %v458 = vpop.f32.mrb[0].mxu0
    %v459 = vadd.f32 %v22, %v458
    %v460 = vpop.f32.mrb[0].mxu0
    %461 = vdwg.mxu0
    %vm462 = vcmask 523264
    %v463 = vsel %vm462, %v424, -inf
    %464 = vmax.xlane.f32.xlu0 %v463
    %v465 = vpop.xlane.xlu0 %464
    %v466 = vsel %vm462, %v429, -inf
    %467 = vmax.xlane.f32.xlu0 %v466
    %v468 = vpop.xlane.xlu0 %467
    %v469 = vsel %vm462, %v434, -inf
    %470 = vmax.xlane.f32.xlu0 %v469
    %v471 = vpop.xlane.xlu0 %470
    %v472 = vsel %vm462, %v439, -inf
    %473 = vmax.xlane.f32.xlu0 %v472
    %v474 = vpop.xlane.xlu0 %473
    %v475 = vsel %vm462, %v444, -inf
    %476 = vmax.xlane.f32.xlu0 %v475
    %v477 = vpop.xlane.xlu0 %476
    %v478 = vsel %vm462, %v449, -inf
    %479 = vmax.xlane.f32.xlu0 %v478
    %v480 = vpop.xlane.xlu0 %479
    %v481 = vsel %vm462, %v454, -inf
    %482 = vmax.xlane.f32.xlu0 %v481
    %v483 = vpop.xlane.xlu0 %482
    %v484 = vsel %vm462, %v459, -inf
    %485 = vmax.xlane.f32.xlu0 %v484
    %v486 = vpop.xlane.xlu0 %485
    %v487 = vsub.f32 %v424, %v465
    %v488 = vsub.f32 %v429, %v468
    %v489 = vsub.f32 %v434, %v471
    %v490 = vsub.f32 %v439, %v474
    %v491 = vsub.f32 %v444, %v477
    %v492 = vsub.f32 %v449, %v480
    %v493 = vsub.f32 %v454, %v483
    %v494 = vsub.f32 %v459, %v486
    %v495 = vmul.f32 %v487, 1.442695
    %v496 = vpow.pop %v495
    %v497 = vmul.f32 %v488, 1.442695
    %v498 = vpow.pop %v497
    %v499 = vmul.f32 %v489, 1.442695
    %v500 = vpow.pop %v499
    %v501 = vmul.f32 %v490, 1.442695
    %v502 = vpow.pop %v501
    %v503 = vmul.f32 %v491, 1.442695
    %v504 = vpow.pop %v503
    %v505 = vmul.f32 %v492, 1.442695
    %v506 = vpow.pop %v505
    %v507 = vmul.f32 %v493, 1.442695
    %v508 = vpow.pop %v507
    %v509 = vmul.f32 %v494, 1.442695
    %v510 = vpow.pop %v509
    %v511 = vsel %vm462, %v496, 0.0
    %512 = vadd.xlane.f32.xlu0 %v511
    %v513 = vpop.xlane.xlu0 %512
    %v514 = vsel %vm462, %v498, 0.0
    %515 = vadd.xlane.f32.xlu0 %v514
    %v516 = vpop.xlane.xlu0 %515
    %v517 = vsel %vm462, %v500, 0.0
    %518 = vadd.xlane.f32.xlu0 %v517
    %v519 = vpop.xlane.xlu0 %518
    %v520 = vsel %vm462, %v502, 0.0
    %521 = vadd.xlane.f32.xlu0 %v520
    %v522 = vpop.xlane.xlu0 %521
    %v523 = vsel %vm462, %v504, 0.0
    %524 = vadd.xlane.f32.xlu0 %v523
    %v525 = vpop.xlane.xlu0 %524
    %v526 = vsel %vm462, %v506, 0.0
    %527 = vadd.xlane.f32.xlu0 %v526
    %v528 = vpop.xlane.xlu0 %527
    %v529 = vsel %vm462, %v508, 0.0
    %530 = vadd.xlane.f32.xlu0 %v529
    %v531 = vpop.xlane.xlu0 %530
    %v532 = vsel %vm462, %v510, 0.0
    %533 = vadd.xlane.f32.xlu0 %v532
    %v534 = vpop.xlane.xlu0 %533
    %v535 = vrcp.pop %v513
    %v536 = vrcp.pop %v516
    %v537 = vrcp.pop %v519
    %v538 = vrcp.pop %v522
    %v539 = vrcp.pop %v525
    %v540 = vrcp.pop %v528
    %v541 = vrcp.pop %v531
    %v542 = vrcp.pop %v534
    %v543 = vmul.f32 %v496, %v535
    %v544 = vmul.f32 %v498, %v536
    %v545 = vmul.f32 %v500, %v537
    %v546 = vmul.f32 %v502, %v538
    %v547 = vmul.f32 %v504, %v539
    %v548 = vmul.f32 %v506, %v540
    %v549 = vmul.f32 %v508, %v541
    %v550 = vmul.f32 %v510, %v542
    %v552 = vsel %vm462, %v23, 0
    %v555 = vsel %vm462, %v24, 0
    %v558 = vsel %vm462, %v25, 0
    %v561 = vsel %vm462, %v26, 0
    %563 = vmatprep.subr.mxu0 0.0
    %564 = vmatpush1.msra.mxu0 %v543
    %565 = vmatprep.subr.mxu0 0.0
    %566 = vmatpush1.msra.mxu0 %v544
    %567 = vmatprep.subr.mxu0 0.0
    %568 = vmatpush1.msra.mxu0 %v545
    %569 = vmatprep.subr.mxu0 0.0
    %570 = vmatpush1.msra.mxu0 %v546
    %571 = vmatprep.subr.mxu0 0.0
    %572 = vmatpush1.msra.mxu0 %v547
    %573 = vmatprep.subr.mxu0 0.0
    %574 = vmatpush1.msra.mxu0 %v548
    %575 = vmatprep.subr.mxu0 0.0
    %576 = vmatpush1.msra.mxu0 %v549
    %577 = vmatprep.subr.mxu0 0.0
    %578 = vmatpush1.msra.mxu0 %v550
    %579 = vmatprep.subr.mxu0 0.0
    %580 = vmatpush1.msra.mxu0 0.0
    %581 = vmatprep.subr.mxu0 0.0
    %582 = vmatpush1.msra.mxu0 0.0
    %583 = vmatprep.subr.mxu0 0.0
    %584 = vmatpush1.msra.mxu0 0.0
    %585 = vmatprep.subr.mxu0 0.0
    %586 = vmatpush1.msra.mxu0 0.0
    %587 = vmatprep.subr.mxu0 0.0
    %588 = vmatpush1.msra.mxu0 0.0
    %589 = vmatprep.subr.mxu0 0.0
    %590 = vmatpush1.msra.mxu0 0.0
    %591 = vmatprep.subr.mxu0 0.0
    %592 = vmatpush1.msra.mxu0 0.0
    %593 = vmatprep.subr.mxu0 0.0
    %594 = vmatpush1.msra.mxu0 0.0
    %595 = vmatprep.subr.mxu0 0.0
    %596 = vmatpush1.msra.mxu0 0.0
    %597 = vmatprep.subr.mxu0 0.0
    %598 = vmatpush1.msra.mxu0 0.0
    %599 = vmatprep.subr.mxu0 0.0
    %600 = vmatpush1.msra.mxu0 0.0
    %601 = vmatprep.subr.mxu0 0.0
    %602 = vmatpush1.msra.mxu0 0.0
    %603 = vmatprep.subr.mxu0 0.0
    %604 = vmatpush1.msra.mxu0 0.0
    %605 = vmatprep.subr.mxu0 0.0
    %606 = vmatpush1.msra.mxu0 0.0
    %607 = vmatprep.subr.mxu0 0.0
    %608 = vmatpush1.msra.mxu0 0.0
    %609 = vmatprep.subr.mxu0 0.0
    %610 = vmatpush1.msra.mxu0 0.0
    %611 = vmatprep.subr.mxu0 0.0
    %612 = vmatpush1.msra.mxu0 0.0
    %613 = vmatprep.subr.mxu0 0.0
    %614 = vmatpush1.msra.mxu0 0.0
    %615 = vmatprep.subr.mxu0 0.0
    %616 = vmatpush1.msra.mxu0 0.0
    %617 = vmatprep.subr.mxu0 0.0
    %618 = vmatpush1.msra.mxu0 0.0
    %619 = vmatprep.subr.mxu0 0.0
    %620 = vmatpush1.msra.mxu0 0.0
    %621 = vmatprep.subr.mxu0 0.0
    %622 = vmatpush1.msra.mxu0 0.0
    %623 = vmatprep.subr.mxu0 0.0
    %624 = vmatpush1.msra.mxu0 0.0
    %625 = vmatprep.subr.mxu0 0.0
    %626 = vmatpush1.msra.mxu0 0.0
    %627 = vmatprep.mubr.f32.mxu0 0.0
    %628 = vmatmul.mubr.f32.gmra.mrb[0].mxu0 %v552
    %v629 = vpop.f32.mrb[0].mxu0
    %v630 = vadd.f32 0.0, %v629
    %v631 = vpop.f32.mrb[0].mxu0
    %632 = vmatprep.mubr.f32.mxu0 0.0
    %633 = vmatmul.mubr.f32.gmra.mrb[0].mxu0 %v555
    %v634 = vpop.f32.mrb[0].mxu0
    %v635 = vadd.f32 0.0, %v634
    %v636 = vpop.f32.mrb[0].mxu0
    %637 = vmatprep.mubr.f32.mxu0 0.0
    %638 = vmatmul.mubr.f32.gmra.mrb[0].mxu0 %v558
    %v639 = vpop.f32.mrb[0].mxu0
    %v640 = vadd.f32 0.0, %v639
    %v641 = vpop.f32.mrb[0].mxu0
    %642 = vmatprep.mubr.f32.mxu0 0.0
    %643 = vmatmul.mubr.f32.gmra.mrb[0].mxu0 %v561
    %v644 = vpop.f32.mrb[0].mxu0
    %v645 = vadd.f32 0.0, %v644
    %v646 = vpop.f32.mrb[0].mxu0
    %647 = vdwg.mxu0
    %v648 = vlaneseq
    %v649 = vshrl.u32 %v648, 7
    %v650 = vsub.s32 3, %v649
    %v651 = vrot.slane %v41, %v650
    %660 = vrot.lane.b32.xlu0 %v301, 112
    %v661 = vpop.permute.xlu0 %660
    %662 = vrot.lane.b32.xlu0 %v302, 112
    %v663 = vpop.permute.xlu0 %662
    %664 = vrot.lane.b32.xlu0 %v303, 112
    %v665 = vpop.permute.xlu0 %664
    %666 = vrot.lane.b32.xlu0 %v304, 112
    %v667 = vpop.permute.xlu0 %666
    %668 = vrot.lane.b32.xlu0 %v305, 112
    %v669 = vpop.permute.xlu0 %668
    %670 = vrot.lane.b32.xlu0 %v306, 112
    %v671 = vpop.permute.xlu0 %670
    %672 = vrot.lane.b32.xlu0 %v307, 112
    %v673 = vpop.permute.xlu0 %672
    %674 = vrot.lane.b32.xlu0 %v308, 112
    %v675 = vpop.permute.xlu0 %674
    %v685 = vsel %vm462, %v630, 0
    %v688 = vsel %vm462, %v635, 0
    %v691 = vsel %vm462, %v640, 0
    %v694 = vsel %vm462, %v645, 0
    %696 = vmatprep.subr.mxu0 0.0
    %697 = vmatpush1.msra.mxu0 %v661
    %698 = vmatprep.subr.mxu0 0.0
    %699 = vmatpush1.msra.mxu0 %v663
    %700 = vmatprep.subr.mxu0 0.0
    %701 = vmatpush1.msra.mxu0 %v665
    %702 = vmatprep.subr.mxu0 0.0
    %703 = vmatpush1.msra.mxu0 %v667
    %704 = vmatprep.subr.mxu0 0.0
    %705 = vmatpush1.msra.mxu0 %v669
    %706 = vmatprep.subr.mxu0 0.0
    %707 = vmatpush1.msra.mxu0 %v671
    %708 = vmatprep.subr.mxu0 0.0
    %709 = vmatpush1.msra.mxu0 %v673
    %710 = vmatprep.subr.mxu0 0.0
    %711 = vmatpush1.msra.mxu0 %v675
    %712 = vmatprep.subr.mxu0 0.0
    %713 = vmatpush1.msra.mxu0 0.0
    %714 = vmatprep.subr.mxu0 0.0
    %715 = vmatpush1.msra.mxu0 0.0
    %716 = vmatprep.subr.mxu0 0.0
    %717 = vmatpush1.msra.mxu0 0.0
    %718 = vmatprep.subr.mxu0 0.0
    %719 = vmatpush1.msra.mxu0 0.0
    %720 = vmatprep.subr.mxu0 0.0
    %721 = vmatpush1.msra.mxu0 0.0
    %722 = vmatprep.subr.mxu0 0.0
    %723 = vmatpush1.msra.mxu0 0.0
    %724 = vmatprep.subr.mxu0 0.0
    %725 = vmatpush1.msra.mxu0 0.0
    %726 = vmatprep.subr.mxu0 0.0
    %727 = vmatpush1.msra.mxu0 0.0
    %728 = vmatprep.subr.mxu0 0.0
    %729 = vmatpush1.msra.mxu0 0.0
    %730 = vmatprep.subr.mxu0 0.0
    %731 = vmatpush1.msra.mxu0 0.0
    %732 = vmatprep.subr.mxu0 0.0
    %733 = vmatpush1.msra.mxu0 0.0
    %734 = vmatprep.subr.mxu0 0.0
    %735 = vmatpush1.msra.mxu0 0.0
    %736 = vmatprep.subr.mxu0 0.0
    %737 = vmatpush1.msra.mxu0 0.0
    %738 = vmatprep.subr.mxu0 0.0
    %739 = vmatpush1.msra.mxu0 0.0
    %740 = vmatprep.subr.mxu0 0.0
    %741 = vmatpush1.msra.mxu0 0.0
    %742 = vmatprep.subr.mxu0 0.0
    %743 = vmatpush1.msra.mxu0 0.0
    %744 = vmatprep.subr.mxu0 0.0
    %745 = vmatpush1.msra.mxu0 0.0
    %746 = vmatprep.subr.mxu0 0.0
    %747 = vmatpush1.msra.mxu0 0.0
    %748 = vmatprep.subr.mxu0 0.0
    %749 = vmatpush1.msra.mxu0 0.0
    %750 = vmatprep.subr.mxu0 0.0
    %751 = vmatpush1.msra.mxu0 0.0
    %752 = vmatprep.subr.mxu0 0.0
    %753 = vmatpush1.msra.mxu0 0.0
    %754 = vmatprep.subr.mxu0 0.0
    %755 = vmatpush1.msra.mxu0 0.0
    %756 = vmatprep.subr.mxu0 0.0
    %757 = vmatpush1.msra.mxu0 0.0
    %758 = vmatprep.subr.mxu0 0.0
    %759 = vmatpush1.msra.mxu0 0.0
    %760 = vmatprep.mubr.f32.mxu0 0.0
    %761 = vmatmul.mubr.f32.gmra.mrb[0].mxu0 %v685
    %v762 = vpop.f32.mrb[0].mxu0
    %v763 = vadd.f32 %v651, %v762
    %v764 = vpop.f32.mrb[0].mxu0
    %765 = vmatprep.mubr.f32.mxu0 0.0
    %766 = vmatmul.mubr.f32.gmra.mrb[0].mxu0 %v688
    %v767 = vpop.f32.mrb[0].mxu0
    %v768 = vadd.f32 %v651, %v767
    %v769 = vpop.f32.mrb[0].mxu0
    %770 = vmatprep.mubr.f32.mxu0 0.0
    %771 = vmatmul.mubr.f32.gmra.mrb[0].mxu0 %v691
    %v772 = vpop.f32.mrb[0].mxu0
    %v773 = vadd.f32 %v651, %v772
    %v774 = vpop.f32.mrb[0].mxu0
    %775 = vmatprep.mubr.f32.mxu0 0.0
    %776 = vmatmul.mubr.f32.gmra.mrb[0].mxu0 %v694
    %v777 = vpop.f32.mrb[0].mxu0
    %v778 = vadd.f32 %v651, %v777
    %v779 = vpop.f32.mrb[0].mxu0
    %780 = vdwg.mxu0
    %v781 = vadd.f32 %v763, %v35
    %v782 = vadd.f32 %v768, %v36
    %v783 = vadd.f32 %v773, %v37
    %v784 = vadd.f32 %v778, %v38
    %v785 = vsel %vm46, %v781, 0.0
    %786 = vadd.xlane.f32.xlu0 %v785
    %v787 = vpop.xlane.xlu0 %786
    %v788 = vsel %vm46, %v782, 0.0
    %789 = vadd.xlane.f32.xlu0 %v788
    %v790 = vpop.xlane.xlu0 %789
    %v791 = vsel %vm46, %v783, 0.0
    %792 = vadd.xlane.f32.xlu0 %v791
    %v793 = vpop.xlane.xlu0 %792
    %v794 = vsel %vm46, %v784, 0.0
    %795 = vadd.xlane.f32.xlu0 %v794
    %v796 = vpop.xlane.xlu0 %795
    %v797 = vmul.f32 %v787, %v59
    %v798 = vmul.f32 %v790, %v59
    %v799 = vmul.f32 %v793, %v59
    %v800 = vmul.f32 %v796, %v59
    %v801 = vsub.f32 %v781, %v797
    %v802 = vsub.f32 %v782, %v798
    %v803 = vsub.f32 %v783, %v799
    %v804 = vsub.f32 %v784, %v800
    %v805 = vmul.f32 %v801, %v801
    %v806 = vmul.f32 %v802, %v802
    %v807 = vmul.f32 %v803, %v803
    %v808 = vmul.f32 %v804, %v804
    %v809 = vsel %vm46, %v805, 0.0
    %810 = vadd.xlane.f32.xlu0 %v809
    %v811 = vpop.xlane.xlu0 %810
    %v812 = vsel %vm46, %v806, 0.0
    %813 = vadd.xlane.f32.xlu0 %v812
    %v814 = vpop.xlane.xlu0 %813
    %v815 = vsel %vm46, %v807, 0.0
    %816 = vadd.xlane.f32.xlu0 %v815
    %v817 = vpop.xlane.xlu0 %816
    %v818 = vsel %vm46, %v808, 0.0
    %819 = vadd.xlane.f32.xlu0 %v818
    %v820 = vpop.xlane.xlu0 %819
    %v821 = vmul.f32 %v811, %v59
    %v822 = vmul.f32 %v814, %v59
    %v823 = vmul.f32 %v817, %v59
    %v824 = vmul.f32 %v820, %v59
    %v825 = vadd.f32 %v821, 1e-05
    %v826 = vadd.f32 %v822, 1e-05
    %v827 = vadd.f32 %v823, 1e-05
    %v828 = vadd.f32 %v824, 1e-05
    %v829 = vrsqrt.pop %v825
    %v830 = vrsqrt.pop %v826
    %v831 = vrsqrt.pop %v827
    %v832 = vrsqrt.pop %v828
    %v833 = vmul.f32 %v801, %v829
    %v834 = vmul.f32 %v802, %v830
    %v835 = vmul.f32 %v803, %v831
    %v836 = vmul.f32 %v804, %v832
    %v837 = vlaneseq
    %v838 = vshrl.u32 %v837, 7
    %v839 = vsub.s32 4, %v838
    %v840 = vrot.slane %v41, %v839
    %v841 = vmul.f32 %v833, %v840
    %v842 = vmul.f32 %v834, %v840
    %v843 = vmul.f32 %v835, %v840
    %v844 = vmul.f32 %v836, %v840
    %v845 = vlaneseq
    %v846 = vshrl.u32 %v845, 7
    %v847 = vsub.s32 5, %v846
    %v848 = vrot.slane %v41, %v847
    %v849 = vadd.f32 %v841, %v848
    %v850 = vadd.f32 %v842, %v848
    %v851 = vadd.f32 %v843, %v848
    %v852 = vadd.f32 %v844, %v848
    %v853 = vlaneseq
    %v854 = vshrl.u32 %v853, 7
    %v855 = vsub.s32 0, %v854
    %v856 = vrot.slane %v41, %v855
    %v858 = vsel %vm46, %v849, 0
    %v861 = vsel %vm46, %v850, 0
    %v864 = vsel %vm46, %v851, 0
    %v867 = vsel %vm46, %v852, 0
    %869 = vmatprep.subr.mxu0 0.0
    %870 = vmatpush1.msra.mxu0 %v40
    %871 = vmatprep.subr.mxu0 0.0
    %872 = vmatpush1.msra.mxu0 0.0
    %873 = vmatprep.subr.mxu0 0.0
    %874 = vmatpush1.msra.mxu0 0.0
    %875 = vmatprep.subr.mxu0 0.0
    %876 = vmatpush1.msra.mxu0 0.0
    %877 = vmatprep.subr.mxu0 0.0
    %878 = vmatpush1.msra.mxu0 0.0
    %879 = vmatprep.subr.mxu0 0.0
    %880 = vmatpush1.msra.mxu0 0.0
    %881 = vmatprep.subr.mxu0 0.0
    %882 = vmatpush1.msra.mxu0 0.0
    %883 = vmatprep.subr.mxu0 0.0
    %884 = vmatpush1.msra.mxu0 0.0
    %885 = vmatprep.subr.mxu0 0.0
    %886 = vmatpush1.msra.mxu0 0.0
    %887 = vmatprep.subr.mxu0 0.0
    %888 = vmatpush1.msra.mxu0 0.0
    %889 = vmatprep.subr.mxu0 0.0
    %890 = vmatpush1.msra.mxu0 0.0
    %891 = vmatprep.subr.mxu0 0.0
    %892 = vmatpush1.msra.mxu0 0.0
    %893 = vmatprep.subr.mxu0 0.0
    %894 = vmatpush1.msra.mxu0 0.0
    %895 = vmatprep.subr.mxu0 0.0
    %896 = vmatpush1.msra.mxu0 0.0
    %897 = vmatprep.subr.mxu0 0.0
    %898 = vmatpush1.msra.mxu0 0.0
    %899 = vmatprep.subr.mxu0 0.0
    %900 = vmatpush1.msra.mxu0 0.0
    %901 = vmatprep.subr.mxu0 0.0
    %902 = vmatpush1.msra.mxu0 0.0
    %903 = vmatprep.subr.mxu0 0.0
    %904 = vmatpush1.msra.mxu0 0.0
    %905 = vmatprep.subr.mxu0 0.0
    %906 = vmatpush1.msra.mxu0 0.0
    %907 = vmatprep.subr.mxu0 0.0
    %908 = vmatpush1.msra.mxu0 0.0
    %909 = vmatprep.subr.mxu0 0.0
    %910 = vmatpush1.msra.mxu0 0.0
    %911 = vmatprep.subr.mxu0 0.0
    %912 = vmatpush1.msra.mxu0 0.0
    %913 = vmatprep.subr.mxu0 0.0
    %914 = vmatpush1.msra.mxu0 0.0
    %915 = vmatprep.subr.mxu0 0.0
    %916 = vmatpush1.msra.mxu0 0.0
    %917 = vmatprep.subr.mxu0 0.0
    %918 = vmatpush1.msra.mxu0 0.0
    %919 = vmatprep.subr.mxu0 0.0
    %920 = vmatpush1.msra.mxu0 0.0
    %921 = vmatprep.subr.mxu0 0.0
    %922 = vmatpush1.msra.mxu0 0.0
    %923 = vmatprep.subr.mxu0 0.0
    %924 = vmatpush1.msra.mxu0 0.0
    %925 = vmatprep.subr.mxu0 0.0
    %926 = vmatpush1.msra.mxu0 0.0
    %927 = vmatprep.subr.mxu0 0.0
    %928 = vmatpush1.msra.mxu0 0.0
    %929 = vmatprep.subr.mxu0 0.0
    %930 = vmatpush1.msra.mxu0 0.0
    %931 = vmatprep.subr.mxu0 0.0
    %932 = vmatpush1.msra.mxu0 0.0
    %933 = vmatprep.mubr.f32.mxu0 0.0
    %934 = vmatmul.mubr.f32.gmra.mrb[0].mxu0 %v858
    %v935 = vpop.f32.mrb[0].mxu0
    %v936 = vadd.f32 %v856, %v935
    %v937 = vpop.f32.mrb[0].mxu0
    %938 = vmatprep.mubr.f32.mxu0 0.0
    %939 = vmatmul.mubr.f32.gmra.mrb[0].mxu0 %v861
    %v940 = vpop.f32.mrb[0].mxu0
    %v941 = vadd.f32 %v856, %v940
    %v942 = vpop.f32.mrb[0].mxu0
    %943 = vmatprep.mubr.f32.mxu0 0.0
    %944 = vmatmul.mubr.f32.gmra.mrb[0].mxu0 %v864
    %v945 = vpop.f32.mrb[0].mxu0
    %v946 = vadd.f32 %v856, %v945
    %v947 = vpop.f32.mrb[0].mxu0
    %948 = vmatprep.mubr.f32.mxu0 0.0
    %949 = vmatmul.mubr.f32.gmra.mrb[0].mxu0 %v867
    %v950 = vpop.f32.mrb[0].mxu0
    %v951 = vadd.f32 %v856, %v950
    %v952 = vpop.f32.mrb[0].mxu0
    %953 = vdwg.mxu0
    %v954 = vmul.f32 %v936, 0.5
    %v955 = vmul.f32 %v941, 0.5
    %v956 = vmul.f32 %v946, 0.5
    %v957 = vmul.f32 %v951, 0.5
    %v958 = vmul.f32 %v936, 0.70710677
    %v959 = vmul.f32 %v941, 0.70710677
    %v960 = vmul.f32 %v946, 0.70710677
    %v961 = vmul.f32 %v951, 0.70710677
    %vm962 = vcmp.ge.f32.partialorder %v958, 0.0
    %vm963 = vcmp.ge.f32.partialorder %v959, 0.0
    %vm964 = vcmp.ge.f32.partialorder %v960, 0.0
    %vm965 = vcmp.ge.f32.partialorder %v961, 0.0
    %v966 = vsel %vm962, 1.0, -1.0
    %v967 = vsel %vm963, 1.0, -1.0
    %v968 = vsel %vm964, 1.0, -1.0
    %v969 = vsel %vm965, 1.0, -1.0
    %v970 = vand.u32 2147483647, %v958
    %v971 = vand.u32 2147483647, %v959
    %v972 = vand.u32 2147483647, %v960
    %v973 = vand.u32 2147483647, %v961
    %v974 = vmul.f32 %v970, 0.3275911
    %v975 = vmul.f32 %v971, 0.3275911
    %v976 = vmul.f32 %v972, 0.3275911
    %v977 = vmul.f32 %v973, 0.3275911
    %v978 = vadd.f32 %v974, 1.0
    %v979 = vadd.f32 %v975, 1.0
    %v980 = vadd.f32 %v976, 1.0
    %v981 = vadd.f32 %v977, 1.0
    %v982 = vrcp.pop %v978
    %v983 = vmul.f32 1.0, %v982
    %v984 = vrcp.pop %v979
    %v985 = vmul.f32 1.0, %v984
    %v986 = vrcp.pop %v980
    %v987 = vmul.f32 1.0, %v986
    %v988 = vrcp.pop %v981
    %v989 = vmul.f32 1.0, %v988
    %v990 = vmul.f32 %v983, 1.0614054
    %v991 = vmul.f32 %v985, 1.0614054
    %v992 = vmul.f32 %v987, 1.0614054
    %v993 = vmul.f32 %v989, 1.0614054
    %v994 = vadd.f32 %v990, -1.4531521
    %v995 = vadd.f32 %v991, -1.4531521
    %v996 = vadd.f32 %v992, -1.4531521
    %v997 = vadd.f32 %v993, -1.4531521
    %v998 = vmul.f32 %v983, %v994
    %v999 = vmul.f32 %v985, %v995
    %v1000 = vmul.f32 %v987, %v996
    %v1001 = vmul.f32 %v989, %v997
    %v1002 = vadd.f32 %v998, 1.4214138
    %v1003 = vadd.f32 %v999, 1.4214138
    %v1004 = vadd.f32 %v1000, 1.4214138
    %v1005 = vadd.f32 %v1001, 1.4214138
    %v1006 = vmul.f32 %v983, %v1002
    %v1007 = vmul.f32 %v985, %v1003
    %v1008 = vmul.f32 %v987, %v1004
    %v1009 = vmul.f32 %v989, %v1005
    %v1010 = vadd.f32 %v1006, -0.28449672
    %v1011 = vadd.f32 %v1007, -0.28449672
    %v1012 = vadd.f32 %v1008, -0.28449672
    %v1013 = vadd.f32 %v1009, -0.28449672
    %v1014 = vmul.f32 %v983, %v1010
    %v1015 = vmul.f32 %v985, %v1011
    %v1016 = vmul.f32 %v987, %v1012
    %v1017 = vmul.f32 %v989, %v1013
    %v1018 = vadd.f32 %v1014, 0.2548296
    %v1019 = vadd.f32 %v1015, 0.2548296
    %v1020 = vadd.f32 %v1016, 0.2548296
    %v1021 = vadd.f32 %v1017, 0.2548296
    %v1022 = vmul.f32 %v983, %v1018
    %v1023 = vmul.f32 %v985, %v1019
    %v1024 = vmul.f32 %v987, %v1020
    %v1025 = vmul.f32 %v989, %v1021
    %v1026 = vsub.f32 0.0, %v970
    %v1027 = vsub.f32 0.0, %v971
    %v1028 = vsub.f32 0.0, %v972
    %v1029 = vsub.f32 0.0, %v973
    %v1030 = vmul.f32 %v1026, %v970
    %v1031 = vmul.f32 %v1027, %v971
    %v1032 = vmul.f32 %v1028, %v972
    %v1033 = vmul.f32 %v1029, %v973
    %v1034 = vmul.f32 %v1030, 1.442695
    %v1035 = vpow.pop %v1034
    %v1036 = vmul.f32 %v1031, 1.442695
    %v1037 = vpow.pop %v1036
    %v1038 = vmul.f32 %v1032, 1.442695
    %v1039 = vpow.pop %v1038
    %v1040 = vmul.f32 %v1033, 1.442695
    %v1041 = vpow.pop %v1040
    %v1042 = vmul.f32 %v1022, %v1035
    %v1043 = vmul.f32 %v1023, %v1037
    %v1044 = vmul.f32 %v1024, %v1039
    %v1045 = vmul.f32 %v1025, %v1041
    %v1046 = vsub.f32 1.0, %v1042
    %v1047 = vsub.f32 1.0, %v1043
    %v1048 = vsub.f32 1.0, %v1044
    %v1049 = vsub.f32 1.0, %v1045
    %v1050 = vmul.f32 %v966, %v1046
    %v1051 = vmul.f32 %v967, %v1047
    %v1052 = vmul.f32 %v968, %v1048
    %v1053 = vmul.f32 %v969, %v1049
    %v1054 = vadd.f32 %v1050, 1.0
    %v1055 = vadd.f32 %v1051, 1.0
    %v1056 = vadd.f32 %v1052, 1.0
    %v1057 = vadd.f32 %v1053, 1.0
    %v1058 = vmul.f32 %v954, %v1054
    %v1059 = vmul.f32 %v955, %v1055
    %v1060 = vmul.f32 %v956, %v1056
    %v1061 = vmul.f32 %v957, %v1057
    %v1062 = vlaneseq
    %v1063 = vshrl.u32 %v1062, 7
    %v1064 = vsub.s32 6, %v1063
    %v1065 = vrot.slane %v41, %v1064
    %vm1066 = vcmask 261120
    %v1068 = vsel %vm1066, %v1058, 0
    %v1071 = vsel %vm1066, %v1059, 0
    %v1074 = vsel %vm1066, %v1060, 0
    %v1077 = vsel %vm1066, %v1061, 0
    %1079 = vmatprep.subr.mxu0 0.0
    %1080 = vmatpush1.msra.mxu0 %v42
    %1081 = vmatprep.subr.mxu0 0.0
    %1082 = vmatpush1.msra.mxu0 %v43
    %1083 = vmatprep.subr.mxu0 0.0
    %1084 = vmatpush1.msra.mxu0 %v44
    %1085 = vmatprep.subr.mxu0 0.0
    %1086 = vmatpush1.msra.mxu0 %v45
    %1087 = vmatprep.subr.mxu0 0.0
    %1088 = vmatpush1.msra.mxu0 0.0
    %1089 = vmatprep.subr.mxu0 0.0
    %1090 = vmatpush1.msra.mxu0 0.0
    %1091 = vmatprep.subr.mxu0 0.0
    %1092 = vmatpush1.msra.mxu0 0.0
    %1093 = vmatprep.subr.mxu0 0.0
    %1094 = vmatpush1.msra.mxu0 0.0
    %1095 = vmatprep.subr.mxu0 0.0
    %1096 = vmatpush1.msra.mxu0 0.0
    %1097 = vmatprep.subr.mxu0 0.0
    %1098 = vmatpush1.msra.mxu0 0.0
    %1099 = vmatprep.subr.mxu0 0.0
    %1100 = vmatpush1.msra.mxu0 0.0
    %1101 = vmatprep.subr.mxu0 0.0
    %1102 = vmatpush1.msra.mxu0 0.0
    %1103 = vmatprep.subr.mxu0 0.0
    %1104 = vmatpush1.msra.mxu0 0.0
    %1105 = vmatprep.subr.mxu0 0.0
    %1106 = vmatpush1.msra.mxu0 0.0
    %1107 = vmatprep.subr.mxu0 0.0
    %1108 = vmatpush1.msra.mxu0 0.0
    %1109 = vmatprep.subr.mxu0 0.0
    %1110 = vmatpush1.msra.mxu0 0.0
    %1111 = vmatprep.subr.mxu0 0.0
    %1112 = vmatpush1.msra.mxu0 0.0
    %1113 = vmatprep.subr.mxu0 0.0
    %1114 = vmatpush1.msra.mxu0 0.0
    %1115 = vmatprep.subr.mxu0 0.0
    %1116 = vmatpush1.msra.mxu0 0.0
    %1117 = vmatprep.subr.mxu0 0.0
    %1118 = vmatpush1.msra.mxu0 0.0
    %1119 = vmatprep.subr.mxu0 0.0
    %1120 = vmatpush1.msra.mxu0 0.0
    %1121 = vmatprep.subr.mxu0 0.0
    %1122 = vmatpush1.msra.mxu0 0.0
    %1123 = vmatprep.subr.mxu0 0.0
    %1124 = vmatpush1.msra.mxu0 0.0
    %1125 = vmatprep.subr.mxu0 0.0
    %1126 = vmatpush1.msra.mxu0 0.0
    %1127 = vmatprep.subr.mxu0 0.0
    %1128 = vmatpush1.msra.mxu0 0.0
    %1129 = vmatprep.subr.mxu0 0.0
    %1130 = vmatpush1.msra.mxu0 0.0
    %1131 = vmatprep.subr.mxu0 0.0
    %1132 = vmatpush1.msra.mxu0 0.0
    %1133 = vmatprep.subr.mxu0 0.0
    %1134 = vmatpush1.msra.mxu0 0.0
    %1135 = vmatprep.subr.mxu0 0.0
    %1136 = vmatpush1.msra.mxu0 0.0
    %1137 = vmatprep.subr.mxu0 0.0
    %1138 = vmatpush1.msra.mxu0 0.0
    %1139 = vmatprep.subr.mxu0 0.0
    %1140 = vmatpush1.msra.mxu0 0.0
    %1141 = vmatprep.subr.mxu0 0.0
    %1142 = vmatpush1.msra.mxu0 0.0
    %1143 = vmatprep.mubr.f32.mxu0 0.0
    %1144 = vmatmul.mubr.f32.gmra.mrb[0].mxu0 %v1068
    %v1145 = vpop.f32.mrb[0].mxu0
    %v1146 = vadd.f32 %v1065, %v1145
    %v1147 = vpop.f32.mrb[0].mxu0
    %1148 = vmatprep.mubr.f32.mxu0 0.0
    %1149 = vmatmul.mubr.f32.gmra.mrb[0].mxu0 %v1071
    %v1150 = vpop.f32.mrb[0].mxu0
    %v1151 = vadd.f32 %v1065, %v1150
    %v1152 = vpop.f32.mrb[0].mxu0
    %1153 = vmatprep.mubr.f32.mxu0 0.0
    %1154 = vmatmul.mubr.f32.gmra.mrb[0].mxu0 %v1074
    %v1155 = vpop.f32.mrb[0].mxu0
    %v1156 = vadd.f32 %v1065, %v1155
    %v1157 = vpop.f32.mrb[0].mxu0
    %1158 = vmatprep.mubr.f32.mxu0 0.0
    %1159 = vmatmul.mubr.f32.gmra.mrb[0].mxu0 %v1077
    %v1160 = vpop.f32.mrb[0].mxu0
    %v1161 = vadd.f32 %v1065, %v1160
    %v1162 = vpop.f32.mrb[0].mxu0
    %1163 = vdwg.mxu0
    %v1164 = vadd.f32 %v1146, %v781
    %v1165 = vadd.f32 %v1151, %v782
    %v1166 = vadd.f32 %v1156, %v783
    %v1167 = vadd.f32 %v1161, %v784
    %s1168 = scalar_lea.vmem %s1, 56
    %v1169 = vld [vmem:[%s1168] sm:$0xff]
    %v1170 = vld [vmem:[%s1168 + $0x8] sm:$0xff]
    %v1171 = vld [vmem:[%s1168 + $0x10] sm:$0xff]
    %v1172 = vld [vmem:[%s1168 + $0x18] sm:$0xff]
    %v1173 = vld [vmem:[%s1168 + $0x20] sm:$0xff]
    %v1174 = vld [vmem:[%s1168 + $0x28] sm:$0xff]
    %v1175 = vld [vmem:[%s1168 + $0x30] sm:$0xff]
    %v1176 = vsel %vm46, %v1164, 0.0
    %1177 = vadd.xlane.f32.xlu0 %v1176
    %v1178 = vpop.xlane.xlu0 %1177
    %v1179 = vsel %vm46, %v1165, 0.0
    %1180 = vadd.xlane.f32.xlu0 %v1179
    %v1181 = vpop.xlane.xlu0 %1180
    %v1182 = vsel %vm46, %v1166, 0.0
    %1183 = vadd.xlane.f32.xlu0 %v1182
    %v1184 = vpop.xlane.xlu0 %1183
    %v1185 = vsel %vm46, %v1167, 0.0
    %1186 = vadd.xlane.f32.xlu0 %v1185
    %v1187 = vpop.xlane.xlu0 %1186
    %v1188 = vmul.f32 %v1178, %v59
    %v1189 = vmul.f32 %v1181, %v59
    %v1190 = vmul.f32 %v1184, %v59
    %v1191 = vmul.f32 %v1187, %v59
    %v1192 = vsub.f32 %v1164, %v1188
    %v1193 = vsub.f32 %v1165, %v1189
    %v1194 = vsub.f32 %v1166, %v1190
    %v1195 = vsub.f32 %v1167, %v1191
    %v1196 = vmul.f32 %v1192, %v1192
    %v1197 = vmul.f32 %v1193, %v1193
    %v1198 = vmul.f32 %v1194, %v1194
    %v1199 = vmul.f32 %v1195, %v1195
    %v1200 = vsel %vm46, %v1196, 0.0
    %1201 = vadd.xlane.f32.xlu0 %v1200
    %v1202 = vpop.xlane.xlu0 %1201
    %v1203 = vsel %vm46, %v1197, 0.0
    %1204 = vadd.xlane.f32.xlu0 %v1203
    %v1205 = vpop.xlane.xlu0 %1204
    %v1206 = vsel %vm46, %v1198, 0.0
    %1207 = vadd.xlane.f32.xlu0 %v1206
    %v1208 = vpop.xlane.xlu0 %1207
    %v1209 = vsel %vm46, %v1199, 0.0
    %1210 = vadd.xlane.f32.xlu0 %v1209
    %v1211 = vpop.xlane.xlu0 %1210
    %v1212 = vmul.f32 %v1202, %v59
    %v1213 = vmul.f32 %v1205, %v59
    %v1214 = vmul.f32 %v1208, %v59
    %v1215 = vmul.f32 %v1211, %v59
    %v1216 = vadd.f32 %v1212, 1e-05
    %v1217 = vadd.f32 %v1213, 1e-05
    %v1218 = vadd.f32 %v1214, 1e-05
    %v1219 = vadd.f32 %v1215, 1e-05
    %v1220 = vrsqrt.pop %v1216
    %v1221 = vrsqrt.pop %v1217
    %v1222 = vrsqrt.pop %v1218
    %v1223 = vrsqrt.pop %v1219
    %v1224 = vmul.f32 %v1192, %v1220
    %v1225 = vmul.f32 %v1193, %v1221
    %v1226 = vmul.f32 %v1194, %v1222
    %v1227 = vmul.f32 %v1195, %v1223
    %v1228 = vlaneseq
    %v1229 = vshrl.u32 %v1228, 7
    %v1230 = vsub.s32 1, %v1229
    %v1231 = vrot.slane %v1171, %v1230
    %v1232 = vmul.f32 %v1224, %v1231
    %v1233 = vmul.f32 %v1225, %v1231
    %v1234 = vmul.f32 %v1226, %v1231
    %v1235 = vmul.f32 %v1227, %v1231
    %v1236 = vlaneseq
    %v1237 = vshrl.u32 %v1236, 7
    %v1238 = vsub.s32 2, %v1237
    %v1239 = vrot.slane %v1171, %v1238
    %v1240 = vadd.f32 %v1232, %v1239
    %v1241 = vadd.f32 %v1233, %v1239
    %v1242 = vadd.f32 %v1234, %v1239
    %v1243 = vadd.f32 %v1235, %v1239
    %v1245 = vsel %vm46, %v1240, 0
    %v1248 = vsel %vm46, %v1241, 0
    %v1251 = vsel %vm46, %v1242, 0
    %v1254 = vsel %vm46, %v1243, 0
    %1256 = vmatprep.subr.mxu0 0.0
    %1257 = vmatpush1.msra.mxu0 %v1169
    %1258 = vmatprep.subr.mxu0 0.0
    %1259 = vmatpush1.msra.mxu0 0.0
    %1260 = vmatprep.subr.mxu0 0.0
    %1261 = vmatpush1.msra.mxu0 0.0
    %1262 = vmatprep.subr.mxu0 0.0
    %1263 = vmatpush1.msra.mxu0 0.0
    %1264 = vmatprep.subr.mxu0 0.0
    %1265 = vmatpush1.msra.mxu0 0.0
    %1266 = vmatprep.subr.mxu0 0.0
    %1267 = vmatpush1.msra.mxu0 0.0
    %1268 = vmatprep.subr.mxu0 0.0
    %1269 = vmatpush1.msra.mxu0 0.0
    %1270 = vmatprep.subr.mxu0 0.0
    %1271 = vmatpush1.msra.mxu0 0.0
    %1272 = vmatprep.subr.mxu0 0.0
    %1273 = vmatpush1.msra.mxu0 0.0
    %1274 = vmatprep.subr.mxu0 0.0
    %1275 = vmatpush1.msra.mxu0 0.0
    %1276 = vmatprep.subr.mxu0 0.0
    %1277 = vmatpush1.msra.mxu0 0.0
    %1278 = vmatprep.subr.mxu0 0.0
    %1279 = vmatpush1.msra.mxu0 0.0
    %1280 = vmatprep.subr.mxu0 0.0
    %1281 = vmatpush1.msra.mxu0 0.0
    %1282 = vmatprep.subr.mxu0 0.0
    %1283 = vmatpush1.msra.mxu0 0.0
    %1284 = vmatprep.subr.mxu0 0.0
    %1285 = vmatpush1.msra.mxu0 0.0
    %1286 = vmatprep.subr.mxu0 0.0
    %1287 = vmatpush1.msra.mxu0 0.0
    %1288 = vmatprep.subr.mxu0 0.0
    %1289 = vmatpush1.msra.mxu0 0.0
    %1290 = vmatprep.subr.mxu0 0.0
    %1291 = vmatpush1.msra.mxu0 0.0
    %1292 = vmatprep.subr.mxu0 0.0
    %1293 = vmatpush1.msra.mxu0 0.0
    %1294 = vmatprep.subr.mxu0 0.0
    %1295 = vmatpush1.msra.mxu0 0.0
    %1296 = vmatprep.subr.mxu0 0.0
    %1297 = vmatpush1.msra.mxu0 0.0
    %1298 = vmatprep.subr.mxu0 0.0
    %1299 = vmatpush1.msra.mxu0 0.0
    %1300 = vmatprep.subr.mxu0 0.0
    %1301 = vmatpush1.msra.mxu0 0.0
    %1302 = vmatprep.subr.mxu0 0.0
    %1303 = vmatpush1.msra.mxu0 0.0
    %1304 = vmatprep.subr.mxu0 0.0
    %1305 = vmatpush1.msra.mxu0 0.0
    %1306 = vmatprep.subr.mxu0 0.0
    %1307 = vmatpush1.msra.mxu0 0.0
    %1308 = vmatprep.subr.mxu0 0.0
    %1309 = vmatpush1.msra.mxu0 0.0
    %1310 = vmatprep.subr.mxu0 0.0
    %1311 = vmatpush1.msra.mxu0 0.0
    %1312 = vmatprep.subr.mxu0 0.0
    %1313 = vmatpush1.msra.mxu0 0.0
    %1314 = vmatprep.subr.mxu0 0.0
    %1315 = vmatpush1.msra.mxu0 0.0
    %1316 = vmatprep.subr.mxu0 0.0
    %1317 = vmatpush1.msra.mxu0 0.0
    %1318 = vmatprep.subr.mxu0 0.0
    %1319 = vmatpush1.msra.mxu0 0.0
    %1320 = vmatprep.mubr.f32.mxu0 0.0
    %1321 = vmatmul.mubr.f32.gmra.mrb[0].mxu0 %v1245
    %v1322 = vpop.f32.mrb[0].mxu0
    %v1323 = vadd.f32 0.0, %v1322
    %v1324 = vpop.f32.mrb[0].mxu0
    %1325 = vmatprep.mubr.f32.mxu0 0.0
    %1326 = vmatmul.mubr.f32.gmra.mrb[0].mxu0 %v1248
    %v1327 = vpop.f32.mrb[0].mxu0
    %v1328 = vadd.f32 0.0, %v1327
    %v1329 = vpop.f32.mrb[0].mxu0
    %1330 = vmatprep.mubr.f32.mxu0 0.0
    %1331 = vmatmul.mubr.f32.gmra.mrb[0].mxu0 %v1251
    %v1332 = vpop.f32.mrb[0].mxu0
    %v1333 = vadd.f32 0.0, %v1332
    %v1334 = vpop.f32.mrb[0].mxu0
    %1335 = vmatprep.mubr.f32.mxu0 0.0
    %1336 = vmatmul.mubr.f32.gmra.mrb[0].mxu0 %v1254
    %v1337 = vpop.f32.mrb[0].mxu0
    %v1338 = vadd.f32 0.0, %v1337
    %v1339 = vpop.f32.mrb[0].mxu0
    %1340 = vdwg.mxu0
    %1345 = vrot.lane.b32.xlu0 %v1323, 96
    %v1346 = vpop.permute.xlu0 %1345
    %1347 = vrot.lane.b32.xlu0 %v1328, 96
    %v1348 = vpop.permute.xlu0 %1347
    %1349 = vrot.lane.b32.xlu0 %v1333, 96
    %v1350 = vpop.permute.xlu0 %1349
    %1351 = vrot.lane.b32.xlu0 %v1338, 96
    %v1352 = vpop.permute.xlu0 %1351
    %v1357 = vmul.f32 %v1323, %v238
    %v1358 = vmul.f32 %v1328, %v240
    %v1359 = vmul.f32 %v1333, %v242
    %v1360 = vmul.f32 %v1338, %v244
    %v1361 = vmul.f32 %v1346, %v246
    %v1362 = vmul.f32 %v1348, %v248
    %v1363 = vmul.f32 %v1350, %v250
    %v1364 = vmul.f32 %v1352, %v252
    %1373 = vrot.lane.b32.xlu0 %v1357, 120
    %v1374 = vpop.permute.xlu0 %1373
    %1375 = vrot.lane.b32.xlu0 %v1358, 120
    %v1376 = vpop.permute.xlu0 %1375
    %1377 = vrot.lane.b32.xlu0 %v1359, 120
    %v1378 = vpop.permute.xlu0 %1377
    %1379 = vrot.lane.b32.xlu0 %v1360, 120
    %v1380 = vpop.permute.xlu0 %1379
    %1381 = vrot.lane.b32.xlu0 %v1361, 120
    %v1382 = vpop.permute.xlu0 %1381
    %1383 = vrot.lane.b32.xlu0 %v1362, 120
    %v1384 = vpop.permute.xlu0 %1383
    %1385 = vrot.lane.b32.xlu0 %v1363, 120
    %v1386 = vpop.permute.xlu0 %1385
    %1387 = vrot.lane.b32.xlu0 %v1364, 120
    %v1388 = vpop.permute.xlu0 %1387
    %v1397 = vadd.f32 %v1357, %v1374
    %v1398 = vadd.f32 %v1358, %v1376
    %v1399 = vadd.f32 %v1359, %v1378
    %v1400 = vadd.f32 %v1360, %v1380
    %v1401 = vadd.f32 %v1361, %v1382
    %v1402 = vadd.f32 %v1362, %v1384
    %v1403 = vadd.f32 %v1363, %v1386
    %v1404 = vadd.f32 %v1364, %v1388
    %1405 = vrot.lane.b32.xlu0 %v1323, 120
    %v1406 = vpop.permute.xlu0 %1405
    %1407 = vrot.lane.b32.xlu0 %v1328, 120
    %v1408 = vpop.permute.xlu0 %1407
    %1409 = vrot.lane.b32.xlu0 %v1333, 120
    %v1410 = vpop.permute.xlu0 %1409
    %1411 = vrot.lane.b32.xlu0 %v1338, 120
    %v1412 = vpop.permute.xlu0 %1411
    %1413 = vrot.lane.b32.xlu0 %v1346, 120
    %v1414 = vpop.permute.xlu0 %1413
    %1415 = vrot.lane.b32.xlu0 %v1348, 120
    %v1416 = vpop.permute.xlu0 %1415
    %1417 = vrot.lane.b32.xlu0 %v1350, 120
    %v1418 = vpop.permute.xlu0 %1417
    %1419 = vrot.lane.b32.xlu0 %v1352, 120
    %v1420 = vpop.permute.xlu0 %1419
    %v1421 = vsel %vm46, %v1323, 0
    %v1423 = vsel %vm46, %v1328, 0
    %v1425 = vsel %vm46, %v1333, 0
    %v1427 = vsel %vm46, %v1338, 0
    %v1429 = vsel %vm46, %v1346, 0
    %v1431 = vsel %vm46, %v1348, 0
    %v1433 = vsel %vm46, %v1350, 0
    %v1435 = vsel %vm46, %v1352, 0
    %v1437 = vsel %vm46, %v1406, 0
    %v1439 = vsel %vm46, %v1408, 0
    %v1441 = vsel %vm46, %v1410, 0
    %v1443 = vsel %vm46, %v1412, 0
    %v1445 = vsel %vm46, %v1414, 0
    %v1447 = vsel %vm46, %v1416, 0
    %v1449 = vsel %vm46, %v1418, 0
    %v1451 = vsel %vm46, %v1420, 0
    %1453 = vmatprep.subr.mxu0 0.0
    %1454 = vmatpush1.xpose.msra.mxu0 %v1437
    %1455 = vmatprep.subr.mxu0 0.0
    %1456 = vmatpush1.xpose.msra.mxu0 %v1439
    %1457 = vmatprep.subr.mxu0 0.0
    %1458 = vmatpush1.xpose.msra.mxu0 %v1441
    %1459 = vmatprep.subr.mxu0 0.0
    %1460 = vmatpush1.xpose.msra.mxu0 %v1443
    %1461 = vmatprep.subr.mxu0 0.0
    %1462 = vmatpush1.xpose.msra.mxu0 %v1445
    %1463 = vmatprep.subr.mxu0 0.0
    %1464 = vmatpush1.xpose.msra.mxu0 %v1447
    %1465 = vmatprep.subr.mxu0 0.0
    %1466 = vmatpush1.xpose.msra.mxu0 %v1449
    %1467 = vmatprep.subr.mxu0 0.0
    %1468 = vmatpush1.xpose.msra.mxu0 %v1451
    %1469 = vmatprep.subr.mxu0 0.0
    %1470 = vmatpush1.xpose.msra.mxu0 0.0
    %1471 = vmatprep.subr.mxu0 0.0
    %1472 = vmatpush1.xpose.msra.mxu0 0.0
    %1473 = vmatprep.subr.mxu0 0.0
    %1474 = vmatpush1.xpose.msra.mxu0 0.0
    %1475 = vmatprep.subr.mxu0 0.0
    %1476 = vmatpush1.xpose.msra.mxu0 0.0
    %1477 = vmatprep.subr.mxu0 0.0
    %1478 = vmatpush1.xpose.msra.mxu0 0.0
    %1479 = vmatprep.subr.mxu0 0.0
    %1480 = vmatpush1.xpose.msra.mxu0 0.0
    %1481 = vmatprep.subr.mxu0 0.0
    %1482 = vmatpush1.xpose.msra.mxu0 0.0
    %1483 = vmatprep.subr.mxu0 0.0
    %1484 = vmatpush1.xpose.msra.mxu0 0.0
    %1485 = vmatprep.subr.mxu0 0.0
    %1486 = vmatpush1.xpose.msra.mxu0 0.0
    %1487 = vmatprep.subr.mxu0 0.0
    %1488 = vmatpush1.xpose.msra.mxu0 0.0
    %1489 = vmatprep.subr.mxu0 0.0
    %1490 = vmatpush1.xpose.msra.mxu0 0.0
    %1491 = vmatprep.subr.mxu0 0.0
    %1492 = vmatpush1.xpose.msra.mxu0 0.0
    %1493 = vmatprep.subr.mxu0 0.0
    %1494 = vmatpush1.xpose.msra.mxu0 0.0
    %1495 = vmatprep.subr.mxu0 0.0
    %1496 = vmatpush1.xpose.msra.mxu0 0.0
    %1497 = vmatprep.subr.mxu0 0.0
    %1498 = vmatpush1.xpose.msra.mxu0 0.0
    %1499 = vmatprep.subr.mxu0 0.0
    %1500 = vmatpush1.xpose.msra.mxu0 0.0
    %1501 = vmatprep.subr.mxu0 0.0
    %1502 = vmatpush1.xpose.msra.mxu0 0.0
    %1503 = vmatprep.subr.mxu0 0.0
    %1504 = vmatpush1.xpose.msra.mxu0 0.0
    %1505 = vmatprep.subr.mxu0 0.0
    %1506 = vmatpush1.xpose.msra.mxu0 0.0
    %1507 = vmatprep.subr.mxu0 0.0
    %1508 = vmatpush1.xpose.msra.mxu0 0.0
    %1509 = vmatprep.subr.mxu0 0.0
    %1510 = vmatpush1.xpose.msra.mxu0 0.0
    %1511 = vmatprep.subr.mxu0 0.0
    %1512 = vmatpush1.xpose.msra.mxu0 0.0
    %1513 = vmatprep.subr.mxu0 0.0
    %1514 = vmatpush1.xpose.msra.mxu0 0.0
    %1515 = vmatprep.subr.mxu0 0.0
    %1516 = vmatpush1.xpose.msra.mxu0 0.0
    %1517 = vmatprep.mubr.f32.mxu0 0.0
    %1518 = vmatmul.mubr.f32.gmra.mrb[0].mxu0 %v1421
    %v1519 = vpop.f32.mrb[0].mxu0
    %v1520 = vadd.f32 %v15, %v1519
    %v1521 = vpop.f32.mrb[0].mxu0
    %1522 = vmatprep.mubr.f32.mxu0 0.0
    %1523 = vmatmul.mubr.f32.gmra.mrb[0].mxu0 %v1423
    %v1524 = vpop.f32.mrb[0].mxu0
    %v1525 = vadd.f32 %v16, %v1524
    %v1526 = vpop.f32.mrb[0].mxu0
    %1527 = vmatprep.mubr.f32.mxu0 0.0
    %1528 = vmatmul.mubr.f32.gmra.mrb[0].mxu0 %v1425
    %v1529 = vpop.f32.mrb[0].mxu0
    %v1530 = vadd.f32 %v17, %v1529
    %v1531 = vpop.f32.mrb[0].mxu0
    %1532 = vmatprep.mubr.f32.mxu0 0.0
    %1533 = vmatmul.mubr.f32.gmra.mrb[0].mxu0 %v1427
    %v1534 = vpop.f32.mrb[0].mxu0
    %v1535 = vadd.f32 %v18, %v1534
    %v1536 = vpop.f32.mrb[0].mxu0
    %1537 = vmatprep.mubr.f32.mxu0 0.0
    %1538 = vmatmul.mubr.f32.gmra.mrb[0].mxu0 %v1429
    %v1539 = vpop.f32.mrb[0].mxu0
    %v1540 = vadd.f32 %v19, %v1539
    %v1541 = vpop.f32.mrb[0].mxu0
    %1542 = vmatprep.mubr.f32.mxu0 0.0
    %1543 = vmatmul.mubr.f32.gmra.mrb[0].mxu0 %v1431
    %v1544 = vpop.f32.mrb[0].mxu0
    %v1545 = vadd.f32 %v20, %v1544
    %v1546 = vpop.f32.mrb[0].mxu0
    %1547 = vmatprep.mubr.f32.mxu0 0.0
    %1548 = vmatmul.mubr.f32.gmra.mrb[0].mxu0 %v1433
    %v1549 = vpop.f32.mrb[0].mxu0
    %v1550 = vadd.f32 %v21, %v1549
    %v1551 = vpop.f32.mrb[0].mxu0
    %1552 = vmatprep.mubr.f32.mxu0 0.0
    %1553 = vmatmul.mubr.f32.gmra.mrb[0].mxu0 %v1435
    %v1554 = vpop.f32.mrb[0].mxu0
    %v1555 = vadd.f32 %v22, %v1554
    %v1556 = vpop.f32.mrb[0].mxu0
    %1557 = vdwg.mxu0
    %v1558 = vsel %vm462, %v1520, -inf
    %1559 = vmax.xlane.f32.xlu0 %v1558
    %v1560 = vpop.xlane.xlu0 %1559
    %v1561 = vsel %vm462, %v1525, -inf
    %1562 = vmax.xlane.f32.xlu0 %v1561
    %v1563 = vpop.xlane.xlu0 %1562
    %v1564 = vsel %vm462, %v1530, -inf
    %1565 = vmax.xlane.f32.xlu0 %v1564
    %v1566 = vpop.xlane.xlu0 %1565
    %v1567 = vsel %vm462, %v1535, -inf
    %1568 = vmax.xlane.f32.xlu0 %v1567
    %v1569 = vpop.xlane.xlu0 %1568
    %v1570 = vsel %vm462, %v1540, -inf
    %1571 = vmax.xlane.f32.xlu0 %v1570
    %v1572 = vpop.xlane.xlu0 %1571
    %v1573 = vsel %vm462, %v1545, -inf
    %1574 = vmax.xlane.f32.xlu0 %v1573
    %v1575 = vpop.xlane.xlu0 %1574
    %v1576 = vsel %vm462, %v1550, -inf
    %1577 = vmax.xlane.f32.xlu0 %v1576
    %v1578 = vpop.xlane.xlu0 %1577
    %v1579 = vsel %vm462, %v1555, -inf
    %1580 = vmax.xlane.f32.xlu0 %v1579
    %v1581 = vpop.xlane.xlu0 %1580
    %v1582 = vsub.f32 %v1520, %v1560
    %v1583 = vsub.f32 %v1525, %v1563
    %v1584 = vsub.f32 %v1530, %v1566
    %v1585 = vsub.f32 %v1535, %v1569
    %v1586 = vsub.f32 %v1540, %v1572
    %v1587 = vsub.f32 %v1545, %v1575
    %v1588 = vsub.f32 %v1550, %v1578
    %v1589 = vsub.f32 %v1555, %v1581
    %v1590 = vmul.f32 %v1582, 1.442695
    %v1591 = vpow.pop %v1590
    %v1592 = vmul.f32 %v1583, 1.442695
    %v1593 = vpow.pop %v1592
    %v1594 = vmul.f32 %v1584, 1.442695
    %v1595 = vpow.pop %v1594
    %v1596 = vmul.f32 %v1585, 1.442695
    %v1597 = vpow.pop %v1596
    %v1598 = vmul.f32 %v1586, 1.442695
    %v1599 = vpow.pop %v1598
    %v1600 = vmul.f32 %v1587, 1.442695
    %v1601 = vpow.pop %v1600
    %v1602 = vmul.f32 %v1588, 1.442695
    %v1603 = vpow.pop %v1602
    %v1604 = vmul.f32 %v1589, 1.442695
    %v1605 = vpow.pop %v1604
    %v1606 = vsel %vm462, %v1591, 0.0
    %1607 = vadd.xlane.f32.xlu0 %v1606
    %v1608 = vpop.xlane.xlu0 %1607
    %v1609 = vsel %vm462, %v1593, 0.0
    %1610 = vadd.xlane.f32.xlu0 %v1609
    %v1611 = vpop.xlane.xlu0 %1610
    %v1612 = vsel %vm462, %v1595, 0.0
    %1613 = vadd.xlane.f32.xlu0 %v1612
    %v1614 = vpop.xlane.xlu0 %1613
    %v1615 = vsel %vm462, %v1597, 0.0
    %1616 = vadd.xlane.f32.xlu0 %v1615
    %v1617 = vpop.xlane.xlu0 %1616
    %v1618 = vsel %vm462, %v1599, 0.0
    %1619 = vadd.xlane.f32.xlu0 %v1618
    %v1620 = vpop.xlane.xlu0 %1619
    %v1621 = vsel %vm462, %v1601, 0.0
    %1622 = vadd.xlane.f32.xlu0 %v1621
    %v1623 = vpop.xlane.xlu0 %1622
    %v1624 = vsel %vm462, %v1603, 0.0
    %1625 = vadd.xlane.f32.xlu0 %v1624
    %v1626 = vpop.xlane.xlu0 %1625
    %v1627 = vsel %vm462, %v1605, 0.0
    %1628 = vadd.xlane.f32.xlu0 %v1627
    %v1629 = vpop.xlane.xlu0 %1628
    %v1630 = vrcp.pop %v1608
    %v1631 = vrcp.pop %v1611
    %v1632 = vrcp.pop %v1614
    %v1633 = vrcp.pop %v1617
    %v1634 = vrcp.pop %v1620
    %v1635 = vrcp.pop %v1623
    %v1636 = vrcp.pop %v1626
    %v1637 = vrcp.pop %v1629
    %v1638 = vmul.f32 %v1591, %v1630
    %v1639 = vmul.f32 %v1593, %v1631
    %v1640 = vmul.f32 %v1595, %v1632
    %v1641 = vmul.f32 %v1597, %v1633
    %v1642 = vmul.f32 %v1599, %v1634
    %v1643 = vmul.f32 %v1601, %v1635
    %v1644 = vmul.f32 %v1603, %v1636
    %v1645 = vmul.f32 %v1605, %v1637
    %1646 = vmatprep.subr.mxu0 0.0
    %1647 = vmatpush1.msra.mxu0 %v1638
    %1648 = vmatprep.subr.mxu0 0.0
    %1649 = vmatpush1.msra.mxu0 %v1639
    %1650 = vmatprep.subr.mxu0 0.0
    %1651 = vmatpush1.msra.mxu0 %v1640
    %1652 = vmatprep.subr.mxu0 0.0
    %1653 = vmatpush1.msra.mxu0 %v1641
    %1654 = vmatprep.subr.mxu0 0.0
    %1655 = vmatpush1.msra.mxu0 %v1642
    %1656 = vmatprep.subr.mxu0 0.0
    %1657 = vmatpush1.msra.mxu0 %v1643
    %1658 = vmatprep.subr.mxu0 0.0
    %1659 = vmatpush1.msra.mxu0 %v1644
    %1660 = vmatprep.subr.mxu0 0.0
    %1661 = vmatpush1.msra.mxu0 %v1645
    %1662 = vmatprep.subr.mxu0 0.0
    %1663 = vmatpush1.msra.mxu0 0.0
    %1664 = vmatprep.subr.mxu0 0.0
    %1665 = vmatpush1.msra.mxu0 0.0
    %1666 = vmatprep.subr.mxu0 0.0
    %1667 = vmatpush1.msra.mxu0 0.0
    %1668 = vmatprep.subr.mxu0 0.0
    %1669 = vmatpush1.msra.mxu0 0.0
    %1670 = vmatprep.subr.mxu0 0.0
    %1671 = vmatpush1.msra.mxu0 0.0
    %1672 = vmatprep.subr.mxu0 0.0
    %1673 = vmatpush1.msra.mxu0 0.0
    %1674 = vmatprep.subr.mxu0 0.0
    %1675 = vmatpush1.msra.mxu0 0.0
    %1676 = vmatprep.subr.mxu0 0.0
    %1677 = vmatpush1.msra.mxu0 0.0
    %1678 = vmatprep.subr.mxu0 0.0
    %1679 = vmatpush1.msra.mxu0 0.0
    %1680 = vmatprep.subr.mxu0 0.0
    %1681 = vmatpush1.msra.mxu0 0.0
    %1682 = vmatprep.subr.mxu0 0.0
    %1683 = vmatpush1.msra.mxu0 0.0
    %1684 = vmatprep.subr.mxu0 0.0
    %1685 = vmatpush1.msra.mxu0 0.0
    %1686 = vmatprep.subr.mxu0 0.0
    %1687 = vmatpush1.msra.mxu0 0.0
    %1688 = vmatprep.subr.mxu0 0.0
    %1689 = vmatpush1.msra.mxu0 0.0
    %1690 = vmatprep.subr.mxu0 0.0
    %1691 = vmatpush1.msra.mxu0 0.0
    %1692 = vmatprep.subr.mxu0 0.0
    %1693 = vmatpush1.msra.mxu0 0.0
    %1694 = vmatprep.subr.mxu0 0.0
    %1695 = vmatpush1.msra.mxu0 0.0
    %1696 = vmatprep.subr.mxu0 0.0
    %1697 = vmatpush1.msra.mxu0 0.0
    %1698 = vmatprep.subr.mxu0 0.0
    %1699 = vmatpush1.msra.mxu0 0.0
    %1700 = vmatprep.subr.mxu0 0.0
    %1701 = vmatpush1.msra.mxu0 0.0
    %1702 = vmatprep.subr.mxu0 0.0
    %1703 = vmatpush1.msra.mxu0 0.0
    %1704 = vmatprep.subr.mxu0 0.0
    %1705 = vmatpush1.msra.mxu0 0.0
    %1706 = vmatprep.subr.mxu0 0.0
    %1707 = vmatpush1.msra.mxu0 0.0
    %1708 = vmatprep.subr.mxu0 0.0
    %1709 = vmatpush1.msra.mxu0 0.0
    %1710 = vmatprep.mubr.f32.mxu0 0.0
    %1711 = vmatmul.mubr.f32.gmra.mrb[0].mxu0 %v552
    %v1712 = vpop.f32.mrb[0].mxu0
    %v1713 = vadd.f32 0.0, %v1712
    %v1714 = vpop.f32.mrb[0].mxu0
    %1715 = vmatprep.mubr.f32.mxu0 0.0
    %1716 = vmatmul.mubr.f32.gmra.mrb[0].mxu0 %v555
    %v1717 = vpop.f32.mrb[0].mxu0
    %v1718 = vadd.f32 0.0, %v1717
    %v1719 = vpop.f32.mrb[0].mxu0
    %1720 = vmatprep.mubr.f32.mxu0 0.0
    %1721 = vmatmul.mubr.f32.gmra.mrb[0].mxu0 %v558
    %v1722 = vpop.f32.mrb[0].mxu0
    %v1723 = vadd.f32 0.0, %v1722
    %v1724 = vpop.f32.mrb[0].mxu0
    %1725 = vmatprep.mubr.f32.mxu0 0.0
    %1726 = vmatmul.mubr.f32.gmra.mrb[0].mxu0 %v561
    %v1727 = vpop.f32.mrb[0].mxu0
    %v1728 = vadd.f32 0.0, %v1727
    %v1729 = vpop.f32.mrb[0].mxu0
    %1730 = vdwg.mxu0
    %v1731 = vlaneseq
    %v1732 = vshrl.u32 %v1731, 7
    %v1733 = vsub.s32 3, %v1732
    %v1734 = vrot.slane %v1171, %v1733
    %1743 = vrot.lane.b32.xlu0 %v1397, 112
    %v1744 = vpop.permute.xlu0 %1743
    %1745 = vrot.lane.b32.xlu0 %v1398, 112
    %v1746 = vpop.permute.xlu0 %1745
    %1747 = vrot.lane.b32.xlu0 %v1399, 112
    %v1748 = vpop.permute.xlu0 %1747
    %1749 = vrot.lane.b32.xlu0 %v1400, 112
    %v1750 = vpop.permute.xlu0 %1749
    %1751 = vrot.lane.b32.xlu0 %v1401, 112
    %v1752 = vpop.permute.xlu0 %1751
    %1753 = vrot.lane.b32.xlu0 %v1402, 112
    %v1754 = vpop.permute.xlu0 %1753
    %1755 = vrot.lane.b32.xlu0 %v1403, 112
    %v1756 = vpop.permute.xlu0 %1755
    %1757 = vrot.lane.b32.xlu0 %v1404, 112
    %v1758 = vpop.permute.xlu0 %1757
    %v1768 = vsel %vm462, %v1713, 0
    %v1771 = vsel %vm462, %v1718, 0
    %v1774 = vsel %vm462, %v1723, 0
    %v1777 = vsel %vm462, %v1728, 0
    %1779 = vmatprep.subr.mxu0 0.0
    %1780 = vmatpush1.msra.mxu0 %v1744
    %1781 = vmatprep.subr.mxu0 0.0
    %1782 = vmatpush1.msra.mxu0 %v1746
    %1783 = vmatprep.subr.mxu0 0.0
    %1784 = vmatpush1.msra.mxu0 %v1748
    %1785 = vmatprep.subr.mxu0 0.0
    %1786 = vmatpush1.msra.mxu0 %v1750
    %1787 = vmatprep.subr.mxu0 0.0
    %1788 = vmatpush1.msra.mxu0 %v1752
    %1789 = vmatprep.subr.mxu0 0.0
    %1790 = vmatpush1.msra.mxu0 %v1754
    %1791 = vmatprep.subr.mxu0 0.0
    %1792 = vmatpush1.msra.mxu0 %v1756
    %1793 = vmatprep.subr.mxu0 0.0
    %1794 = vmatpush1.msra.mxu0 %v1758
    %1795 = vmatprep.subr.mxu0 0.0
    %1796 = vmatpush1.msra.mxu0 0.0
    %1797 = vmatprep.subr.mxu0 0.0
    %1798 = vmatpush1.msra.mxu0 0.0
    %1799 = vmatprep.subr.mxu0 0.0
    %1800 = vmatpush1.msra.mxu0 0.0
    %1801 = vmatprep.subr.mxu0 0.0
    %1802 = vmatpush1.msra.mxu0 0.0
    %1803 = vmatprep.subr.mxu0 0.0
    %1804 = vmatpush1.msra.mxu0 0.0
    %1805 = vmatprep.subr.mxu0 0.0
    %1806 = vmatpush1.msra.mxu0 0.0
    %1807 = vmatprep.subr.mxu0 0.0
    %1808 = vmatpush1.msra.mxu0 0.0
    %1809 = vmatprep.subr.mxu0 0.0
    %1810 = vmatpush1.msra.mxu0 0.0
    %1811 = vmatprep.subr.mxu0 0.0
    %1812 = vmatpush1.msra.mxu0 0.0
    %1813 = vmatprep.subr.mxu0 0.0
    %1814 = vmatpush1.msra.mxu0 0.0
    %1815 = vmatprep.subr.mxu0 0.0
    %1816 = vmatpush1.msra.mxu0 0.0
    %1817 = vmatprep.subr.mxu0 0.0
    %1818 = vmatpush1.msra.mxu0 0.0
    %1819 = vmatprep.subr.mxu0 0.0
    %1820 = vmatpush1.msra.mxu0 0.0
    %1821 = vmatprep.subr.mxu0 0.0
    %1822 = vmatpush1.msra.mxu0 0.0
    %1823 = vmatprep.subr.mxu0 0.0
    %1824 = vmatpush1.msra.mxu0 0.0
    %1825 = vmatprep.subr.mxu0 0.0
    %1826 = vmatpush1.msra.mxu0 0.0
    %1827 = vmatprep.subr.mxu0 0.0
    %1828 = vmatpush1.msra.mxu0 0.0
    %1829 = vmatprep.subr.mxu0 0.0
    %1830 = vmatpush1.msra.mxu0 0.0
    %1831 = vmatprep.subr.mxu0 0.0
    %1832 = vmatpush1.msra.mxu0 0.0
    %1833 = vmatprep.subr.mxu0 0.0
    %1834 = vmatpush1.msra.mxu0 0.0
    %1835 = vmatprep.subr.mxu0 0.0
    %1836 = vmatpush1.msra.mxu0 0.0
    %1837 = vmatprep.subr.mxu0 0.0
    %1838 = vmatpush1.msra.mxu0 0.0
    %1839 = vmatprep.subr.mxu0 0.0
    %1840 = vmatpush1.msra.mxu0 0.0
    %1841 = vmatprep.subr.mxu0 0.0
    %1842 = vmatpush1.msra.mxu0 0.0
    %1843 = vmatprep.mubr.f32.mxu0 0.0
    %1844 = vmatmul.mubr.f32.gmra.mrb[0].mxu0 %v1768
    %v1845 = vpop.f32.mrb[0].mxu0
    %v1846 = vadd.f32 %v1734, %v1845
    %v1847 = vpop.f32.mrb[0].mxu0
    %1848 = vmatprep.mubr.f32.mxu0 0.0
    %1849 = vmatmul.mubr.f32.gmra.mrb[0].mxu0 %v1771
    %v1850 = vpop.f32.mrb[0].mxu0
    %v1851 = vadd.f32 %v1734, %v1850
    %v1852 = vpop.f32.mrb[0].mxu0
    %1853 = vmatprep.mubr.f32.mxu0 0.0
    %1854 = vmatmul.mubr.f32.gmra.mrb[0].mxu0 %v1774
    %v1855 = vpop.f32.mrb[0].mxu0
    %v1856 = vadd.f32 %v1734, %v1855
    %v1857 = vpop.f32.mrb[0].mxu0
    %1858 = vmatprep.mubr.f32.mxu0 0.0
    %1859 = vmatmul.mubr.f32.gmra.mrb[0].mxu0 %v1777
    %v1860 = vpop.f32.mrb[0].mxu0
    %v1861 = vadd.f32 %v1734, %v1860
    %v1862 = vpop.f32.mrb[0].mxu0
    %1863 = vdwg.mxu0
    %v1864 = vadd.f32 %v1846, %v1164
    %v1865 = vadd.f32 %v1851, %v1165
    %v1866 = vadd.f32 %v1856, %v1166
    %v1867 = vadd.f32 %v1861, %v1167
    %v1868 = vsel %vm46, %v1864, 0.0
    %1869 = vadd.xlane.f32.xlu0 %v1868
    %v1870 = vpop.xlane.xlu0 %1869
    %v1871 = vsel %vm46, %v1865, 0.0
    %1872 = vadd.xlane.f32.xlu0 %v1871
    %v1873 = vpop.xlane.xlu0 %1872
    %v1874 = vsel %vm46, %v1866, 0.0
    %1875 = vadd.xlane.f32.xlu0 %v1874
    %v1876 = vpop.xlane.xlu0 %1875
    %v1877 = vsel %vm46, %v1867, 0.0
    %1878 = vadd.xlane.f32.xlu0 %v1877
    %v1879 = vpop.xlane.xlu0 %1878
    %v1880 = vmul.f32 %v1870, %v59
    %v1881 = vmul.f32 %v1873, %v59
    %v1882 = vmul.f32 %v1876, %v59
    %v1883 = vmul.f32 %v1879, %v59
    %v1884 = vsub.f32 %v1864, %v1880
    %v1885 = vsub.f32 %v1865, %v1881
    %v1886 = vsub.f32 %v1866, %v1882
    %v1887 = vsub.f32 %v1867, %v1883
    %v1888 = vmul.f32 %v1884, %v1884
    %v1889 = vmul.f32 %v1885, %v1885
    %v1890 = vmul.f32 %v1886, %v1886
    %v1891 = vmul.f32 %v1887, %v1887
    %v1892 = vsel %vm46, %v1888, 0.0
    %1893 = vadd.xlane.f32.xlu0 %v1892
    %v1894 = vpop.xlane.xlu0 %1893
    %v1895 = vsel %vm46, %v1889, 0.0
    %1896 = vadd.xlane.f32.xlu0 %v1895
    %v1897 = vpop.xlane.xlu0 %1896
    %v1898 = vsel %vm46, %v1890, 0.0
    %1899 = vadd.xlane.f32.xlu0 %v1898
    %v1900 = vpop.xlane.xlu0 %1899
    %v1901 = vsel %vm46, %v1891, 0.0
    %1902 = vadd.xlane.f32.xlu0 %v1901
    %v1903 = vpop.xlane.xlu0 %1902
    %v1904 = vmul.f32 %v1894, %v59
    %v1905 = vmul.f32 %v1897, %v59
    %v1906 = vmul.f32 %v1900, %v59
    %v1907 = vmul.f32 %v1903, %v59
    %v1908 = vadd.f32 %v1904, 1e-05
    %v1909 = vadd.f32 %v1905, 1e-05
    %v1910 = vadd.f32 %v1906, 1e-05
    %v1911 = vadd.f32 %v1907, 1e-05
    %v1912 = vrsqrt.pop %v1908
    %v1913 = vrsqrt.pop %v1909
    %v1914 = vrsqrt.pop %v1910
    %v1915 = vrsqrt.pop %v1911
    %v1916 = vmul.f32 %v1884, %v1912
    %v1917 = vmul.f32 %v1885, %v1913
    %v1918 = vmul.f32 %v1886, %v1914
    %v1919 = vmul.f32 %v1887, %v1915
    %v1920 = vlaneseq
    %v1921 = vshrl.u32 %v1920, 7
    %v1922 = vsub.s32 4, %v1921
    %v1923 = vrot.slane %v1171, %v1922
    %v1924 = vmul.f32 %v1916, %v1923
    %v1925 = vmul.f32 %v1917, %v1923
    %v1926 = vmul.f32 %v1918, %v1923
    %v1927 = vmul.f32 %v1919, %v1923
    %v1928 = vlaneseq
    %v1929 = vshrl.u32 %v1928, 7
    %v1930 = vsub.s32 5, %v1929
    %v1931 = vrot.slane %v1171, %v1930
    %v1932 = vadd.f32 %v1924, %v1931
    %v1933 = vadd.f32 %v1925, %v1931
    %v1934 = vadd.f32 %v1926, %v1931
    %v1935 = vadd.f32 %v1927, %v1931
    %v1936 = vlaneseq
    %v1937 = vshrl.u32 %v1936, 7
    %v1938 = vsub.s32 0, %v1937
    %v1939 = vrot.slane %v1171, %v1938
    %v1941 = vsel %vm46, %v1932, 0
    %v1944 = vsel %vm46, %v1933, 0
    %v1947 = vsel %vm46, %v1934, 0
    %v1950 = vsel %vm46, %v1935, 0
    %1952 = vmatprep.subr.mxu0 0.0
    %1953 = vmatpush1.msra.mxu0 %v1170
    %1954 = vmatprep.subr.mxu0 0.0
    %1955 = vmatpush1.msra.mxu0 0.0
    %1956 = vmatprep.subr.mxu0 0.0
    %1957 = vmatpush1.msra.mxu0 0.0
    %1958 = vmatprep.subr.mxu0 0.0
    %1959 = vmatpush1.msra.mxu0 0.0
    %1960 = vmatprep.subr.mxu0 0.0
    %1961 = vmatpush1.msra.mxu0 0.0
    %1962 = vmatprep.subr.mxu0 0.0
    %1963 = vmatpush1.msra.mxu0 0.0
    %1964 = vmatprep.subr.mxu0 0.0
    %1965 = vmatpush1.msra.mxu0 0.0
    %1966 = vmatprep.subr.mxu0 0.0
    %1967 = vmatpush1.msra.mxu0 0.0
    %1968 = vmatprep.subr.mxu0 0.0
    %1969 = vmatpush1.msra.mxu0 0.0
    %1970 = vmatprep.subr.mxu0 0.0
    %1971 = vmatpush1.msra.mxu0 0.0
    %1972 = vmatprep.subr.mxu0 0.0
    %1973 = vmatpush1.msra.mxu0 0.0
    %1974 = vmatprep.subr.mxu0 0.0
    %1975 = vmatpush1.msra.mxu0 0.0
    %1976 = vmatprep.subr.mxu0 0.0
    %1977 = vmatpush1.msra.mxu0 0.0
    %1978 = vmatprep.subr.mxu0 0.0
    %1979 = vmatpush1.msra.mxu0 0.0
    %1980 = vmatprep.subr.mxu0 0.0
    %1981 = vmatpush1.msra.mxu0 0.0
    %1982 = vmatprep.subr.mxu0 0.0
    %1983 = vmatpush1.msra.mxu0 0.0
    %1984 = vmatprep.subr.mxu0 0.0
    %1985 = vmatpush1.msra.mxu0 0.0
    %1986 = vmatprep.subr.mxu0 0.0
    %1987 = vmatpush1.msra.mxu0 0.0
    %1988 = vmatprep.subr.mxu0 0.0
    %1989 = vmatpush1.msra.mxu0 0.0
    %1990 = vmatprep.subr.mxu0 0.0
    %1991 = vmatpush1.msra.mxu0 0.0
    %1992 = vmatprep.subr.mxu0 0.0
    %1993 = vmatpush1.msra.mxu0 0.0
    %1994 = vmatprep.subr.mxu0 0.0
    %1995 = vmatpush1.msra.mxu0 0.0
    %1996 = vmatprep.subr.mxu0 0.0
    %1997 = vmatpush1.msra.mxu0 0.0
    %1998 = vmatprep.subr.mxu0 0.0
    %1999 = vmatpush1.msra.mxu0 0.0
    %2000 = vmatprep.subr.mxu0 0.0
    %2001 = vmatpush1.msra.mxu0 0.0
    %2002 = vmatprep.subr.mxu0 0.0
    %2003 = vmatpush1.msra.mxu0 0.0
    %2004 = vmatprep.subr.mxu0 0.0
    %2005 = vmatpush1.msra.mxu0 0.0
    %2006 = vmatprep.subr.mxu0 0.0
    %2007 = vmatpush1.msra.mxu0 0.0
    %2008 = vmatprep.subr.mxu0 0.0
    %2009 = vmatpush1.msra.mxu0 0.0
    %2010 = vmatprep.subr.mxu0 0.0
    %2011 = vmatpush1.msra.mxu0 0.0
    %2012 = vmatprep.subr.mxu0 0.0
    %2013 = vmatpush1.msra.mxu0 0.0
    %2014 = vmatprep.subr.mxu0 0.0
    %2015 = vmatpush1.msra.mxu0 0.0
    %2016 = vmatprep.mubr.f32.mxu0 0.0
    %2017 = vmatmul.mubr.f32.gmra.mrb[0].mxu0 %v1941
    %v2018 = vpop.f32.mrb[0].mxu0
    %v2019 = vadd.f32 %v1939, %v2018
    %v2020 = vpop.f32.mrb[0].mxu0
    %2021 = vmatprep.mubr.f32.mxu0 0.0
    %2022 = vmatmul.mubr.f32.gmra.mrb[0].mxu0 %v1944
    %v2023 = vpop.f32.mrb[0].mxu0
    %v2024 = vadd.f32 %v1939, %v2023
    %v2025 = vpop.f32.mrb[0].mxu0
    %2026 = vmatprep.mubr.f32.mxu0 0.0
    %2027 = vmatmul.mubr.f32.gmra.mrb[0].mxu0 %v1947
    %v2028 = vpop.f32.mrb[0].mxu0
    %v2029 = vadd.f32 %v1939, %v2028
    %v2030 = vpop.f32.mrb[0].mxu0
    %2031 = vmatprep.mubr.f32.mxu0 0.0
    %2032 = vmatmul.mubr.f32.gmra.mrb[0].mxu0 %v1950
    %v2033 = vpop.f32.mrb[0].mxu0
    %v2034 = vadd.f32 %v1939, %v2033
    %v2035 = vpop.f32.mrb[0].mxu0
    %2036 = vdwg.mxu0
    %v2037 = vmul.f32 %v2019, 0.5
    %v2038 = vmul.f32 %v2024, 0.5
    %v2039 = vmul.f32 %v2029, 0.5
    %v2040 = vmul.f32 %v2034, 0.5
    %v2041 = vmul.f32 %v2019, 0.70710677
    %v2042 = vmul.f32 %v2024, 0.70710677
    %v2043 = vmul.f32 %v2029, 0.70710677
    %v2044 = vmul.f32 %v2034, 0.70710677
    %vm2045 = vcmp.ge.f32.partialorder %v2041, 0.0
    %vm2046 = vcmp.ge.f32.partialorder %v2042, 0.0
    %vm2047 = vcmp.ge.f32.partialorder %v2043, 0.0
    %vm2048 = vcmp.ge.f32.partialorder %v2044, 0.0
    %v2049 = vsel %vm2045, 1.0, -1.0
    %v2050 = vsel %vm2046, 1.0, -1.0
    %v2051 = vsel %vm2047, 1.0, -1.0
    %v2052 = vsel %vm2048, 1.0, -1.0
    %v2053 = vand.u32 2147483647, %v2041
    %v2054 = vand.u32 2147483647, %v2042
    %v2055 = vand.u32 2147483647, %v2043
    %v2056 = vand.u32 2147483647, %v2044
    %v2057 = vmul.f32 %v2053, 0.3275911
    %v2058 = vmul.f32 %v2054, 0.3275911
    %v2059 = vmul.f32 %v2055, 0.3275911
    %v2060 = vmul.f32 %v2056, 0.3275911
    %v2061 = vadd.f32 %v2057, 1.0
    %v2062 = vadd.f32 %v2058, 1.0
    %v2063 = vadd.f32 %v2059, 1.0
    %v2064 = vadd.f32 %v2060, 1.0
    %v2065 = vrcp.pop %v2061
    %v2066 = vmul.f32 1.0, %v2065
    %v2067 = vrcp.pop %v2062
    %v2068 = vmul.f32 1.0, %v2067
    %v2069 = vrcp.pop %v2063
    %v2070 = vmul.f32 1.0, %v2069
    %v2071 = vrcp.pop %v2064
    %v2072 = vmul.f32 1.0, %v2071
    %v2073 = vmul.f32 %v2066, 1.0614054
    %v2074 = vmul.f32 %v2068, 1.0614054
    %v2075 = vmul.f32 %v2070, 1.0614054
    %v2076 = vmul.f32 %v2072, 1.0614054
    %v2077 = vadd.f32 %v2073, -1.4531521
    %v2078 = vadd.f32 %v2074, -1.4531521
    %v2079 = vadd.f32 %v2075, -1.4531521
    %v2080 = vadd.f32 %v2076, -1.4531521
    %v2081 = vmul.f32 %v2066, %v2077
    %v2082 = vmul.f32 %v2068, %v2078
    %v2083 = vmul.f32 %v2070, %v2079
    %v2084 = vmul.f32 %v2072, %v2080
    %v2085 = vadd.f32 %v2081, 1.4214138
    %v2086 = vadd.f32 %v2082, 1.4214138
    %v2087 = vadd.f32 %v2083, 1.4214138
    %v2088 = vadd.f32 %v2084, 1.4214138
    %v2089 = vmul.f32 %v2066, %v2085
    %v2090 = vmul.f32 %v2068, %v2086
    %v2091 = vmul.f32 %v2070, %v2087
    %v2092 = vmul.f32 %v2072, %v2088
    %v2093 = vadd.f32 %v2089, -0.28449672
    %v2094 = vadd.f32 %v2090, -0.28449672
    %v2095 = vadd.f32 %v2091, -0.28449672
    %v2096 = vadd.f32 %v2092, -0.28449672
    %v2097 = vmul.f32 %v2066, %v2093
    %v2098 = vmul.f32 %v2068, %v2094
    %v2099 = vmul.f32 %v2070, %v2095
    %v2100 = vmul.f32 %v2072, %v2096
    %v2101 = vadd.f32 %v2097, 0.2548296
    %v2102 = vadd.f32 %v2098, 0.2548296
    %v2103 = vadd.f32 %v2099, 0.2548296
    %v2104 = vadd.f32 %v2100, 0.2548296
    %v2105 = vmul.f32 %v2066, %v2101
    %v2106 = vmul.f32 %v2068, %v2102
    %v2107 = vmul.f32 %v2070, %v2103
    %v2108 = vmul.f32 %v2072, %v2104
    %v2109 = vsub.f32 0.0, %v2053
    %v2110 = vsub.f32 0.0, %v2054
    %v2111 = vsub.f32 0.0, %v2055
    %v2112 = vsub.f32 0.0, %v2056
    %v2113 = vmul.f32 %v2109, %v2053
    %v2114 = vmul.f32 %v2110, %v2054
    %v2115 = vmul.f32 %v2111, %v2055
    %v2116 = vmul.f32 %v2112, %v2056
    %v2117 = vmul.f32 %v2113, 1.442695
    %v2118 = vpow.pop %v2117
    %v2119 = vmul.f32 %v2114, 1.442695
    %v2120 = vpow.pop %v2119
    %v2121 = vmul.f32 %v2115, 1.442695
    %v2122 = vpow.pop %v2121
    %v2123 = vmul.f32 %v2116, 1.442695
    %v2124 = vpow.pop %v2123
    %v2125 = vmul.f32 %v2105, %v2118
    %v2126 = vmul.f32 %v2106, %v2120
    %v2127 = vmul.f32 %v2107, %v2122
    %v2128 = vmul.f32 %v2108, %v2124
    %v2129 = vsub.f32 1.0, %v2125
    %v2130 = vsub.f32 1.0, %v2126
    %v2131 = vsub.f32 1.0, %v2127
    %v2132 = vsub.f32 1.0, %v2128
    %v2133 = vmul.f32 %v2049, %v2129
    %v2134 = vmul.f32 %v2050, %v2130
    %v2135 = vmul.f32 %v2051, %v2131
    %v2136 = vmul.f32 %v2052, %v2132
    %v2137 = vadd.f32 %v2133, 1.0
    %v2138 = vadd.f32 %v2134, 1.0
    %v2139 = vadd.f32 %v2135, 1.0
    %v2140 = vadd.f32 %v2136, 1.0
    %v2141 = vmul.f32 %v2037, %v2137
    %v2142 = vmul.f32 %v2038, %v2138
    %v2143 = vmul.f32 %v2039, %v2139
    %v2144 = vmul.f32 %v2040, %v2140
    %v2145 = vlaneseq
    %v2146 = vshrl.u32 %v2145, 7
    %v2147 = vsub.s32 6, %v2146
    %v2148 = vrot.slane %v1171, %v2147
    %v2150 = vsel %vm1066, %v2141, 0
    %v2153 = vsel %vm1066, %v2142, 0
    %v2156 = vsel %vm1066, %v2143, 0
    %v2159 = vsel %vm1066, %v2144, 0
    %2161 = vmatprep.subr.mxu0 0.0
    %2162 = vmatpush1.msra.mxu0 %v1172
    %2163 = vmatprep.subr.mxu0 0.0
    %2164 = vmatpush1.msra.mxu0 %v1173
    %2165 = vmatprep.subr.mxu0 0.0
    %2166 = vmatpush1.msra.mxu0 %v1174
    %2167 = vmatprep.subr.mxu0 0.0
    %2168 = vmatpush1.msra.mxu0 %v1175
    %2169 = vmatprep.subr.mxu0 0.0
    %2170 = vmatpush1.msra.mxu0 0.0
    %2171 = vmatprep.subr.mxu0 0.0
    %2172 = vmatpush1.msra.mxu0 0.0
    %2173 = vmatprep.subr.mxu0 0.0
    %2174 = vmatpush1.msra.mxu0 0.0
    %2175 = vmatprep.subr.mxu0 0.0
    %2176 = vmatpush1.msra.mxu0 0.0
    %2177 = vmatprep.subr.mxu0 0.0
    %2178 = vmatpush1.msra.mxu0 0.0
    %2179 = vmatprep.subr.mxu0 0.0
    %2180 = vmatpush1.msra.mxu0 0.0
    %2181 = vmatprep.subr.mxu0 0.0
    %2182 = vmatpush1.msra.mxu0 0.0
    %2183 = vmatprep.subr.mxu0 0.0
    %2184 = vmatpush1.msra.mxu0 0.0
    %2185 = vmatprep.subr.mxu0 0.0
    %2186 = vmatpush1.msra.mxu0 0.0
    %2187 = vmatprep.subr.mxu0 0.0
    %2188 = vmatpush1.msra.mxu0 0.0
    %2189 = vmatprep.subr.mxu0 0.0
    %2190 = vmatpush1.msra.mxu0 0.0
    %2191 = vmatprep.subr.mxu0 0.0
    %2192 = vmatpush1.msra.mxu0 0.0
    %2193 = vmatprep.subr.mxu0 0.0
    %2194 = vmatpush1.msra.mxu0 0.0
    %2195 = vmatprep.subr.mxu0 0.0
    %2196 = vmatpush1.msra.mxu0 0.0
    %2197 = vmatprep.subr.mxu0 0.0
    %2198 = vmatpush1.msra.mxu0 0.0
    %2199 = vmatprep.subr.mxu0 0.0
    %2200 = vmatpush1.msra.mxu0 0.0
    %2201 = vmatprep.subr.mxu0 0.0
    %2202 = vmatpush1.msra.mxu0 0.0
    %2203 = vmatprep.subr.mxu0 0.0
    %2204 = vmatpush1.msra.mxu0 0.0
    %2205 = vmatprep.subr.mxu0 0.0
    %2206 = vmatpush1.msra.mxu0 0.0
    %2207 = vmatprep.subr.mxu0 0.0
    %2208 = vmatpush1.msra.mxu0 0.0
    %2209 = vmatprep.subr.mxu0 0.0
    %2210 = vmatpush1.msra.mxu0 0.0
    %2211 = vmatprep.subr.mxu0 0.0
    %2212 = vmatpush1.msra.mxu0 0.0
    %2213 = vmatprep.subr.mxu0 0.0
    %2214 = vmatpush1.msra.mxu0 0.0
    %2215 = vmatprep.subr.mxu0 0.0
    %2216 = vmatpush1.msra.mxu0 0.0
    %2217 = vmatprep.subr.mxu0 0.0
    %2218 = vmatpush1.msra.mxu0 0.0
    %2219 = vmatprep.subr.mxu0 0.0
    %2220 = vmatpush1.msra.mxu0 0.0
    %2221 = vmatprep.subr.mxu0 0.0
    %2222 = vmatpush1.msra.mxu0 0.0
    %2223 = vmatprep.subr.mxu0 0.0
    %2224 = vmatpush1.msra.mxu0 0.0
    %2225 = vmatprep.mubr.f32.mxu0 0.0
    %2226 = vmatmul.mubr.f32.gmra.mrb[0].mxu0 %v2150
    %v2227 = vpop.f32.mrb[0].mxu0
    %v2228 = vadd.f32 %v2148, %v2227
    %v2229 = vpop.f32.mrb[0].mxu0
    %2230 = vmatprep.mubr.f32.mxu0 0.0
    %2231 = vmatmul.mubr.f32.gmra.mrb[0].mxu0 %v2153
    %v2232 = vpop.f32.mrb[0].mxu0
    %v2233 = vadd.f32 %v2148, %v2232
    %v2234 = vpop.f32.mrb[0].mxu0
    %2235 = vmatprep.mubr.f32.mxu0 0.0
    %2236 = vmatmul.mubr.f32.gmra.mrb[0].mxu0 %v2156
    %v2237 = vpop.f32.mrb[0].mxu0
    %v2238 = vadd.f32 %v2148, %v2237
    %v2239 = vpop.f32.mrb[0].mxu0
    %2240 = vmatprep.mubr.f32.mxu0 0.0
    %2241 = vmatmul.mubr.f32.gmra.mrb[0].mxu0 %v2159
    %v2242 = vpop.f32.mrb[0].mxu0
    %v2243 = vadd.f32 %v2148, %v2242
    %v2244 = vpop.f32.mrb[0].mxu0
    %2245 = vdwg.mxu0
    %v2246 = vadd.f32 %v2228, %v1864
    %v2247 = vadd.f32 %v2233, %v1865
    %v2248 = vadd.f32 %v2238, %v1866
    %v2249 = vadd.f32 %v2243, %v1867
    %v2250 = vld [vmem:[%s2 + $0xc8] sm:$0xff]
    %v2251 = vld [vmem:[%s2 + $0xd0] sm:$0xff]
    %v2252 = vld [vmem:[%s2 + $0xd8] sm:$0xff]
    %v2253 = vld [vmem:[%s2 + $0xe0] sm:$0xff]
    %v2254 = vld [vmem:[%s2 + $0x60] sm:$0xff]
    %v2255 = vld [vmem:[%s2 + $0x68] sm:$0xff]
    %v2256 = vld [vmem:[%s2 + $0x70] sm:$0xff]
    %v2257 = vld [vmem:[%s2 + $0x78] sm:$0xff]
    %v2258 = vld [vmem:[%s2 + $0x80] sm:$0xff]
    %v2259 = vld [vmem:[%s2 + $0xe8] sm:$0x3]
    %v2260 = vmul.f32 %v2246, %v2246
    %v2261 = vmul.f32 %v2247, %v2247
    %v2262 = vmul.f32 %v2248, %v2248
    %v2263 = vmul.f32 %v2249, %v2249
    %2268 = vrot.lane.b32.xlu0 %v2260, 8
    %v2269 = vpop.permute.xlu0 %2268
    %2270 = vrot.lane.b32.xlu0 %v2261, 8
    %v2271 = vpop.permute.xlu0 %2270
    %2272 = vrot.lane.b32.xlu0 %v2262, 8
    %v2273 = vpop.permute.xlu0 %2272
    %2274 = vrot.lane.b32.xlu0 %v2263, 8
    %v2275 = vpop.permute.xlu0 %2274
    %v2280 = vsel %vm46, %v2246, %v2269
    %v2281 = vsel %vm46, %v2247, %v2271
    %v2282 = vsel %vm46, %v2248, %v2273
    %v2283 = vsel %vm46, %v2249, %v2275
    %v2285 = vsel %vm1066, %v2250, 0
    %v2288 = vsel %vm1066, %v2251, 0
    %v2291 = vsel %vm1066, %v2252, 0
    %v2294 = vsel %vm1066, %v2253, 0
    %2296 = vmatprep.subr.mxu0 0.0
    %2297 = vmatpush1.msra.mxu0 %v2280
    %2298 = vmatprep.subr.mxu0 0.0
    %2299 = vmatpush1.msra.mxu0 %v2281
    %2300 = vmatprep.subr.mxu0 0.0
    %2301 = vmatpush1.msra.mxu0 %v2282
    %2302 = vmatprep.subr.mxu0 0.0
    %2303 = vmatpush1.msra.mxu0 %v2283
    %2304 = vmatprep.subr.mxu0 0.0
    %2305 = vmatpush1.msra.mxu0 0.0
    %2306 = vmatprep.subr.mxu0 0.0
    %2307 = vmatpush1.msra.mxu0 0.0
    %2308 = vmatprep.subr.mxu0 0.0
    %2309 = vmatpush1.msra.mxu0 0.0
    %2310 = vmatprep.subr.mxu0 0.0
    %2311 = vmatpush1.msra.mxu0 0.0
    %2312 = vmatprep.subr.mxu0 0.0
    %2313 = vmatpush1.msra.mxu0 0.0
    %2314 = vmatprep.subr.mxu0 0.0
    %2315 = vmatpush1.msra.mxu0 0.0
    %2316 = vmatprep.subr.mxu0 0.0
    %2317 = vmatpush1.msra.mxu0 0.0
    %2318 = vmatprep.subr.mxu0 0.0
    %2319 = vmatpush1.msra.mxu0 0.0
    %2320 = vmatprep.subr.mxu0 0.0
    %2321 = vmatpush1.msra.mxu0 0.0
    %2322 = vmatprep.subr.mxu0 0.0
    %2323 = vmatpush1.msra.mxu0 0.0
    %2324 = vmatprep.subr.mxu0 0.0
    %2325 = vmatpush1.msra.mxu0 0.0
    %2326 = vmatprep.subr.mxu0 0.0
    %2327 = vmatpush1.msra.mxu0 0.0
    %2328 = vmatprep.subr.mxu0 0.0
    %2329 = vmatpush1.msra.mxu0 0.0
    %2330 = vmatprep.subr.mxu0 0.0
    %2331 = vmatpush1.msra.mxu0 0.0
    %2332 = vmatprep.subr.mxu0 0.0
    %2333 = vmatpush1.msra.mxu0 0.0
    %2334 = vmatprep.subr.mxu0 0.0
    %2335 = vmatpush1.msra.mxu0 0.0
    %2336 = vmatprep.subr.mxu0 0.0
    %2337 = vmatpush1.msra.mxu0 0.0
    %2338 = vmatprep.subr.mxu0 0.0
    %2339 = vmatpush1.msra.mxu0 0.0
    %2340 = vmatprep.subr.mxu0 0.0
    %2341 = vmatpush1.msra.mxu0 0.0
    %2342 = vmatprep.subr.mxu0 0.0
    %2343 = vmatpush1.msra.mxu0 0.0
    %2344 = vmatprep.subr.mxu0 0.0
    %2345 = vmatpush1.msra.mxu0 0.0
    %2346 = vmatprep.subr.mxu0 0.0
    %2347 = vmatpush1.msra.mxu0 0.0
    %2348 = vmatprep.subr.mxu0 0.0
    %2349 = vmatpush1.msra.mxu0 0.0
    %2350 = vmatprep.subr.mxu0 0.0
    %2351 = vmatpush1.msra.mxu0 0.0
    %2352 = vmatprep.subr.mxu0 0.0
    %2353 = vmatpush1.msra.mxu0 0.0
    %2354 = vmatprep.subr.mxu0 0.0
    %2355 = vmatpush1.msra.mxu0 0.0
    %2356 = vmatprep.subr.mxu0 0.0
    %2357 = vmatpush1.msra.mxu0 0.0
    %2358 = vmatprep.subr.mxu0 0.0
    %2359 = vmatpush1.msra.mxu0 0.0
    %2360 = vmatprep.mubr.f32.mxu0 0.0
    %2361 = vmatmul.mubr.f32.gmra.mrb[0].mxu0 %v2285
    %v2362 = vpop.f32.mrb[0].mxu0
    %v2363 = vadd.f32 0.0, %v2362
    %v2364 = vpop.f32.mrb[0].mxu0
    %2365 = vmatprep.mubr.f32.mxu0 0.0
    %2366 = vmatmul.mubr.f32.gmra.mrb[0].mxu0 %v2288
    %v2367 = vpop.f32.mrb[0].mxu0
    %v2368 = vadd.f32 0.0, %v2367
    %v2369 = vpop.f32.mrb[0].mxu0
    %2370 = vmatprep.mubr.f32.mxu0 0.0
    %2371 = vmatmul.mubr.f32.gmra.mrb[0].mxu0 %v2291
    %v2372 = vpop.f32.mrb[0].mxu0
    %v2373 = vadd.f32 0.0, %v2372
    %v2374 = vpop.f32.mrb[0].mxu0
    %2375 = vmatprep.mubr.f32.mxu0 0.0
    %2376 = vmatmul.mubr.f32.gmra.mrb[0].mxu0 %v2294
    %v2377 = vpop.f32.mrb[0].mxu0
    %v2378 = vadd.f32 0.0, %v2377
    %v2379 = vpop.f32.mrb[0].mxu0
    %2380 = vdwg.mxu0
    %v2381 = vsel %vm46, %v2363, 0.0
    %2382 = vadd.xlane.f32.xlu0 %v2381
    %v2383 = vpop.xlane.xlu0 %2382
    %v2384 = vsel %vm46, %v2368, 0.0
    %2385 = vadd.xlane.f32.xlu0 %v2384
    %v2386 = vpop.xlane.xlu0 %2385
    %v2387 = vsel %vm46, %v2373, 0.0
    %2388 = vadd.xlane.f32.xlu0 %v2387
    %v2389 = vpop.xlane.xlu0 %2388
    %v2390 = vsel %vm46, %v2378, 0.0
    %2391 = vadd.xlane.f32.xlu0 %v2390
    %v2392 = vpop.xlane.xlu0 %2391
    %2397 = vrot.lane.b32.xlu0 %v2363, 120
    %v2398 = vpop.permute.xlu0 %2397
    %2399 = vrot.lane.b32.xlu0 %v2368, 120
    %v2400 = vpop.permute.xlu0 %2399
    %2401 = vrot.lane.b32.xlu0 %v2373, 120
    %v2402 = vpop.permute.xlu0 %2401
    %2403 = vrot.lane.b32.xlu0 %v2378, 120
    %v2404 = vpop.permute.xlu0 %2403
    %v2409 = vsel %vm46, %v2398, 0.0
    %2410 = vadd.xlane.f32.xlu0 %v2409
    %v2411 = vpop.xlane.xlu0 %2410
    %v2412 = vsel %vm46, %v2400, 0.0
    %2413 = vadd.xlane.f32.xlu0 %v2412
    %v2414 = vpop.xlane.xlu0 %2413
    %v2415 = vsel %vm46, %v2402, 0.0
    %2416 = vadd.xlane.f32.xlu0 %v2415
    %v2417 = vpop.xlane.xlu0 %2416
    %v2418 = vsel %vm46, %v2404, 0.0
    %2419 = vadd.xlane.f32.xlu0 %v2418
    %v2420 = vpop.xlane.xlu0 %2419
    %v2421 = vmul.f32 %v2383, %v2383
    %v2422 = vmul.f32 %v2386, %v2386
    %v2423 = vmul.f32 %v2389, %v2389
    %v2424 = vmul.f32 %v2392, %v2392
    %v2425 = vsub.f32 %v2411, %v2421
    %v2426 = vsub.f32 %v2414, %v2422
    %v2427 = vsub.f32 %v2417, %v2423
    %v2428 = vsub.f32 %v2420, %v2424
    %v2429 = vsub.f32 %v2246, %v2383
    %v2430 = vsub.f32 %v2247, %v2386
    %v2431 = vsub.f32 %v2248, %v2389
    %v2432 = vsub.f32 %v2249, %v2392
    %v2433 = vadd.f32 %v2425, 1e-05
    %v2434 = vadd.f32 %v2426, 1e-05
    %v2435 = vadd.f32 %v2427, 1e-05
    %v2436 = vadd.f32 %v2428, 1e-05
    %v2437 = vrsqrt.pop %v2433
    %v2438 = vrsqrt.pop %v2434
    %v2439 = vrsqrt.pop %v2435
    %v2440 = vrsqrt.pop %v2436
    %v2441 = vmul.f32 %v2429, %v2437
    %v2442 = vmul.f32 %v2430, %v2438
    %v2443 = vmul.f32 %v2431, %v2439
    %v2444 = vmul.f32 %v2432, %v2440
    %2445 = vrot.lane.b32.xlu0 %v2250, 96
    %v2446 = vpop.permute.xlu0 %2445
    %2447 = vrot.lane.b32.xlu0 %v2251, 96
    %v2448 = vpop.permute.xlu0 %2447
    %2449 = vrot.lane.b32.xlu0 %v2252, 96
    %v2450 = vpop.permute.xlu0 %2449
    %2451 = vrot.lane.b32.xlu0 %v2253, 96
    %v2452 = vpop.permute.xlu0 %2451
    %v2457 = vmul.f32 %v2441, %v2446
    %v2458 = vmul.f32 %v2442, %v2448
    %v2459 = vmul.f32 %v2443, %v2450
    %v2460 = vmul.f32 %v2444, %v2452
    %2461 = vrot.lane.b32.xlu0 %v2250, 88
    %v2462 = vpop.permute.xlu0 %2461
    %2463 = vrot.lane.b32.xlu0 %v2251, 88
    %v2464 = vpop.permute.xlu0 %2463
    %2465 = vrot.lane.b32.xlu0 %v2252, 88
    %v2466 = vpop.permute.xlu0 %2465
    %2467 = vrot.lane.b32.xlu0 %v2253, 88
    %v2468 = vpop.permute.xlu0 %2467
    %v2473 = vadd.f32 %v2457, %v2462
    %v2474 = vadd.f32 %v2458, %v2464
    %v2475 = vadd.f32 %v2459, %v2466
    %v2476 = vadd.f32 %v2460, %v2468
    %v2478 = vsel %vm46, %v2473, 0
    %v2481 = vsel %vm46, %v2474, 0
    %v2484 = vsel %vm46, %v2475, 0
    %v2487 = vsel %vm46, %v2476, 0
    %2489 = vmatprep.subr.mxu0 0.0
    %2490 = vmatpush1.msra.mxu0 %v2258
    %2491 = vmatprep.subr.mxu0 0.0
    %2492 = vmatpush1.msra.mxu0 0.0
    %2493 = vmatprep.subr.mxu0 0.0
    %2494 = vmatpush1.msra.mxu0 0.0
    %2495 = vmatprep.subr.mxu0 0.0
    %2496 = vmatpush1.msra.mxu0 0.0
    %2497 = vmatprep.subr.mxu0 0.0
    %2498 = vmatpush1.msra.mxu0 0.0
    %2499 = vmatprep.subr.mxu0 0.0
    %2500 = vmatpush1.msra.mxu0 0.0
    %2501 = vmatprep.subr.mxu0 0.0
    %2502 = vmatpush1.msra.mxu0 0.0
    %2503 = vmatprep.subr.mxu0 0.0
    %2504 = vmatpush1.msra.mxu0 0.0
    %2505 = vmatprep.subr.mxu0 0.0
    %2506 = vmatpush1.msra.mxu0 0.0
    %2507 = vmatprep.subr.mxu0 0.0
    %2508 = vmatpush1.msra.mxu0 0.0
    %2509 = vmatprep.subr.mxu0 0.0
    %2510 = vmatpush1.msra.mxu0 0.0
    %2511 = vmatprep.subr.mxu0 0.0
    %2512 = vmatpush1.msra.mxu0 0.0
    %2513 = vmatprep.subr.mxu0 0.0
    %2514 = vmatpush1.msra.mxu0 0.0
    %2515 = vmatprep.subr.mxu0 0.0
    %2516 = vmatpush1.msra.mxu0 0.0
    %2517 = vmatprep.subr.mxu0 0.0
    %2518 = vmatpush1.msra.mxu0 0.0
    %2519 = vmatprep.subr.mxu0 0.0
    %2520 = vmatpush1.msra.mxu0 0.0
    %2521 = vmatprep.subr.mxu0 0.0
    %2522 = vmatpush1.msra.mxu0 0.0
    %2523 = vmatprep.subr.mxu0 0.0
    %2524 = vmatpush1.msra.mxu0 0.0
    %2525 = vmatprep.subr.mxu0 0.0
    %2526 = vmatpush1.msra.mxu0 0.0
    %2527 = vmatprep.subr.mxu0 0.0
    %2528 = vmatpush1.msra.mxu0 0.0
    %2529 = vmatprep.subr.mxu0 0.0
    %2530 = vmatpush1.msra.mxu0 0.0
    %2531 = vmatprep.subr.mxu0 0.0
    %2532 = vmatpush1.msra.mxu0 0.0
    %2533 = vmatprep.subr.mxu0 0.0
    %2534 = vmatpush1.msra.mxu0 0.0
    %2535 = vmatprep.subr.mxu0 0.0
    %2536 = vmatpush1.msra.mxu0 0.0
    %2537 = vmatprep.subr.mxu0 0.0
    %2538 = vmatpush1.msra.mxu0 0.0
    %2539 = vmatprep.subr.mxu0 0.0
    %2540 = vmatpush1.msra.mxu0 0.0
    %2541 = vmatprep.subr.mxu0 0.0
    %2542 = vmatpush1.msra.mxu0 0.0
    %2543 = vmatprep.subr.mxu0 0.0
    %2544 = vmatpush1.msra.mxu0 0.0
    %2545 = vmatprep.subr.mxu0 0.0
    %2546 = vmatpush1.msra.mxu0 0.0
    %2547 = vmatprep.subr.mxu0 0.0
    %2548 = vmatpush1.msra.mxu0 0.0
    %2549 = vmatprep.subr.mxu0 0.0
    %2550 = vmatpush1.msra.mxu0 0.0
    %2551 = vmatprep.subr.mxu0 0.0
    %2552 = vmatpush1.msra.mxu0 0.0
    %2553 = vmatprep.mubr.f32.mxu0 0.0
    %2554 = vmatmul.mubr.f32.gmra.mrb[0].mxu0 %v2478
    %v2555 = vpop.f32.mrb[0].mxu0
    %v2556 = vadd.f32 0.0, %v2555
    %v2557 = vpop.f32.mrb[0].mxu0
    %2558 = vmatprep.mubr.f32.mxu0 0.0
    %2559 = vmatmul.mubr.f32.gmra.mrb[0].mxu0 %v2481
    %v2560 = vpop.f32.mrb[0].mxu0
    %v2561 = vadd.f32 0.0, %v2560
    %v2562 = vpop.f32.mrb[0].mxu0
    %2563 = vmatprep.mubr.f32.mxu0 0.0
    %2564 = vmatmul.mubr.f32.gmra.mrb[0].mxu0 %v2484
    %v2565 = vpop.f32.mrb[0].mxu0
    %v2566 = vadd.f32 0.0, %v2565
    %v2567 = vpop.f32.mrb[0].mxu0
    %2568 = vmatprep.mubr.f32.mxu0 0.0
    %2569 = vmatmul.mubr.f32.gmra.mrb[0].mxu0 %v2487
    %v2570 = vpop.f32.mrb[0].mxu0
    %v2571 = vadd.f32 0.0, %v2570
    %v2572 = vpop.f32.mrb[0].mxu0
    %2573 = vdwg.mxu0
    %v2574 = vmul.f32 %v2556, %v2254
    %v2575 = vmul.f32 %v2561, %v2255
    %v2576 = vmul.f32 %v2566, %v2256
    %v2577 = vmul.f32 %v2571, %v2257
    %2578 = vrot.lane.b32.xlu0 %v27, 112
    %v2579 = vpop.permute.xlu0 %2578
    %2580 = vrot.lane.b32.xlu0 %v28, 112
    %v2581 = vpop.permute.xlu0 %2580
    %2582 = vrot.lane.b32.xlu0 %v29, 112
    %v2583 = vpop.permute.xlu0 %2582
    %2584 = vrot.lane.b32.xlu0 %v30, 112
    %v2585 = vpop.permute.xlu0 %2584
    %2586 = vrot.lane.b32.xlu0 %v31, 112
    %v2587 = vpop.permute.xlu0 %2586
    %2588 = vrot.lane.b32.xlu0 %v32, 112
    %v2589 = vpop.permute.xlu0 %2588
    %2590 = vrot.lane.b32.xlu0 %v33, 112
    %v2591 = vpop.permute.xlu0 %2590
    %2592 = vrot.lane.b32.xlu0 %v34, 112
    %v2593 = vpop.permute.xlu0 %2592
    %v2603 = vsel %vm462, %v2574, 0
    %v2606 = vsel %vm462, %v2575, 0
    %v2609 = vsel %vm462, %v2576, 0
    %v2612 = vsel %vm462, %v2577, 0
    %2614 = vmatprep.subr.mxu0 0.0
    %2615 = vmatpush1.msra.mxu0 %v2579
    %2616 = vmatprep.subr.mxu0 0.0
    %2617 = vmatpush1.msra.mxu0 %v2581
    %2618 = vmatprep.subr.mxu0 0.0
    %2619 = vmatpush1.msra.mxu0 %v2583
    %2620 = vmatprep.subr.mxu0 0.0
    %2621 = vmatpush1.msra.mxu0 %v2585
    %2622 = vmatprep.subr.mxu0 0.0
    %2623 = vmatpush1.msra.mxu0 %v2587
    %2624 = vmatprep.subr.mxu0 0.0
    %2625 = vmatpush1.msra.mxu0 %v2589
    %2626 = vmatprep.subr.mxu0 0.0
    %2627 = vmatpush1.msra.mxu0 %v2591
    %2628 = vmatprep.subr.mxu0 0.0
    %2629 = vmatpush1.msra.mxu0 %v2593
    %2630 = vmatprep.subr.mxu0 0.0
    %2631 = vmatpush1.msra.mxu0 0.0
    %2632 = vmatprep.subr.mxu0 0.0
    %2633 = vmatpush1.msra.mxu0 0.0
    %2634 = vmatprep.subr.mxu0 0.0
    %2635 = vmatpush1.msra.mxu0 0.0
    %2636 = vmatprep.subr.mxu0 0.0
    %2637 = vmatpush1.msra.mxu0 0.0
    %2638 = vmatprep.subr.mxu0 0.0
    %2639 = vmatpush1.msra.mxu0 0.0
    %2640 = vmatprep.subr.mxu0 0.0
    %2641 = vmatpush1.msra.mxu0 0.0
    %2642 = vmatprep.subr.mxu0 0.0
    %2643 = vmatpush1.msra.mxu0 0.0
    %2644 = vmatprep.subr.mxu0 0.0
    %2645 = vmatpush1.msra.mxu0 0.0
    %2646 = vmatprep.subr.mxu0 0.0
    %2647 = vmatpush1.msra.mxu0 0.0
    %2648 = vmatprep.subr.mxu0 0.0
    %2649 = vmatpush1.msra.mxu0 0.0
    %2650 = vmatprep.subr.mxu0 0.0
    %2651 = vmatpush1.msra.mxu0 0.0
    %2652 = vmatprep.subr.mxu0 0.0
    %2653 = vmatpush1.msra.mxu0 0.0
    %2654 = vmatprep.subr.mxu0 0.0
    %2655 = vmatpush1.msra.mxu0 0.0
    %2656 = vmatprep.subr.mxu0 0.0
    %2657 = vmatpush1.msra.mxu0 0.0
    %2658 = vmatprep.subr.mxu0 0.0
    %2659 = vmatpush1.msra.mxu0 0.0
    %2660 = vmatprep.subr.mxu0 0.0
    %2661 = vmatpush1.msra.mxu0 0.0
    %2662 = vmatprep.subr.mxu0 0.0
    %2663 = vmatpush1.msra.mxu0 0.0
    %2664 = vmatprep.subr.mxu0 0.0
    %2665 = vmatpush1.msra.mxu0 0.0
    %2666 = vmatprep.subr.mxu0 0.0
    %2667 = vmatpush1.msra.mxu0 0.0
    %2668 = vmatprep.subr.mxu0 0.0
    %2669 = vmatpush1.msra.mxu0 0.0
    %2670 = vmatprep.subr.mxu0 0.0
    %2671 = vmatpush1.msra.mxu0 0.0
    %2672 = vmatprep.subr.mxu0 0.0
    %2673 = vmatpush1.msra.mxu0 0.0
    %2674 = vmatprep.subr.mxu0 0.0
    %2675 = vmatpush1.msra.mxu0 0.0
    %2676 = vmatprep.subr.mxu0 0.0
    %2677 = vmatpush1.msra.mxu0 0.0
    %2678 = vmatprep.mubr.f32.mxu0 0.0
    %2679 = vmatmul.mubr.f32.gmra.mrb[0].mxu0 %v2603
    %v2680 = vpop.f32.mrb[0].mxu0
    %v2681 = vadd.f32 0.0, %v2680
    %v2682 = vpop.f32.mrb[0].mxu0
    %2683 = vmatprep.mubr.f32.mxu0 0.0
    %2684 = vmatmul.mubr.f32.gmra.mrb[0].mxu0 %v2606
    %v2685 = vpop.f32.mrb[0].mxu0
    %v2686 = vadd.f32 0.0, %v2685
    %v2687 = vpop.f32.mrb[0].mxu0
    %2688 = vmatprep.mubr.f32.mxu0 0.0
    %2689 = vmatmul.mubr.f32.gmra.mrb[0].mxu0 %v2609
    %v2690 = vpop.f32.mrb[0].mxu0
    %v2691 = vadd.f32 0.0, %v2690
    %v2692 = vpop.f32.mrb[0].mxu0
    %2693 = vmatprep.mubr.f32.mxu0 0.0
    %2694 = vmatmul.mubr.f32.gmra.mrb[0].mxu0 %v2612
    %v2695 = vpop.f32.mrb[0].mxu0
    %v2696 = vadd.f32 0.0, %v2695
    %v2697 = vpop.f32.mrb[0].mxu0
    %2698 = vdwg.mxu0
    %2700 = vrot.lane.b32.xlu0 %v2259, 96
    %v2701 = vpop.permute.xlu0 %2700
    %v2703 = vsel %vm1066, %v2259, 0
    %2705 = vmatprep.subr.mxu0 0.0
    %2706 = vmatpush1.msra.mxu0 %v2681
    %2707 = vmatprep.subr.mxu0 0.0
    %2708 = vmatpush1.msra.mxu0 %v2686
    %2709 = vmatprep.subr.mxu0 0.0
    %2710 = vmatpush1.msra.mxu0 %v2691
    %2711 = vmatprep.subr.mxu0 0.0
    %2712 = vmatpush1.msra.mxu0 %v2696
    %2713 = vmatprep.subr.mxu0 0.0
    %2714 = vmatpush1.msra.mxu0 0.0
    %2715 = vmatprep.subr.mxu0 0.0
    %2716 = vmatpush1.msra.mxu0 0.0
    %2717 = vmatprep.subr.mxu0 0.0
    %2718 = vmatpush1.msra.mxu0 0.0
    %2719 = vmatprep.subr.mxu0 0.0
    %2720 = vmatpush1.msra.mxu0 0.0
    %2721 = vmatprep.subr.mxu0 0.0
    %2722 = vmatpush1.msra.mxu0 0.0
    %2723 = vmatprep.subr.mxu0 0.0
    %2724 = vmatpush1.msra.mxu0 0.0
    %2725 = vmatprep.subr.mxu0 0.0
    %2726 = vmatpush1.msra.mxu0 0.0
    %2727 = vmatprep.subr.mxu0 0.0
    %2728 = vmatpush1.msra.mxu0 0.0
    %2729 = vmatprep.subr.mxu0 0.0
    %2730 = vmatpush1.msra.mxu0 0.0
    %2731 = vmatprep.subr.mxu0 0.0
    %2732 = vmatpush1.msra.mxu0 0.0
    %2733 = vmatprep.subr.mxu0 0.0
    %2734 = vmatpush1.msra.mxu0 0.0
    %2735 = vmatprep.subr.mxu0 0.0
    %2736 = vmatpush1.msra.mxu0 0.0
    %2737 = vmatprep.subr.mxu0 0.0
    %2738 = vmatpush1.msra.mxu0 0.0
    %2739 = vmatprep.subr.mxu0 0.0
    %2740 = vmatpush1.msra.mxu0 0.0
    %2741 = vmatprep.subr.mxu0 0.0
    %2742 = vmatpush1.msra.mxu0 0.0
    %2743 = vmatprep.subr.mxu0 0.0
    %2744 = vmatpush1.msra.mxu0 0.0
    %2745 = vmatprep.subr.mxu0 0.0
    %2746 = vmatpush1.msra.mxu0 0.0
    %2747 = vmatprep.subr.mxu0 0.0
    %2748 = vmatpush1.msra.mxu0 0.0
    %2749 = vmatprep.subr.mxu0 0.0
    %2750 = vmatpush1.msra.mxu0 0.0
    %2751 = vmatprep.subr.mxu0 0.0
    %2752 = vmatpush1.msra.mxu0 0.0
    %2753 = vmatprep.subr.mxu0 0.0
    %2754 = vmatpush1.msra.mxu0 0.0
    %2755 = vmatprep.subr.mxu0 0.0
    %2756 = vmatpush1.msra.mxu0 0.0
    %2757 = vmatprep.subr.mxu0 0.0
    %2758 = vmatpush1.msra.mxu0 0.0
    %2759 = vmatprep.subr.mxu0 0.0
    %2760 = vmatpush1.msra.mxu0 0.0
    %2761 = vmatprep.subr.mxu0 0.0
    %2762 = vmatpush1.msra.mxu0 0.0
    %2763 = vmatprep.subr.mxu0 0.0
    %2764 = vmatpush1.msra.mxu0 0.0
    %2765 = vmatprep.subr.mxu0 0.0
    %2766 = vmatpush1.msra.mxu0 0.0
    %2767 = vmatprep.subr.mxu0 0.0
    %2768 = vmatpush1.msra.mxu0 0.0
    %2769 = vmatprep.mubr.f32.mxu0 0.0
    %2770 = vmatmul.mubr.f32.gmra.mrb[0].mxu0 %v2703
    %v2771 = vpop.f32.mrb[0].mxu0
    %v2772 = vadd.f32 %v2701, %v2771
    %v2773 = vpop.f32.mrb[0].mxu0
    %2774 = vdwg.mxu0
    %vm2775 = vcmask 25600
    %2776 = vst.msk [vmem:[#allocation2] sm:$0x3] %vm2775, %v2772
    // Predicated region
    $region14: #{vit_forward.1} parent=1 // pred_check
      _
    $region15: #{vit_forward.1} parent=1 // pred_check_branch
      %2778 = sbr.rel (0) target = $region17
    $region16: #{vit_forward.1} parent=1 // pred_region
      %s2780 = ssub.s32 32, 32
      %2781 = vsyncadd [#allocation3], %s2780
      %s2783 = sshll.u32 [#allocation2], 4
      %s2784 = int_to_ptr.vmem [resolvable:$true] %s2783
      %2786 = dma.vmem_to_hbm [thread:$0]  %s2784, 32, %s3, [#allocation3]
    $region17: #{vit_forward.1} parent=1 // pred_fallthru
      _
    // Predicated region
    $region18: #{vit_forward.1} parent=1 // pred_check
      _
    $region19: #{vit_forward.1} parent=1 // pred_check_branch
      %2788 = sbr.rel (0) target = $region21
    $region20: #{vit_forward.1} parent=1 // pred_region
      %2789 = dma.done [#allocation3], 32
    $region21: #{vit_forward.1} parent=1 // pred_fallthru
      _
    %2790 = vsyncpa [#allocation3], 1

</llo_original>
